<compile_context>
chip_gen: v6e
topology: v6e:2x2x1
jax: 0.10.0
libtpu: 0.0.40
codegen_flags: <defaults>
</compile_context>

<pallas_src>
import jax
import jax.numpy as jnp
from jax import lax
from jax.experimental import pallas as pl
from jax.experimental.pallas import tpu as pltpu


# ----------------------------------------------------------------------------
# Parameter slab packing (one VMEM input instead of ~17 tiny DMAs)
# ----------------------------------------------------------------------------
def _pack_params(named_params):
    """named_params: list of (name, 2-D array).  Returns (slab, layout).

    Each array is placed at an 8-aligned row offset and zero-padded to the
    common column width; `layout[name] = (row_off, rows, cols)`.
    """
    cw = max(int(p.shape[1]) for _, p in named_params)
    blocks, layout, off = [], {}, 0
    for name, p in named_params:
        r, c = int(p.shape[0]), int(p.shape[1])
        rp = ((r + 7) // 8) * 8
        blocks.append(jnp.pad(p.astype(jnp.float32), ((0, rp - r), (0, cw - c))))
        layout[name] = (off, r, c)
        off += rp
    return jnp.concatenate(blocks, axis=0), layout


# ----------------------------------------------------------------------------
# Pallas kernel
# ----------------------------------------------------------------------------
def _make_cdr_kernel(layout, nq, np1, np2, Q, P1, P2, C):
    def kernel(x_ref, slab_ref, muvar_ref, rec_ref, z_scr):
        T, Bb, I = x_ref.shape

        def rd(name):
            off, r, c = layout[name]
            return slab_ref[off:off + r, 0:c]

        # Hoist every parameter read (each exactly once, outside the time loop).
        q_w = [(rd(f"q_w{i}"), rd(f"q_b{i}")) for i in range(nq)]
        w1a, w1z, b1 = rd("p1_w0a"), rd("p1_w0z"), rd("p1_b0")
        p1_w = [(rd(f"p1_w{i}"), rd(f"p1_b{i}")) for i in range(1, np1)]
        p2_w = [(rd(f"p2_w{i}"), rd(f"p2_b{i}")) for i in range(np2)]
        wck = rd("wck")          # (C, P1): clamp+softmax over C
        wcd = rd("wcd")          # (C, P2): clamp+softmax over C, pre-divided by tau

        # ---- Stage 1: encoder, batched over all T*Bb rows (no z dependence) ----
        x = x_ref[...].reshape(T * Bb, I)
        # F.normalize(x, p=2, dim=1); eps=1e-12 on the norm == 1e-24 on sumsq
        ssq = jnp.sum(x * x, axis=1, keepdims=True)
        x = x * lax.rsqrt(jnp.maximum(ssq, 1e-24))
        # dropout: identity in eval mode
        h = x
        for li, (w, b) in enumerate(q_w):
            h = jnp.dot(h, w, preferred_element_type=jnp.float32) + b
            if li != nq - 1:
                h = jnp.tanh(h)
        muvar_ref[...] = h.reshape(T, Bb, 2 * Q)   # [mu | logvar], one dense store

        # ---- Stage 2: the only serial part — the z_t recurrence (p1 MLP) ----
        def step(t, z_prev):
            a_t = muvar_ref[t][:, :Q]              # eval reparameterize -> mu_t
            # concat([a_t, z_prev]) @ W1  ==  a_t @ W1a + z_prev @ W1z (no lane concat)
            h1 = (jnp.dot(a_t, w1a, preferred_element_type=jnp.float32)
                  + jnp.dot(z_prev, w1z, preferred_element_type=jnp.float32) + b1)
            if np1 > 1:
                h1 = jnp.tanh(h1)
            for li, (w, b) in enumerate(p1_w, start=1):
                h1 = jnp.dot(h1, w, preferred_element_type=jnp.float32) + b
                if li != np1 - 1:
                    h1 = jnp.tanh(h1)
            z_t = h1[:, :P1]                       # eval reparameterize -> mu
            z_scr[t] = z_t
            return z_t

        z0 = jnp.zeros((Bb, P1), jnp.float32)
        lax.fori_loop(0, T, step, z0, unroll=(T if T <= 16 else 8))

        # ---- Stage 3: p2 MLP + c-mixture, batched over T*C*Bb rows ----
        z_all = z_scr[...]                                              # (T, Bb, P1)
        h2 = (wck[None, :, None, :] * z_all[:, None, :, :]).reshape(T * C * Bb, P1)
        for li, (w, b) in enumerate(p2_w):
            h2 = jnp.dot(h2, w, preferred_element_type=jnp.float32) + b
            if li != np2 - 1:
                h2 = jnp.tanh(h2)
        # rec_CD * (softmax(W_CD)/tau), summed over c
        rec = jnp.sum(h2.reshape(T, C, Bb, P2) * wcd[None, :, None, :], axis=1)
        rec_ref[...] = rec

    return kernel


# ----------------------------------------------------------------------------
# Wrapper: parameter glue + pallas_call
# ----------------------------------------------------------------------------
def cdr_forward(x_T, q_params, p1_params, p2_params, W_CK, W_CD, *, tau, regs,
                b_blocks=1):
    T, B, I = x_T.shape
    Q = q_params[-1][0].shape[1] // 2          # mlp_q_dims[-1]
    P1 = p1_params[-1][0].shape[1] // 2        # mlp_p1_dims[-1]
    P2 = p2_params[-1][0].shape[1]             # mlp_p2_dims[-1]
    C = W_CK.shape[0]
    assert B % b_blocks == 0
    Bb = B // b_blocks

    # Time-invariant parameter transforms (clamp + softmax over c_dim);
    # fold 1/tau into the decoder mixing weights.
    wck_sm = jax.nn.softmax(jnp.clip(W_CK, 0.0, 1.0) / tau, axis=0)
    wcd_over_tau = jax.nn.softmax(jnp.clip(W_CD, 0.0, 1.0) / tau, axis=0) / tau

    # Pack everything into one f32 slab (weights pre-transposed to (in, out);
    # the first p1 weight is split into its a_t rows and z_prev rows).
    named = []
    for i, (w, _) in enumerate(q_params):
        named.append((f"q_w{i}", w))
    w0 = p1_params[0][0]
    named.append(("p1_w0a", w0[:Q]))
    named.append(("p1_w0z", w0[Q:]))
    for i, (w, _) in enumerate(p1_params[1:], start=1):
        named.append((f"p1_w{i}", w))
    for i, (w, _) in enumerate(p2_params):
        named.append((f"p2_w{i}", w))
    named.append(("wck", wck_sm))
    named.append(("wcd", wcd_over_tau))
    for i, (_, b) in enumerate(q_params):
        named.append((f"q_b{i}", b))
    for i, (_, b) in enumerate(p1_params):
        named.append((f"p1_b{i}", b))
    for i, (_, b) in enumerate(p2_params):
        named.append((f"p2_b{i}", b))
    slab, layout = _pack_params(named)

    kernel = _make_cdr_kernel(layout, len(q_params), len(p1_params), len(p2_params),
                              Q, P1, P2, C)

    # TODO(synk): for a real item vocabulary (large I) or very long T, store the
    # (I, h)/(h, I) weights in bf16 and tile the I dimension with a grid axis,
    # budgeting against v7x's 64 MiB VMEM instead of whole-array residency.

    x_spec = pl.BlockSpec((T, Bb, I), lambda i: (0, i, 0))
    slab_spec = pl.BlockSpec(slab.shape, lambda i: (0, 0))
    muvar_spec = pl.BlockSpec((T, Bb, 2 * Q), lambda i: (0, i, 0))
    rec_spec = pl.BlockSpec((T, Bb, P2), lambda i: (0, i, 0))

    muvar_T, rec_xT = pl.pallas_call(
        kernel,
        out_shape=(jax.ShapeDtypeStruct((T, B, 2 * Q), jnp.float32),   # [mu | logvar]
                   jax.ShapeDtypeStruct((T, B, P2), jnp.float32)),     # rec_xT
        grid=(b_blocks,),
        in_specs=[x_spec, slab_spec],
        out_specs=(muvar_spec, rec_spec),
        scratch_shapes=[pltpu.VMEM((T, Bb, P1), jnp.float32)],         # z_t history
        compiler_params=pltpu.CompilerParams(
            dimension_semantics=("parallel",)),                        # v7x: 2nd TC
    )(x_T, slab)

    mu_T = muvar_T[:, :, :Q]
    logvar_T = muvar_T[:, :, Q:]
    rec_last = rec_xT[-1]                      # torch `rec_xt[0]` == last timestep (B, P2)

    # reg_loss (regs=0 in the reference config) — plain-JAX glue
    reg_loss = regs * 0.5 * sum(jnp.sum(w ** 2)
                                for (w, _) in q_params + p1_params + p2_params)
    return rec_last, rec_xT, mu_T, logvar_T, reg_loss


# ----------------------------------------------------------------------------
# Pure-JAX reference (eval-mode PyTorch semantics, for correctness check)
# ----------------------------------------------------------------------------
def cdr_ref(x_T, q_params, p1_params, p2_params, W_CK, W_CD, *, tau, regs):
    T, B, I = x_T.shape
    Q = q_params[-1][0].shape[1] // 2
    P1 = p1_params[-1][0].shape[1] // 2
    wck = jax.nn.softmax(jnp.clip(W_CK, 0.0, 1.0) / tau, axis=0)
    wcd = jax.nn.softmax(jnp.clip(W_CD, 0.0, 1.0) / tau, axis=0)
    zt = jnp.zeros((B, P1), jnp.float32)
    mus, lvs, recs = [], [], []
    for t in range(T):
        x = x_T[t]
        x = x / jnp.maximum(jnp.sqrt(jnp.sum(x * x, axis=1, keepdims=True)), 1e-12)
        h = x
        for i, (w, b) in enumerate(q_params):
            h = h @ w + b
            if i != len(q_params) - 1:
                h = jnp.tanh(h)
        mu, lv = h[:, :Q], h[:, Q:]
        h1 = jnp.concatenate([mu, zt], axis=1)
        for i, (w, b) in enumerate(p1_params):
            h1 = h1 @ w + b
            if i != len(p1_params) - 1:
                h1 = jnp.tanh(h1)
        z = h1[:, :P1]
        zt = z
        h2 = z[:, None, :] * wck[None, :, :]
        for i, (w, b) in enumerate(p2_params):
            h2 = h2 @ w + b
            if i != len(p2_params) - 1:
                h2 = jnp.tanh(h2)
        rec = jnp.sum(h2 * wcd[None, :, :] / tau, axis=1)
        mus.append(mu); lvs.append(lv); recs.append(rec)
    rec_xT, mu_T, logvar_T = jnp.stack(recs), jnp.stack(mus), jnp.stack(lvs)
    reg = regs * 0.5 * sum(jnp.sum(w ** 2)
                           for (w, _) in q_params + p1_params + p2_params)
    return rec_xT[-1], rec_xT, mu_T, logvar_T, reg


# ----------------------------------------------------------------------------
# Deterministic parameter init (mirrors CDR.__init__ / init_weights shapes)
# ----------------------------------------------------------------------------
def init_params(key, mlp_q_dims, mlp_p1_dims, mlp_p2_dims, c_dim, w_sigma):
    temp_q = mlp_q_dims[:-1] + [mlp_q_dims[-1] * 2]
    temp_p1 = mlp_p1_dims[:-1] + [mlp_p1_dims[-1] * 2]
    temp_p2 = list(mlp_p2_dims)

    def make_mlp(key, dims):
        layers = []
        for d_in, d_out in zip(dims[:-1], dims[1:]):
            key, kw, kb = jax.random.split(key, 3)
            std = (2.0 / (d_in + d_out)) ** 0.5
            w = jax.random.normal(kw, (d_in, d_out), jnp.float32) * std  # = torch W.T
            b = jax.random.normal(kb, (1, d_out), jnp.float32) * 0.001
            layers.append((w, b))
        return key, layers

    key, q_params = make_mlp(key, temp_q)
    key, p1_params = make_mlp(key, temp_p1)
    key, p2_params = make_mlp(key, temp_p2)
    key, k1, k2 = jax.random.split(key, 3)
    W_CK = jnp.clip(0.5 + w_sigma * jax.random.normal(k1, (c_dim, mlp_p1_dims[-1]),
                                                      jnp.float32), 0.0, 1.0)
    W_CD = jnp.clip(0.5 + w_sigma * jax.random.normal(k2, (c_dim, mlp_p2_dims[-1]),
                                                      jnp.float32), 0.0, 1.0)
    return q_params, p1_params, p2_params, W_CK, W_CD


if __name__ == "__main__":
    # Small, self-consistent config:
    #   item dim I = 32, latent a_t dim = 16, latent z_t dim = 16, c_dim = 2
    #   p1 input must be q_out + p1_out = 16 + 16 = 32
    mlp_q_dims = [32, 24, 16]
    mlp_p1_dims = [32, 24, 16]
    mlp_p2_dims = [16, 24, 32]
    c_dim, tau, regs, w_sigma = 2, 0.1, 0.0, 0.5
    T, B, I = 8, 16, 32          # B=16 -> two 8-row blocks (parallel axis, full sublanes)

    key = jax.random.PRNGKey(0)
    key, kx = jax.random.split(key)
    x_T = jax.random.uniform(kx, (T, B, I), jnp.float32)   # (T, B, I) time-major

    q_params, p1_params, p2_params, W_CK, W_CD = init_params(
        key, mlp_q_dims, mlp_p1_dims, mlp_p2_dims, c_dim, w_sigma)

    out = cdr_forward(x_T, q_params, p1_params, p2_params, W_CK, W_CD,
                      tau=tau, regs=regs, b_blocks=2)
    out = jax.block_until_ready(out)

    ref = cdr_ref(x_T, q_params, p1_params, p2_params, W_CK, W_CD,
                  tau=tau, regs=regs)
    names = ["rec_xt[0]", "rec_xT", "mu_T", "logvar_T", "reg_loss"]
    for name, a, b in zip(names, out, ref):
        assert jnp.allclose(jnp.asarray(a), jnp.asarray(b), atol=1e-4, rtol=1e-4), name

    print("KERNEL_OK")
</pallas_src>

<mosaic_0001>
module attributes {stable_mosaic.version = 11 : i64} {
  func.func @kernel(%arg0: i32, %arg1: memref<8x8x32xf32, #tpu.memory_space<vmem>>, %arg2: memref<216x32xf32, #tpu.memory_space<vmem>>, %arg3: memref<8x8x32xf32, #tpu.memory_space<vmem>>, %arg4: memref<8x8x32xf32, #tpu.memory_space<vmem>>, %arg5: memref<8x8x16xf32, #tpu.memory_space<vmem>>) attributes {dimension_semantics = [#tpu.dimension_semantics<parallel>], iteration_bounds = array<i64: 2>, scalar_prefetch = 0 : i64, scratch_operands = 1 : i64, tpu.core_type = #tpu.core_type<tc>, window_params = [{transform_indices = @transform_0, window_bounds = array<i64: 8, 8, 32>}, {pipeline_mode = #tpu.pipeline_mode<synchronous>, transform_indices = @transform_1, window_bounds = array<i64: 216, 32>}, {transform_indices = @transform_2, window_bounds = array<i64: 8, 8, 32>}, {transform_indices = @transform_3, window_bounds = array<i64: 8, 8, 32>}]} {
    %c0 = arith.constant 0 : index
    %c0_0 = arith.constant 0 : index
    %0 = vector.load %arg2[%c0, %c0_0] : memref<216x32xf32, #tpu.memory_space<vmem>>, vector<32x24xf32>
    %c168 = arith.constant 168 : index
    %c0_1 = arith.constant 0 : index
    %1 = vector.load %arg2[%c168, %c0_1] : memref<216x32xf32, #tpu.memory_space<vmem>>, vector<1x24xf32>
    %c32 = arith.constant 32 : index
    %c0_2 = arith.constant 0 : index
    %2 = vector.load %arg2[%c32, %c0_2] : memref<216x32xf32, #tpu.memory_space<vmem>>, vector<24x32xf32>
    %c176 = arith.constant 176 : index
    %c0_3 = arith.constant 0 : index
    %3 = vector.load %arg2[%c176, %c0_3] : memref<216x32xf32, #tpu.memory_space<vmem>>, vector<1x32xf32>
    %c56 = arith.constant 56 : index
    %c0_4 = arith.constant 0 : index
    %4 = vector.load %arg2[%c56, %c0_4] : memref<216x32xf32, #tpu.memory_space<vmem>>, vector<16x24xf32>
    %c72 = arith.constant 72 : index
    %c0_5 = arith.constant 0 : index
    %5 = vector.load %arg2[%c72, %c0_5] : memref<216x32xf32, #tpu.memory_space<vmem>>, vector<16x24xf32>
    %c184 = arith.constant 184 : index
    %c0_6 = arith.constant 0 : index
    %6 = vector.load %arg2[%c184, %c0_6] : memref<216x32xf32, #tpu.memory_space<vmem>>, vector<1x24xf32>
    %c88 = arith.constant 88 : index
    %c0_7 = arith.constant 0 : index
    %7 = vector.load %arg2[%c88, %c0_7] : memref<216x32xf32, #tpu.memory_space<vmem>>, vector<24x32xf32>
    %c192 = arith.constant 192 : index
    %c0_8 = arith.constant 0 : index
    %8 = vector.load %arg2[%c192, %c0_8] : memref<216x32xf32, #tpu.memory_space<vmem>>, vector<1x32xf32>
    %c112 = arith.constant 112 : index
    %c0_9 = arith.constant 0 : index
    %9 = vector.load %arg2[%c112, %c0_9] : memref<216x32xf32, #tpu.memory_space<vmem>>, vector<16x24xf32>
    %c200 = arith.constant 200 : index
    %c0_10 = arith.constant 0 : index
    %10 = vector.load %arg2[%c200, %c0_10] : memref<216x32xf32, #tpu.memory_space<vmem>>, vector<1x24xf32>
    %c128 = arith.constant 128 : index
    %c0_11 = arith.constant 0 : index
    %11 = vector.load %arg2[%c128, %c0_11] : memref<216x32xf32, #tpu.memory_space<vmem>>, vector<24x32xf32>
    %c208 = arith.constant 208 : index
    %c0_12 = arith.constant 0 : index
    %12 = vector.load %arg2[%c208, %c0_12] : memref<216x32xf32, #tpu.memory_space<vmem>>, vector<1x32xf32>
    %c152 = arith.constant 152 : index
    %c0_13 = arith.constant 0 : index
    %13 = vector.load %arg2[%c152, %c0_13] : memref<216x32xf32, #tpu.memory_space<vmem>>, vector<2x16xf32>
    %c160 = arith.constant 160 : index
    %c0_14 = arith.constant 0 : index
    %14 = vector.load %arg2[%c160, %c0_14] : memref<216x32xf32, #tpu.memory_space<vmem>>, vector<2x32xf32>
    %c0_15 = arith.constant 0 : index
    %c0_16 = arith.constant 0 : index
    %c0_17 = arith.constant 0 : index
    %15 = vector.load %arg1[%c0_15, %c0_16, %c0_17] : memref<8x8x32xf32, #tpu.memory_space<vmem>>, vector<8x8x32xf32>
    %16 = vector.shape_cast %15 : vector<8x8x32xf32> to vector<64x32xf32>
    %17 = arith.mulf %16, %16 : vector<64x32xf32>
    %cst = arith.constant dense<0.000000e+00> : vector<64xf32>
    %18 = vector.multi_reduction <add>, %17, %cst [1] : vector<64x32xf32> to vector<64xf32>
    %19 = vector.shape_cast %18 : vector<64xf32> to vector<64x1xf32>
    %cst_18 = arith.constant 1.000000e-24 : f32
    %20 = vector.broadcast %cst_18 : f32 to vector<64x1xf32>
    %21 = arith.maximumf %19, %20 : vector<64x1xf32>
    %22 = math.rsqrt %21 : vector<64x1xf32>
    %23 = vector.broadcast %22 : vector<64x1xf32> to vector<64x32xf32>
    %24 = arith.mulf %16, %23 : vector<64x32xf32>
    %cst_19 = arith.constant dense<0.000000e+00> : vector<64x24xf32>
    %25 = tpu.matmul %24, %0, %cst_19 {dimension_numbers = #tpu.dot_dimension_numbers<[1], [0], [0], [1], [0, 0, 1, 1], [], []>} : vector<64x32xf32>, vector<32x24xf32>, vector<64x24xf32> -> vector<64x24xf32>
    %26 = vector.broadcast %1 : vector<1x24xf32> to vector<64x24xf32>
    %27 = arith.addf %25, %26 : vector<64x24xf32>
    %28 = math.tanh %27 : vector<64x24xf32>
    %cst_20 = arith.constant dense<0.000000e+00> : vector<64x32xf32>
    %29 = tpu.matmul %28, %2, %cst_20 {dimension_numbers = #tpu.dot_dimension_numbers<[1], [0], [0], [1], [0, 0, 1, 1], [], []>} : vector<64x24xf32>, vector<24x32xf32>, vector<64x32xf32> -> vector<64x32xf32>
    %30 = vector.broadcast %3 : vector<1x32xf32> to vector<64x32xf32>
    %31 = arith.addf %29, %30 : vector<64x32xf32>
    %32 = vector.shape_cast %31 : vector<64x32xf32> to vector<8x8x32xf32>
    %c0_21 = arith.constant 0 : index
    %c0_22 = arith.constant 0 : index
    %c0_23 = arith.constant 0 : index
    %33 = vector.load %arg3[%c0_21, %c0_22, %c0_23] : memref<8x8x32xf32, #tpu.memory_space<vmem>>, vector<8x8x32xf32>
    tpu.vector_store %arg3[%c0_21, %c0_22, %c0_23], %32 {strides = array<i32>} : memref<8x8x32xf32, #tpu.memory_space<vmem>>, vector<8x8x32xf32>,
    %cst_24 = arith.constant 0.000000e+00 : f32
    %34 = vector.broadcast %cst_24 : f32 to vector<8x16xf32>
    %c0_i32 = arith.constant 0 : i32
    %35 = arith.index_cast %c0_i32 : i32 to index
    %c0_25 = arith.constant 0 : index
    %c0_26 = arith.constant 0 : index
    %36 = vector.load %arg3[%35, %c0_25, %c0_26] : memref<8x8x32xf32, #tpu.memory_space<vmem>>, vector<1x8x32xf32>
    %37 = vector.shape_cast %36 : vector<1x8x32xf32> to vector<8x32xf32>
    %38 = vector.extract_strided_slice %37 {offsets = [0, 0], sizes = [8, 16], strides = [1, 1]} : vector<8x32xf32> to vector<8x16xf32>
    %cst_27 = arith.constant dense<0.000000e+00> : vector<8x24xf32>
    %39 = tpu.matmul %38, %4, %cst_27 {dimension_numbers = #tpu.dot_dimension_numbers<[1], [0], [0], [1], [0, 0, 1, 1], [], []>} : vector<8x16xf32>, vector<16x24xf32>, vector<8x24xf32> -> vector<8x24xf32>
    %cst_28 = arith.constant dense<0.000000e+00> : vector<8x24xf32>
    %40 = tpu.matmul %34, %5, %cst_28 {dimension_numbers = #tpu.dot_dimension_numbers<[1], [0], [0], [1], [0, 0, 1, 1], [], []>} : vector<8x16xf32>, vector<16x24xf32>, vector<8x24xf32> -> vector<8x24xf32>
    %41 = arith.addf %39, %40 : vector<8x24xf32>
    %42 = vector.broadcast %6 : vector<1x24xf32> to vector<8x24xf32>
    %43 = arith.addf %41, %42 : vector<8x24xf32>
    %44 = math.tanh %43 : vector<8x24xf32>
    %cst_29 = arith.constant dense<0.000000e+00> : vector<8x32xf32>
    %45 = tpu.matmul %44, %7, %cst_29 {dimension_numbers = #tpu.dot_dimension_numbers<[1], [0], [0], [1], [0, 0, 1, 1], [], []>} : vector<8x24xf32>, vector<24x32xf32>, vector<8x32xf32> -> vector<8x32xf32>
    %46 = vector.broadcast %8 : vector<1x32xf32> to vector<8x32xf32>
    %47 = arith.addf %45, %46 : vector<8x32xf32>
    %48 = vector.extract_strided_slice %47 {offsets = [0, 0], sizes = [8, 16], strides = [1, 1]} : vector<8x32xf32> to vector<8x16xf32>
    %49 = arith.index_cast %c0_i32 : i32 to index
    %c0_30 = arith.constant 0 : index
    %c0_31 = arith.constant 0 : index
    %50 = vector.load %arg5[%49, %c0_30, %c0_31] : memref<8x8x16xf32, #tpu.memory_space<vmem>>, vector<1x8x16xf32>
    %51 = vector.shape_cast %50 : vector<1x8x16xf32> to vector<8x16xf32>
    %52 = vector.shape_cast %48 : vector<8x16xf32> to vector<1x8x16xf32>
    tpu.vector_store %arg5[%49, %c0_30, %c0_31], %52 {strides = array<i32>} : memref<8x8x16xf32, #tpu.memory_space<vmem>>, vector<1x8x16xf32>,
    %c1_i32 = arith.constant 1 : i32
    %53 = arith.index_cast %c1_i32 : i32 to index
    %c0_32 = arith.constant 0 : index
    %c0_33 = arith.constant 0 : index
    %54 = vector.load %arg3[%53, %c0_32, %c0_33] : memref<8x8x32xf32, #tpu.memory_space<vmem>>, vector<1x8x32xf32>
    %55 = vector.shape_cast %54 : vector<1x8x32xf32> to vector<8x32xf32>
    %56 = vector.extract_strided_slice %55 {offsets = [0, 0], sizes = [8, 16], strides = [1, 1]} : vector<8x32xf32> to vector<8x16xf32>
    %cst_34 = arith.constant dense<0.000000e+00> : vector<8x24xf32>
    %57 = tpu.matmul %56, %4, %cst_34 {dimension_numbers = #tpu.dot_dimension_numbers<[1], [0], [0], [1], [0, 0, 1, 1], [], []>} : vector<8x16xf32>, vector<16x24xf32>, vector<8x24xf32> -> vector<8x24xf32>
    %cst_35 = arith.constant dense<0.000000e+00> : vector<8x24xf32>
    %58 = tpu.matmul %48, %5, %cst_35 {dimension_numbers = #tpu.dot_dimension_numbers<[1], [0], [0], [1], [0, 0, 1, 1], [], []>} : vector<8x16xf32>, vector<16x24xf32>, vector<8x24xf32> -> vector<8x24xf32>
    %59 = arith.addf %57, %58 : vector<8x24xf32>
    %60 = vector.broadcast %6 : vector<1x24xf32> to vector<8x24xf32>
    %61 = arith.addf %59, %60 : vector<8x24xf32>
    %62 = math.tanh %61 : vector<8x24xf32>
    %cst_36 = arith.constant dense<0.000000e+00> : vector<8x32xf32>
    %63 = tpu.matmul %62, %7, %cst_36 {dimension_numbers = #tpu.dot_dimension_numbers<[1], [0], [0], [1], [0, 0, 1, 1], [], []>} : vector<8x24xf32>, vector<24x32xf32>, vector<8x32xf32> -> vector<8x32xf32>
    %64 = vector.broadcast %8 : vector<1x32xf32> to vector<8x32xf32>
    %65 = arith.addf %63, %64 : vector<8x32xf32>
    %66 = vector.extract_strided_slice %65 {offsets = [0, 0], sizes = [8, 16], strides = [1, 1]} : vector<8x32xf32> to vector<8x16xf32>
    %67 = arith.index_cast %c1_i32 : i32 to index
    %c0_37 = arith.constant 0 : index
    %c0_38 = arith.constant 0 : index
    %68 = vector.load %arg5[%67, %c0_37, %c0_38] : memref<8x8x16xf32, #tpu.memory_space<vmem>>, vector<1x8x16xf32>
    %69 = vector.shape_cast %68 : vector<1x8x16xf32> to vector<8x16xf32>
    %70 = vector.shape_cast %66 : vector<8x16xf32> to vector<1x8x16xf32>
    tpu.vector_store %arg5[%67, %c0_37, %c0_38], %70 {strides = array<i32>} : memref<8x8x16xf32, #tpu.memory_space<vmem>>, vector<1x8x16xf32>,
    %c2_i32 = arith.constant 2 : i32
    %71 = arith.index_cast %c2_i32 : i32 to index
    %c0_39 = arith.constant 0 : index
    %c0_40 = arith.constant 0 : index
    %72 = vector.load %arg3[%71, %c0_39, %c0_40] : memref<8x8x32xf32, #tpu.memory_space<vmem>>, vector<1x8x32xf32>
    %73 = vector.shape_cast %72 : vector<1x8x32xf32> to vector<8x32xf32>
    %74 = vector.extract_strided_slice %73 {offsets = [0, 0], sizes = [8, 16], strides = [1, 1]} : vector<8x32xf32> to vector<8x16xf32>
    %cst_41 = arith.constant dense<0.000000e+00> : vector<8x24xf32>
    %75 = tpu.matmul %74, %4, %cst_41 {dimension_numbers = #tpu.dot_dimension_numbers<[1], [0], [0], [1], [0, 0, 1, 1], [], []>} : vector<8x16xf32>, vector<16x24xf32>, vector<8x24xf32> -> vector<8x24xf32>
    %cst_42 = arith.constant dense<0.000000e+00> : vector<8x24xf32>
    %76 = tpu.matmul %66, %5, %cst_42 {dimension_numbers = #tpu.dot_dimension_numbers<[1], [0], [0], [1], [0, 0, 1, 1], [], []>} : vector<8x16xf32>, vector<16x24xf32>, vector<8x24xf32> -> vector<8x24xf32>
    %77 = arith.addf %75, %76 : vector<8x24xf32>
    %78 = vector.broadcast %6 : vector<1x24xf32> to vector<8x24xf32>
    %79 = arith.addf %77, %78 : vector<8x24xf32>
    %80 = math.tanh %79 : vector<8x24xf32>
    %cst_43 = arith.constant dense<0.000000e+00> : vector<8x32xf32>
    %81 = tpu.matmul %80, %7, %cst_43 {dimension_numbers = #tpu.dot_dimension_numbers<[1], [0], [0], [1], [0, 0, 1, 1], [], []>} : vector<8x24xf32>, vector<24x32xf32>, vector<8x32xf32> -> vector<8x32xf32>
    %82 = vector.broadcast %8 : vector<1x32xf32> to vector<8x32xf32>
    %83 = arith.addf %81, %82 : vector<8x32xf32>
    %84 = vector.extract_strided_slice %83 {offsets = [0, 0], sizes = [8, 16], strides = [1, 1]} : vector<8x32xf32> to vector<8x16xf32>
    %85 = arith.index_cast %c2_i32 : i32 to index
    %c0_44 = arith.constant 0 : index
    %c0_45 = arith.constant 0 : index
    %86 = vector.load %arg5[%85, %c0_44, %c0_45] : memref<8x8x16xf32, #tpu.memory_space<vmem>>, vector<1x8x16xf32>
    %87 = vector.shape_cast %86 : vector<1x8x16xf32> to vector<8x16xf32>
    %88 = vector.shape_cast %84 : vector<8x16xf32> to vector<1x8x16xf32>
    tpu.vector_store %arg5[%85, %c0_44, %c0_45], %88 {strides = array<i32>} : memref<8x8x16xf32, #tpu.memory_space<vmem>>, vector<1x8x16xf32>,
    %c3_i32 = arith.constant 3 : i32
    %89 = arith.index_cast %c3_i32 : i32 to index
    %c0_46 = arith.constant 0 : index
    %c0_47 = arith.constant 0 : index
    %90 = vector.load %arg3[%89, %c0_46, %c0_47] : memref<8x8x32xf32, #tpu.memory_space<vmem>>, vector<1x8x32xf32>
    %91 = vector.shape_cast %90 : vector<1x8x32xf32> to vector<8x32xf32>
    %92 = vector.extract_strided_slice %91 {offsets = [0, 0], sizes = [8, 16], strides = [1, 1]} : vector<8x32xf32> to vector<8x16xf32>
    %cst_48 = arith.constant dense<0.000000e+00> : vector<8x24xf32>
    %93 = tpu.matmul %92, %4, %cst_48 {dimension_numbers = #tpu.dot_dimension_numbers<[1], [0], [0], [1], [0, 0, 1, 1], [], []>} : vector<8x16xf32>, vector<16x24xf32>, vector<8x24xf32> -> vector<8x24xf32>
    %cst_49 = arith.constant dense<0.000000e+00> : vector<8x24xf32>
    %94 = tpu.matmul %84, %5, %cst_49 {dimension_numbers = #tpu.dot_dimension_numbers<[1], [0], [0], [1], [0, 0, 1, 1], [], []>} : vector<8x16xf32>, vector<16x24xf32>, vector<8x24xf32> -> vector<8x24xf32>
    %95 = arith.addf %93, %94 : vector<8x24xf32>
    %96 = vector.broadcast %6 : vector<1x24xf32> to vector<8x24xf32>
    %97 = arith.addf %95, %96 : vector<8x24xf32>
    %98 = math.tanh %97 : vector<8x24xf32>
    %cst_50 = arith.constant dense<0.000000e+00> : vector<8x32xf32>
    %99 = tpu.matmul %98, %7, %cst_50 {dimension_numbers = #tpu.dot_dimension_numbers<[1], [0], [0], [1], [0, 0, 1, 1], [], []>} : vector<8x24xf32>, vector<24x32xf32>, vector<8x32xf32> -> vector<8x32xf32>
    %100 = vector.broadcast %8 : vector<1x32xf32> to vector<8x32xf32>
    %101 = arith.addf %99, %100 : vector<8x32xf32>
    %102 = vector.extract_strided_slice %101 {offsets = [0, 0], sizes = [8, 16], strides = [1, 1]} : vector<8x32xf32> to vector<8x16xf32>
    %103 = arith.index_cast %c3_i32 : i32 to index
    %c0_51 = arith.constant 0 : index
    %c0_52 = arith.constant 0 : index
    %104 = vector.load %arg5[%103, %c0_51, %c0_52] : memref<8x8x16xf32, #tpu.memory_space<vmem>>, vector<1x8x16xf32>
    %105 = vector.shape_cast %104 : vector<1x8x16xf32> to vector<8x16xf32>
    %106 = vector.shape_cast %102 : vector<8x16xf32> to vector<1x8x16xf32>
    tpu.vector_store %arg5[%103, %c0_51, %c0_52], %106 {strides = array<i32>} : memref<8x8x16xf32, #tpu.memory_space<vmem>>, vector<1x8x16xf32>,
    %c4_i32 = arith.constant 4 : i32
    %107 = arith.index_cast %c4_i32 : i32 to index
    %c0_53 = arith.constant 0 : index
    %c0_54 = arith.constant 0 : index
    %108 = vector.load %arg3[%107, %c0_53, %c0_54] : memref<8x8x32xf32, #tpu.memory_space<vmem>>, vector<1x8x32xf32>
    %109 = vector.shape_cast %108 : vector<1x8x32xf32> to vector<8x32xf32>
    %110 = vector.extract_strided_slice %109 {offsets = [0, 0], sizes = [8, 16], strides = [1, 1]} : vector<8x32xf32> to vector<8x16xf32>
    %cst_55 = arith.constant dense<0.000000e+00> : vector<8x24xf32>
    %111 = tpu.matmul %110, %4, %cst_55 {dimension_numbers = #tpu.dot_dimension_numbers<[1], [0], [0], [1], [0, 0, 1, 1], [], []>} : vector<8x16xf32>, vector<16x24xf32>, vector<8x24xf32> -> vector<8x24xf32>
    %cst_56 = arith.constant dense<0.000000e+00> : vector<8x24xf32>
    %112 = tpu.matmul %102, %5, %cst_56 {dimension_numbers = #tpu.dot_dimension_numbers<[1], [0], [0], [1], [0, 0, 1, 1], [], []>} : vector<8x16xf32>, vector<16x24xf32>, vector<8x24xf32> -> vector<8x24xf32>
    %113 = arith.addf %111, %112 : vector<8x24xf32>
    %114 = vector.broadcast %6 : vector<1x24xf32> to vector<8x24xf32>
    %115 = arith.addf %113, %114 : vector<8x24xf32>
    %116 = math.tanh %115 : vector<8x24xf32>
    %cst_57 = arith.constant dense<0.000000e+00> : vector<8x32xf32>
    %117 = tpu.matmul %116, %7, %cst_57 {dimension_numbers = #tpu.dot_dimension_numbers<[1], [0], [0], [1], [0, 0, 1, 1], [], []>} : vector<8x24xf32>, vector<24x32xf32>, vector<8x32xf32> -> vector<8x32xf32>
    %118 = vector.broadcast %8 : vector<1x32xf32> to vector<8x32xf32>
    %119 = arith.addf %117, %118 : vector<8x32xf32>
    %120 = vector.extract_strided_slice %119 {offsets = [0, 0], sizes = [8, 16], strides = [1, 1]} : vector<8x32xf32> to vector<8x16xf32>
    %121 = arith.index_cast %c4_i32 : i32 to index
    %c0_58 = arith.constant 0 : index
    %c0_59 = arith.constant 0 : index
    %122 = vector.load %arg5[%121, %c0_58, %c0_59] : memref<8x8x16xf32, #tpu.memory_space<vmem>>, vector<1x8x16xf32>
    %123 = vector.shape_cast %122 : vector<1x8x16xf32> to vector<8x16xf32>
    %124 = vector.shape_cast %120 : vector<8x16xf32> to vector<1x8x16xf32>
    tpu.vector_store %arg5[%121, %c0_58, %c0_59], %124 {strides = array<i32>} : memref<8x8x16xf32, #tpu.memory_space<vmem>>, vector<1x8x16xf32>,
    %c5_i32 = arith.constant 5 : i32
    %125 = arith.index_cast %c5_i32 : i32 to index
    %c0_60 = arith.constant 0 : index
    %c0_61 = arith.constant 0 : index
    %126 = vector.load %arg3[%125, %c0_60, %c0_61] : memref<8x8x32xf32, #tpu.memory_space<vmem>>, vector<1x8x32xf32>
    %127 = vector.shape_cast %126 : vector<1x8x32xf32> to vector<8x32xf32>
    %128 = vector.extract_strided_slice %127 {offsets = [0, 0], sizes = [8, 16], strides = [1, 1]} : vector<8x32xf32> to vector<8x16xf32>
    %cst_62 = arith.constant dense<0.000000e+00> : vector<8x24xf32>
    %129 = tpu.matmul %128, %4, %cst_62 {dimension_numbers = #tpu.dot_dimension_numbers<[1], [0], [0], [1], [0, 0, 1, 1], [], []>} : vector<8x16xf32>, vector<16x24xf32>, vector<8x24xf32> -> vector<8x24xf32>
    %cst_63 = arith.constant dense<0.000000e+00> : vector<8x24xf32>
    %130 = tpu.matmul %120, %5, %cst_63 {dimension_numbers = #tpu.dot_dimension_numbers<[1], [0], [0], [1], [0, 0, 1, 1], [], []>} : vector<8x16xf32>, vector<16x24xf32>, vector<8x24xf32> -> vector<8x24xf32>
    %131 = arith.addf %129, %130 : vector<8x24xf32>
    %132 = vector.broadcast %6 : vector<1x24xf32> to vector<8x24xf32>
    %133 = arith.addf %131, %132 : vector<8x24xf32>
    %134 = math.tanh %133 : vector<8x24xf32>
    %cst_64 = arith.constant dense<0.000000e+00> : vector<8x32xf32>
    %135 = tpu.matmul %134, %7, %cst_64 {dimension_numbers = #tpu.dot_dimension_numbers<[1], [0], [0], [1], [0, 0, 1, 1], [], []>} : vector<8x24xf32>, vector<24x32xf32>, vector<8x32xf32> -> vector<8x32xf32>
    %136 = vector.broadcast %8 : vector<1x32xf32> to vector<8x32xf32>
    %137 = arith.addf %135, %136 : vector<8x32xf32>
    %138 = vector.extract_strided_slice %137 {offsets = [0, 0], sizes = [8, 16], strides = [1, 1]} : vector<8x32xf32> to vector<8x16xf32>
    %139 = arith.index_cast %c5_i32 : i32 to index
    %c0_65 = arith.constant 0 : index
    %c0_66 = arith.constant 0 : index
    %140 = vector.load %arg5[%139, %c0_65, %c0_66] : memref<8x8x16xf32, #tpu.memory_space<vmem>>, vector<1x8x16xf32>
    %141 = vector.shape_cast %140 : vector<1x8x16xf32> to vector<8x16xf32>
    %142 = vector.shape_cast %138 : vector<8x16xf32> to vector<1x8x16xf32>
    tpu.vector_store %arg5[%139, %c0_65, %c0_66], %142 {strides = array<i32>} : memref<8x8x16xf32, #tpu.memory_space<vmem>>, vector<1x8x16xf32>,
    %c6_i32 = arith.constant 6 : i32
    %143 = arith.index_cast %c6_i32 : i32 to index
    %c0_67 = arith.constant 0 : index
    %c0_68 = arith.constant 0 : index
    %144 = vector.load %arg3[%143, %c0_67, %c0_68] : memref<8x8x32xf32, #tpu.memory_space<vmem>>, vector<1x8x32xf32>
    %145 = vector.shape_cast %144 : vector<1x8x32xf32> to vector<8x32xf32>
    %146 = vector.extract_strided_slice %145 {offsets = [0, 0], sizes = [8, 16], strides = [1, 1]} : vector<8x32xf32> to vector<8x16xf32>
    %cst_69 = arith.constant dense<0.000000e+00> : vector<8x24xf32>
    %147 = tpu.matmul %146, %4, %cst_69 {dimension_numbers = #tpu.dot_dimension_numbers<[1], [0], [0], [1], [0, 0, 1, 1], [], []>} : vector<8x16xf32>, vector<16x24xf32>, vector<8x24xf32> -> vector<8x24xf32>
    %cst_70 = arith.constant dense<0.000000e+00> : vector<8x24xf32>
    %148 = tpu.matmul %138, %5, %cst_70 {dimension_numbers = #tpu.dot_dimension_numbers<[1], [0], [0], [1], [0, 0, 1, 1], [], []>} : vector<8x16xf32>, vector<16x24xf32>, vector<8x24xf32> -> vector<8x24xf32>
    %149 = arith.addf %147, %148 : vector<8x24xf32>
    %150 = vector.broadcast %6 : vector<1x24xf32> to vector<8x24xf32>
    %151 = arith.addf %149, %150 : vector<8x24xf32>
    %152 = math.tanh %151 : vector<8x24xf32>
    %cst_71 = arith.constant dense<0.000000e+00> : vector<8x32xf32>
    %153 = tpu.matmul %152, %7, %cst_71 {dimension_numbers = #tpu.dot_dimension_numbers<[1], [0], [0], [1], [0, 0, 1, 1], [], []>} : vector<8x24xf32>, vector<24x32xf32>, vector<8x32xf32> -> vector<8x32xf32>
    %154 = vector.broadcast %8 : vector<1x32xf32> to vector<8x32xf32>
    %155 = arith.addf %153, %154 : vector<8x32xf32>
    %156 = vector.extract_strided_slice %155 {offsets = [0, 0], sizes = [8, 16], strides = [1, 1]} : vector<8x32xf32> to vector<8x16xf32>
    %157 = arith.index_cast %c6_i32 : i32 to index
    %c0_72 = arith.constant 0 : index
    %c0_73 = arith.constant 0 : index
    %158 = vector.load %arg5[%157, %c0_72, %c0_73] : memref<8x8x16xf32, #tpu.memory_space<vmem>>, vector<1x8x16xf32>
    %159 = vector.shape_cast %158 : vector<1x8x16xf32> to vector<8x16xf32>
    %160 = vector.shape_cast %156 : vector<8x16xf32> to vector<1x8x16xf32>
    tpu.vector_store %arg5[%157, %c0_72, %c0_73], %160 {strides = array<i32>} : memref<8x8x16xf32, #tpu.memory_space<vmem>>, vector<1x8x16xf32>,
    %c7_i32 = arith.constant 7 : i32
    %161 = arith.index_cast %c7_i32 : i32 to index
    %c0_74 = arith.constant 0 : index
    %c0_75 = arith.constant 0 : index
    %162 = vector.load %arg3[%161, %c0_74, %c0_75] : memref<8x8x32xf32, #tpu.memory_space<vmem>>, vector<1x8x32xf32>
    %163 = vector.shape_cast %162 : vector<1x8x32xf32> to vector<8x32xf32>
    %164 = vector.extract_strided_slice %163 {offsets = [0, 0], sizes = [8, 16], strides = [1, 1]} : vector<8x32xf32> to vector<8x16xf32>
    %cst_76 = arith.constant dense<0.000000e+00> : vector<8x24xf32>
    %165 = tpu.matmul %164, %4, %cst_76 {dimension_numbers = #tpu.dot_dimension_numbers<[1], [0], [0], [1], [0, 0, 1, 1], [], []>} : vector<8x16xf32>, vector<16x24xf32>, vector<8x24xf32> -> vector<8x24xf32>
    %cst_77 = arith.constant dense<0.000000e+00> : vector<8x24xf32>
    %166 = tpu.matmul %156, %5, %cst_77 {dimension_numbers = #tpu.dot_dimension_numbers<[1], [0], [0], [1], [0, 0, 1, 1], [], []>} : vector<8x16xf32>, vector<16x24xf32>, vector<8x24xf32> -> vector<8x24xf32>
    %167 = arith.addf %165, %166 : vector<8x24xf32>
    %168 = vector.broadcast %6 : vector<1x24xf32> to vector<8x24xf32>
    %169 = arith.addf %167, %168 : vector<8x24xf32>
    %170 = math.tanh %169 : vector<8x24xf32>
    %cst_78 = arith.constant dense<0.000000e+00> : vector<8x32xf32>
    %171 = tpu.matmul %170, %7, %cst_78 {dimension_numbers = #tpu.dot_dimension_numbers<[1], [0], [0], [1], [0, 0, 1, 1], [], []>} : vector<8x24xf32>, vector<24x32xf32>, vector<8x32xf32> -> vector<8x32xf32>
    %172 = vector.broadcast %8 : vector<1x32xf32> to vector<8x32xf32>
    %173 = arith.addf %171, %172 : vector<8x32xf32>
    %174 = vector.extract_strided_slice %173 {offsets = [0, 0], sizes = [8, 16], strides = [1, 1]} : vector<8x32xf32> to vector<8x16xf32>
    %175 = arith.index_cast %c7_i32 : i32 to index
    %c0_79 = arith.constant 0 : index
    %c0_80 = arith.constant 0 : index
    %176 = vector.load %arg5[%175, %c0_79, %c0_80] : memref<8x8x16xf32, #tpu.memory_space<vmem>>, vector<1x8x16xf32>
    %177 = vector.shape_cast %176 : vector<1x8x16xf32> to vector<8x16xf32>
    %178 = vector.shape_cast %174 : vector<8x16xf32> to vector<1x8x16xf32>
    tpu.vector_store %arg5[%175, %c0_79, %c0_80], %178 {strides = array<i32>} : memref<8x8x16xf32, #tpu.memory_space<vmem>>, vector<1x8x16xf32>,
    %c8_i32 = arith.constant 8 : i32
    %c0_81 = arith.constant 0 : index
    %c0_82 = arith.constant 0 : index
    %c0_83 = arith.constant 0 : index
    %179 = vector.load %arg5[%c0_81, %c0_82, %c0_83] : memref<8x8x16xf32, #tpu.memory_space<vmem>>, vector<8x8x16xf32>
    %180 = vector.shape_cast %13 : vector<2x16xf32> to vector<1x2x1x16xf32>
    %181 = vector.shape_cast %179 : vector<8x8x16xf32> to vector<8x1x8x16xf32>
    %182 = vector.broadcast %180 : vector<1x2x1x16xf32> to vector<8x2x8x16xf32>
    %183 = vector.broadcast %181 : vector<8x1x8x16xf32> to vector<8x2x8x16xf32>
    %184 = arith.mulf %182, %183 : vector<8x2x8x16xf32>
    %185 = vector.shape_cast %184 : vector<8x2x8x16xf32> to vector<128x16xf32>
    %cst_84 = arith.constant dense<0.000000e+00> : vector<128x24xf32>
    %186 = tpu.matmul %185, %9, %cst_84 {dimension_numbers = #tpu.dot_dimension_numbers<[1], [0], [0], [1], [0, 0, 1, 1], [], []>} : vector<128x16xf32>, vector<16x24xf32>, vector<128x24xf32> -> vector<128x24xf32>
    %187 = vector.broadcast %10 : vector<1x24xf32> to vector<128x24xf32>
    %188 = arith.addf %186, %187 : vector<128x24xf32>
    %189 = math.tanh %188 : vector<128x24xf32>
    %cst_85 = arith.constant dense<0.000000e+00> : vector<128x32xf32>
    %190 = tpu.matmul %189, %11, %cst_85 {dimension_numbers = #tpu.dot_dimension_numbers<[1], [0], [0], [1], [0, 0, 1, 1], [], []>} : vector<128x24xf32>, vector<24x32xf32>, vector<128x32xf32> -> vector<128x32xf32>
    %191 = vector.broadcast %12 : vector<1x32xf32> to vector<128x32xf32>
    %192 = arith.addf %190, %191 : vector<128x32xf32>
    %193 = vector.shape_cast %192 : vector<128x32xf32> to vector<8x2x8x32xf32>
    %194 = vector.shape_cast %14 : vector<2x32xf32> to vector<1x2x1x32xf32>
    %195 = vector.broadcast %194 : vector<1x2x1x32xf32> to vector<8x2x8x32xf32>
    %196 = arith.mulf %193, %195 : vector<8x2x8x32xf32>
    %cst_86 = arith.constant dense<0.000000e+00> : vector<8x8x32xf32>
    %197 = vector.multi_reduction <add>, %196, %cst_86 [1] : vector<8x2x8x32xf32> to vector<8x8x32xf32>
    %c0_87 = arith.constant 0 : index
    %c0_88 = arith.constant 0 : index
    %c0_89 = arith.constant 0 : index
    %198 = vector.load %arg4[%c0_87, %c0_88, %c0_89] : memref<8x8x32xf32, #tpu.memory_space<vmem>>, vector<8x8x32xf32>
    tpu.vector_store %arg4[%c0_87, %c0_88, %c0_89], %197 {strides = array<i32>} : memref<8x8x32xf32, #tpu.memory_space<vmem>>, vector<8x8x32xf32>,
    return
  }
  func.func @transform_0(%arg0: i32) -> (i32, i32, i32) {
    %c0_i32 = arith.constant 0 : i32
    %c0_i32_0 = arith.constant 0 : i32
    %c0_i32_1 = arith.constant 0 : i32
    return %c0_i32, %arg0, %c0_i32_0 : i32, i32, i32
  }
  func.func @transform_1(%arg0: i32) -> (i32, i32) {
    %c0_i32 = arith.constant 0 : i32
    %c0_i32_0 = arith.constant 0 : i32
    %c0_i32_1 = arith.constant 0 : i32
    return %c0_i32, %c0_i32_0 : i32, i32
  }
  func.func @transform_2(%arg0: i32) -> (i32, i32, i32) {
    %c0_i32 = arith.constant 0 : i32
    %c0_i32_0 = arith.constant 0 : i32
    %c0_i32_1 = arith.constant 0 : i32
    return %c0_i32, %arg0, %c0_i32_0 : i32, i32, i32
  }
  func.func @transform_3(%arg0: i32) -> (i32, i32, i32) {
    %c0_i32 = arith.constant 0 : i32
    %c0_i32_0 = arith.constant 0 : i32
    %c0_i32_1 = arith.constant 0 : i32
    return %c0_i32, %arg0, %c0_i32_0 : i32, i32, i32
  }
}

</mosaic_0001>

<llo_original>
// kernel: tpu_custom_call.1
$region0: #{tpu_custom_call.1}
  #allocation0 [shape = 'u32[]', space=smem, size = 0x4, offset = 0x4, fixed_abs, tag = 'smem constant byte address 0x4 - core index']
  #allocation1 [shape = 'u32[144,128]{1,0:T(1,128)}', space=vmem, size = 0x12000, scoped, tag = 'internal scratch']
  #allocation2 [shape = 'f32[8,8,16]{2,1,0:T(8,128)}', space=vmem, size = 0x8000, scoped, tag = 'scratch operand']
  %s0 = inlined_call_operand.vmem [shape: f32[8,16,32], index: 0, kind: input, shape index: {}]
  %s1 = inlined_call_operand.vmem [shape: f32[216,32], index: 1, kind: input, shape index: {}]
  %s2 = inlined_call_operand.hbm [shape: f32[8,16,32], index: 2, kind: output, shape index: {0}]
  %s3 = inlined_call_operand.hbm [shape: f32[8,16,32], index: 3, kind: output, shape index: {1}]
  %4 = xla_tuple %s2, %s3
  %s5 = sld [smem:[#allocation0]]
  $region87: #{tpu_custom_call.1} parent=0
    _
  %s7 = ssub.s32 1, %s5
  %s8 = scalar_select 0, %s7, %s5
  $region1: #{tpu_custom_call.1} parent=0
    #allocation3 [shape = 'u8[65536]{0}', space=vmem, size = 0x10000, scoped, tag = 'input window, operand 0']
    #allocation4 [shape = 'u8[65536]{0}', space=vmem, size = 0x10000, scoped, tag = 'output window, operand 0']
    #allocation5 [shape = 's32[2]{0}', space=sflag, size = 0x8, scoped, tag = 'scoped memory for tpu_custom_call.1']
    #allocation6 [shape = 'u8[65536]{0}', space=vmem, size = 0x10000, scoped, tag = 'output window, operand 1']
    #allocation7 [shape = 's32[2]{0}', space=sflag, size = 0x8, scoped, tag = 'scoped memory for tpu_custom_call.1']
    %9 = vsyncpa [#allocation5], 0
    %s10 = scalar_lea.sflag [#allocation5], 1
    %11 = vsyncpa %s10, 0
    %12 = vsyncpa [#allocation7], 0
    %s13 = scalar_lea.sflag [#allocation7], 1
    %14 = vsyncpa %s13, 0
    loop: start=0, step=1, limit=4
    $region2: #{tpu_custom_call.1} parent=1 // loop_pre_header
      _
    $region3: #{tpu_custom_call.1} parent=1 // loop_header
      %s16 = sphi 0, %s20
      %p17 = scmp.ge.s32.totalorder %s16, 4
      %s26 = sphi 0, %s28
      %s29 = sphi 0, %s26
      %s30 = sphi 0, %s29
      %s46 = sphi 0, %s30
      %s50 = sphi 0, %s50
      %s52 = sphi 0, %s50
      %s53 = sphi 0, %s52
      %s67 = sphi 0, %s53
      %s73 = sphi 0, %s75
      %s76 = sphi 0, %s73
      %s77 = sphi 0, %s76
      %s93 = sphi 0, %s77
      %s99 = sphi 0, %s101
      %s102 = sphi 0, %s99
      %s103 = sphi 0, %s102
      %s119 = sphi 0, %s103
    $region4: #{tpu_custom_call.1} parent=1 // loop_header_branch
      %19 = sbr.rel (%p17) target = $region8
    $region5: #{tpu_custom_call.1} parent=1 // loop_body
      %s21 = ssub.s32 %s16, 1
      %s22 = ssub.s32 %s16, 2
      %s23 = sadd.s32 %s16, 1
      %s24 = ssub.s32 %s16, %s23
      %p25 = scmp.eq.s32.totalorder %s24, 0
      %s27 = sadd.s32 %s26, 1
      %s28 = scalar_select %p25, %s26, %s27
      %p31 = pneg %p25
      %p32 = scmp.eq.s32.totalorder %s16, 1
      %p33 = por %p31, %p32
      %p34 = scmp.ne.s32.totalorder %s26, %s29
      %p35 = scmp.eq.s32.totalorder %s16, 0
      %p36 = por %p34, %p35
      %p37 = scmp.ne.s32.totalorder %s26, %s29
      %p38 = scmp.eq.s32.totalorder %s21, 1
      %p39 = por %p37, %p38
      %p40 = scmp.ne.s32.totalorder %s29, %s30
      %p41 = scmp.eq.s32.totalorder %s21, 0
      %p42 = por %p40, %p41
      %p43 = scmp.ne.s32.totalorder %s29, %s30
      %p44 = scmp.eq.s32.totalorder %s22, 1
      %p45 = por %p43, %p44
      %p47 = scmp.ne.s32.totalorder %s30, %s46
      %p48 = scmp.eq.s32.totalorder %s22, 0
      %p49 = por %p47, %p48
      %s51 = sadd.s32 %s50, 1
      %p54 = scmp.eq.s32.totalorder %s16, 1
      %p55 = scmp.ne.s32.totalorder %s50, %s52
      %p56 = scmp.eq.s32.totalorder %s16, 0
      %p57 = por %p55, %p56
      %p58 = scmp.ne.s32.totalorder %s50, %s52
      %p59 = scmp.eq.s32.totalorder %s21, 1
      %p60 = por %p58, %p59
      %p61 = scmp.ne.s32.totalorder %s52, %s53
      %p62 = scmp.eq.s32.totalorder %s21, 0
      %p63 = por %p61, %p62
      %p64 = scmp.ne.s32.totalorder %s52, %s53
      %p65 = scmp.eq.s32.totalorder %s22, 1
      %p66 = por %p64, %p65
      %p68 = scmp.ne.s32.totalorder %s53, %s67
      %p69 = scmp.eq.s32.totalorder %s22, 0
      %p70 = por %p68, %p69
      %s71 = ssub.s32 %s16, %s23
      %p72 = scmp.eq.s32.totalorder %s71, 0
      %s74 = sadd.s32 %s73, 1
      %s75 = scalar_select %p72, %s73, %s74
      %p78 = pneg %p72
      %p79 = scmp.eq.s32.totalorder %s16, 1
      %p80 = por %p78, %p79
      %p81 = scmp.ne.s32.totalorder %s73, %s76
      %p82 = scmp.eq.s32.totalorder %s16, 0
      %p83 = por %p81, %p82
      %p84 = scmp.ne.s32.totalorder %s73, %s76
      %p85 = scmp.eq.s32.totalorder %s21, 1
      %p86 = por %p84, %p85
      %p87 = scmp.ne.s32.totalorder %s76, %s77
      %p88 = scmp.eq.s32.totalorder %s21, 0
      %p89 = por %p87, %p88
      %p90 = scmp.ne.s32.totalorder %s76, %s77
      %p91 = scmp.eq.s32.totalorder %s22, 1
      %p92 = por %p90, %p91
      %p94 = scmp.ne.s32.totalorder %s77, %s93
      %p95 = scmp.eq.s32.totalorder %s22, 0
      %p96 = por %p94, %p95
      %s97 = ssub.s32 %s16, %s23
      %p98 = scmp.eq.s32.totalorder %s97, 0
      %s100 = sadd.s32 %s99, 1
      %s101 = scalar_select %p98, %s99, %s100
      %p104 = pneg %p98
      %p105 = scmp.eq.s32.totalorder %s16, 1
      %p106 = por %p104, %p105
      %p107 = scmp.ne.s32.totalorder %s99, %s102
      %p108 = scmp.eq.s32.totalorder %s16, 0
      %p109 = por %p107, %p108
      %p110 = scmp.ne.s32.totalorder %s99, %s102
      %p111 = scmp.eq.s32.totalorder %s21, 1
      %p112 = por %p110, %p111
      %p113 = scmp.ne.s32.totalorder %s102, %s103
      %p114 = scmp.eq.s32.totalorder %s21, 0
      %p115 = por %p113, %p114
      %p116 = scmp.ne.s32.totalorder %s102, %s103
      %p117 = scmp.eq.s32.totalorder %s22, 1
      %p118 = por %p116, %p117
      %p120 = scmp.ne.s32.totalorder %s103, %s119
      %p121 = scmp.eq.s32.totalorder %s22, 0
      %p122 = por %p120, %p121
      %p123 = scmp.le.s32.totalorder 1, %s16
      %p124 = scmp.lt.s32.totalorder %s16, 3
      %p125 = pnand %p123, %p124
      %p126 = pneg %p125
      // Predicated region
      $region9: #{tpu_custom_call.1} parent=5 // pred_check
        _
      $region10: #{tpu_custom_call.1} parent=5 // pred_check_branch
        %128 = sbr.rel (%p125) target = $region12
      $region11: #{tpu_custom_call.1} parent=5 // pred_region
        %s129 = ssub.s32 %s16, 1
        // Predicated region
        $region13: #{tpu_custom_call.1} parent=11 // pred_check
          %p130 = pneg %p63
        $region14: #{tpu_custom_call.1} parent=11 // pred_check_branch
          %132 = sbr.rel (%p130) target = $region16
        $region15: #{tpu_custom_call.1} parent=11 // pred_region
          _
        $region16: #{tpu_custom_call.1} parent=11 // pred_fallthru
          _
      $region12: #{tpu_custom_call.1} parent=5 // pred_fallthru
        _
      %p133 = scmp.lt.s32.totalorder %s16, 2
      // Predicated region
      $region17: #{tpu_custom_call.1} parent=5 // pred_check
        %p134 = pneg %p133
      $region18: #{tpu_custom_call.1} parent=5 // pred_check_branch
        %136 = sbr.rel (%p134) target = $region20
      $region19: #{tpu_custom_call.1} parent=5 // pred_region
        // Predicated region
        $region21: #{tpu_custom_call.1} parent=19 // pred_check
          %p137 = pneg %p36
        $region22: #{tpu_custom_call.1} parent=19 // pred_check_branch
          %139 = sbr.rel (%p137) target = $region24
        $region23: #{tpu_custom_call.1} parent=19 // pred_region
          %s140 = sand.u32 %s26, 1
          %s141 = sand.u32 %s26, 1
          %s142 = smul.addr %s141, 64
          %s143 = scalar_lea.vmem [#allocation3], %s142
          %s144 = smul.addr %s16, 8
          %s145 = scalar_lea.vmem %s0, %s144
          // Predicated region
          $region25: #{tpu_custom_call.1} parent=23 // pred_check
            _
          $region26: #{tpu_custom_call.1} parent=23 // pred_check_branch
            %147 = sbr.rel (0) target = $region28
          $region27: #{tpu_custom_call.1} parent=23 // pred_region
            // Predicated region
            $region29: #{tpu_custom_call.1} parent=27 // pred_check
              _
            $region30: #{tpu_custom_call.1} parent=27 // pred_check_branch
              %149 = sbr.rel (0) target = $region32
            $region31: #{tpu_custom_call.1} parent=27 // pred_region
              // Predicated region
              $region44: #{tpu_custom_call.1} parent=31 // pred_check
                _
              $region45: #{tpu_custom_call.1} parent=31 // pred_check_branch
                %179 = sbr.rel (0) target = $region47
              $region46: #{tpu_custom_call.1} parent=31 // pred_region
                loop: start=0, step=1, limit=1
                $region48: #{tpu_custom_call.1} parent=46 // loop_pre_header
                  _
                $region49: #{tpu_custom_call.1} parent=46 // loop_header
                  %s181 = sphi 0, %s185
                  %p182 = scmp.ge.s32.totalorder %s181, 1
                  %s186 = sphi %s145, %s145
                  %s187 = sphi %s143, %s143
                $region50: #{tpu_custom_call.1} parent=46 // loop_header_branch
                  %184 = sbr.rel (%p182) target = $region54
                $region51: #{tpu_custom_call.1} parent=46 // loop_body
                  %v188 = vld [vmem:[%s186] sm:$0xff]
                  %189 = vst [vmem:[%s187] sm:$0xff] %v188
                  %v190 = vld [vmem:[%s186 + $0x10] sm:$0xff]
                  %191 = vst [vmem:[%s187 + $0x8] sm:$0xff] %v190
                  %v192 = vld [vmem:[%s186 + $0x20] sm:$0xff]
                  %193 = vst [vmem:[%s187 + $0x10] sm:$0xff] %v192
                  %v194 = vld [vmem:[%s186 + $0x30] sm:$0xff]
                  %195 = vst [vmem:[%s187 + $0x18] sm:$0xff] %v194
                  %v196 = vld [vmem:[%s186 + $0x40] sm:$0xff]
                  %197 = vst [vmem:[%s187 + $0x20] sm:$0xff] %v196
                  %v198 = vld [vmem:[%s186 + $0x50] sm:$0xff]
                  %199 = vst [vmem:[%s187 + $0x28] sm:$0xff] %v198
                  %v200 = vld [vmem:[%s186 + $0x60] sm:$0xff]
                  %201 = vst [vmem:[%s187 + $0x30] sm:$0xff] %v200
                  %v202 = vld [vmem:[%s186 + $0x70] sm:$0xff]
                  %203 = vst [vmem:[%s187 + $0x38] sm:$0xff] %v202
                $region52: #{tpu_custom_call.1} parent=46 // loop_footer
                  %s185 = sadd.s32 1, %s181
                $region53: #{tpu_custom_call.1} parent=46 // loop_footer_branch
                  %180 = sbr.rel target = $region49
                $region54: #{tpu_custom_call.1} parent=46 // loop_exit
                  _
              $region47: #{tpu_custom_call.1} parent=31 // pred_fallthru
                _
              // Predicated region
              $region55: #{tpu_custom_call.1} parent=31 // pred_check
                _
              $region56: #{tpu_custom_call.1} parent=31 // pred_check_branch
                %205 = sbr.rel target = $region58
              $region57: #{tpu_custom_call.1} parent=31 // pred_region
                _
              $region58: #{tpu_custom_call.1} parent=31 // pred_fallthru
                _
            $region32: #{tpu_custom_call.1} parent=27 // pred_fallthru
              _
            // Predicated region
            $region33: #{tpu_custom_call.1} parent=27 // pred_check
              _
            $region34: #{tpu_custom_call.1} parent=27 // pred_check_branch
              %151 = sbr.rel target = $region36
            $region35: #{tpu_custom_call.1} parent=27 // pred_region
              %s153 = ssub.s32 256, 1
              loop: start=0, step=1, limit=1
              $region37: #{tpu_custom_call.1} parent=35 // loop_pre_header
                _
              $region38: #{tpu_custom_call.1} parent=35 // loop_header
                %s155 = sphi 0, %s159
                %p156 = scmp.ge.s32.totalorder %s155, 1
                %s160 = sphi %s145, %s145
                %s161 = sphi %s143, %s143
              $region39: #{tpu_custom_call.1} parent=35 // loop_header_branch
                %158 = sbr.rel (%p156) target = $region43
              $region40: #{tpu_custom_call.1} parent=35 // loop_body
                %v162 = vld [vmem:[%s160] sm:%s153]
                %163 = vst [vmem:[%s161] sm:%s153] %v162
                %v164 = vld [vmem:[%s160 + $0x10] sm:%s153]
                %165 = vst [vmem:[%s161 + $0x8] sm:%s153] %v164
                %v166 = vld [vmem:[%s160 + $0x20] sm:%s153]
                %167 = vst [vmem:[%s161 + $0x10] sm:%s153] %v166
                %v168 = vld [vmem:[%s160 + $0x30] sm:%s153]
                %169 = vst [vmem:[%s161 + $0x18] sm:%s153] %v168
                %v170 = vld [vmem:[%s160 + $0x40] sm:%s153]
                %171 = vst [vmem:[%s161 + $0x20] sm:%s153] %v170
                %v172 = vld [vmem:[%s160 + $0x50] sm:%s153]
                %173 = vst [vmem:[%s161 + $0x28] sm:%s153] %v172
                %v174 = vld [vmem:[%s160 + $0x60] sm:%s153]
                %175 = vst [vmem:[%s161 + $0x30] sm:%s153] %v174
                %v176 = vld [vmem:[%s160 + $0x70] sm:%s153]
                %177 = vst [vmem:[%s161 + $0x38] sm:%s153] %v176
              $region41: #{tpu_custom_call.1} parent=35 // loop_footer
                %s159 = sadd.s32 1, %s155
              $region42: #{tpu_custom_call.1} parent=35 // loop_footer_branch
                %154 = sbr.rel target = $region38
              $region43: #{tpu_custom_call.1} parent=35 // loop_exit
                _
            $region36: #{tpu_custom_call.1} parent=27 // pred_fallthru
              _
          $region28: #{tpu_custom_call.1} parent=23 // pred_fallthru
            _
          %206 = vnop
        $region24: #{tpu_custom_call.1} parent=19 // pred_fallthru
          _
      $region20: #{tpu_custom_call.1} parent=5 // pred_fallthru
        _
      %p207 = scmp.le.s32.totalorder 1, %s16
      %p208 = scmp.lt.s32.totalorder %s16, 3
      %p209 = pnand %p207, %p208
      %p210 = pneg %p209
      // Predicated region
      $region59: #{tpu_custom_call.1} parent=5 // pred_check
        _
      $region60: #{tpu_custom_call.1} parent=5 // pred_check_branch
        %212 = sbr.rel (%p209) target = $region62
      $region61: #{tpu_custom_call.1} parent=5 // pred_region
        %s213 = ssub.s32 %s16, 1
        %s214 = sand.u32 %s29, 1
        %s215 = sand.u32 %s29, 1
        %s216 = smul.addr %s215, 64
        %s217 = scalar_lea.vmem [#allocation3], %s216
        // Predicated region
        $region63: #{tpu_custom_call.1} parent=61 // pred_check
          %p218 = pneg %p42
        $region64: #{tpu_custom_call.1} parent=61 // pred_check_branch
          %220 = sbr.rel (%p218) target = $region66
        $region65: #{tpu_custom_call.1} parent=61 // pred_region
          _
        $region66: #{tpu_custom_call.1} parent=61 // pred_fallthru
          _
        %s221 = sand.u32 %s29, 1
        %s222 = sand.u32 %s29, 1
        %s223 = smul.addr %s222, 64
        %s224 = scalar_lea.vmem [#allocation3], %s223
        %p225 = pneg %p42
        %p226 = pneg %p39
        %p227 = pneg %p63
        %p228 = pneg %p60
        %p229 = pneg %p89
        %p230 = pneg %p86
        %s231 = sand.u32 %s76, 1
        %s232 = scalar_lea.sflag [#allocation5], %s231
        %s233 = sand.u32 %s76, 1
        %s234 = smul.addr %s233, 64
        %s235 = scalar_lea.vmem [#allocation4], %s234
        %p236 = pneg %p115
        %p237 = pneg %p112
        %s238 = sand.u32 %s102, 1
        %s239 = scalar_lea.sflag [#allocation7], %s238
        %s240 = sand.u32 %s102, 1
        %s241 = smul.addr %s240, 64
        %s242 = scalar_lea.vmem [#allocation6], %s241
        %v243 = vld [vmem:[%s1] sm:$0xff]
        %v244 = vld [vmem:[%s1 + $0x8] sm:$0xff]
        %v245 = vld [vmem:[%s1 + $0x10] sm:$0xff]
        %v246 = vld [vmem:[%s1 + $0x18] sm:$0xff]
        %v247 = vld [vmem:[%s1 + $0xa8] sm:$0x1]
        %v248 = vld [vmem:[%s1 + $0x20] sm:$0xff]
        %v249 = vld [vmem:[%s1 + $0x28] sm:$0xff]
        %v250 = vld [vmem:[%s1 + $0x30] sm:$0xff]
        %v251 = vld [vmem:[%s1 + $0xb0] sm:$0x1]
        %v252 = vld [vmem:[%s1 + $0x38] sm:$0xff]
        %v253 = vld [vmem:[%s1 + $0x40] sm:$0xff]
        %v254 = vld [vmem:[%s1 + $0x48] sm:$0xff]
        %v255 = vld [vmem:[%s1 + $0x50] sm:$0xff]
        %v256 = vld [vmem:[%s1 + $0xb8] sm:$0x1]
        %v257 = vld [vmem:[%s1 + $0x58] sm:$0xff]
        %v258 = vld [vmem:[%s1 + $0x60] sm:$0xff]
        %v259 = vld [vmem:[%s1 + $0x68] sm:$0xff]
        %v260 = vld [vmem:[%s1 + $0xc0] sm:$0x1]
        %v261 = vld [vmem:[%s1 + $0x70] sm:$0xff]
        %v262 = vld [vmem:[%s1 + $0x78] sm:$0xff]
        %v263 = vld [vmem:[%s1 + $0xc8] sm:$0x1]
        %v264 = vld [vmem:[%s1 + $0x80] sm:$0xff]
        %v265 = vld [vmem:[%s1 + $0x88] sm:$0xff]
        %v266 = vld [vmem:[%s1 + $0x90] sm:$0xff]
        %v267 = vld [vmem:[%s1 + $0xd0] sm:$0x1]
        %v268 = vld [vmem:[%s1 + $0x98] sm:$0x3]
        %v269 = vld [vmem:[%s1 + $0xa0] sm:$0x3]
        %v270 = vld [vmem:[%s217] sm:$0xff]
        %v271 = vld [vmem:[%s217 + $0x8] sm:$0xff]
        %v272 = vld [vmem:[%s217 + $0x10] sm:$0xff]
        %v273 = vld [vmem:[%s217 + $0x18] sm:$0xff]
        %v274 = vld [vmem:[%s217 + $0x20] sm:$0xff]
        %v275 = vld [vmem:[%s217 + $0x28] sm:$0xff]
        %v276 = vld [vmem:[%s217 + $0x30] sm:$0xff]
        %v277 = vld [vmem:[%s217 + $0x38] sm:$0xff]
        %v278 = vmul.f32 %v270, %v270
        %v279 = vmul.f32 %v271, %v271
        %v280 = vmul.f32 %v272, %v272
        %v281 = vmul.f32 %v273, %v273
        %v282 = vmul.f32 %v274, %v274
        %v283 = vmul.f32 %v275, %v275
        %v284 = vmul.f32 %v276, %v276
        %v285 = vmul.f32 %v277, %v277
        %vm286 = vcmask 261120
        %v287 = vsel %vm286, %v278, 0.0
        %288 = vadd.xlane.f32.xlu0 %v287
        %v289 = vpop.xlane.xlu0 %288
        %v290 = vsel %vm286, %v279, 0.0
        %291 = vadd.xlane.f32.xlu0 %v290
        %v292 = vpop.xlane.xlu0 %291
        %v293 = vsel %vm286, %v280, 0.0
        %294 = vadd.xlane.f32.xlu0 %v293
        %v295 = vpop.xlane.xlu0 %294
        %v296 = vsel %vm286, %v281, 0.0
        %297 = vadd.xlane.f32.xlu0 %v296
        %v298 = vpop.xlane.xlu0 %297
        %v299 = vsel %vm286, %v282, 0.0
        %300 = vadd.xlane.f32.xlu0 %v299
        %v301 = vpop.xlane.xlu0 %300
        %v302 = vsel %vm286, %v283, 0.0
        %303 = vadd.xlane.f32.xlu0 %v302
        %v304 = vpop.xlane.xlu0 %303
        %v305 = vsel %vm286, %v284, 0.0
        %306 = vadd.xlane.f32.xlu0 %v305
        %v307 = vpop.xlane.xlu0 %306
        %v308 = vsel %vm286, %v285, 0.0
        %309 = vadd.xlane.f32.xlu0 %v308
        %v310 = vpop.xlane.xlu0 %309
        %v311 = vmax.f32 %v289, 1e-24
        %v312 = vmax.f32 %v292, 1e-24
        %v313 = vmax.f32 %v295, 1e-24
        %v314 = vmax.f32 %v298, 1e-24
        %v315 = vmax.f32 %v301, 1e-24
        %v316 = vmax.f32 %v304, 1e-24
        %v317 = vmax.f32 %v307, 1e-24
        %v318 = vmax.f32 %v310, 1e-24
        %v319 = vrsqrt.pop %v311
        %v320 = vrsqrt.pop %v312
        %v321 = vrsqrt.pop %v313
        %v322 = vrsqrt.pop %v314
        %v323 = vrsqrt.pop %v315
        %v324 = vrsqrt.pop %v316
        %v325 = vrsqrt.pop %v317
        %v326 = vrsqrt.pop %v318
        %v327 = vmul.f32 %v270, %v319
        %v328 = vmul.f32 %v271, %v320
        %v329 = vmul.f32 %v272, %v321
        %v330 = vmul.f32 %v273, %v322
        %v331 = vmul.f32 %v274, %v323
        %v332 = vmul.f32 %v275, %v324
        %v333 = vmul.f32 %v276, %v325
        %v334 = vmul.f32 %v277, %v326
        %v335 = vlaneseq
        %v336 = vshrl.u32 %v335, 7
        %v337 = vsub.s32 0, %v336
        %v338 = vrot.slane %v247, %v337
        %v340 = vsel %vm286, %v327, 0
        %v343 = vsel %vm286, %v328, 0
        %v346 = vsel %vm286, %v329, 0
        %v349 = vsel %vm286, %v330, 0
        %v352 = vsel %vm286, %v331, 0
        %v355 = vsel %vm286, %v332, 0
        %v358 = vsel %vm286, %v333, 0
        %v361 = vsel %vm286, %v334, 0
        %363 = vmatprep.subr.mxu0 0.0
        %364 = vmatpush1.msra.mxu0 0.0
        %365 = vmatprep.subr.mxu0 0.0
        %366 = vmatpush1.msra.mxu0 0.0
        %367 = vmatprep.subr.mxu0 0.0
        %368 = vmatpush1.msra.mxu0 0.0
        %369 = vmatprep.subr.mxu0 0.0
        %370 = vmatpush1.msra.mxu0 0.0
        %371 = vmatprep.subr.mxu0 0.0
        %372 = vmatpush1.msra.mxu0 0.0
        %373 = vmatprep.subr.mxu0 0.0
        %374 = vmatpush1.msra.mxu0 0.0
        %375 = vmatprep.subr.mxu0 0.0
        %376 = vmatpush1.msra.mxu0 0.0
        %377 = vmatprep.subr.mxu0 0.0
        %378 = vmatpush1.msra.mxu0 0.0
        %379 = vmatprep.subr.mxu0 0.0
        %380 = vmatpush1.msra.mxu0 0.0
        %381 = vmatprep.subr.mxu0 0.0
        %382 = vmatpush1.msra.mxu0 0.0
        %383 = vmatprep.subr.mxu0 0.0
        %384 = vmatpush1.msra.mxu0 0.0
        %385 = vmatprep.subr.mxu0 0.0
        %386 = vmatpush1.msra.mxu0 0.0
        %387 = vmatprep.subr.mxu0 0.0
        %388 = vmatpush1.msra.mxu0 %v246
        %389 = vmatprep.subr.mxu0 0.0
        %390 = vmatpush1.msra.mxu0 %v245
        %391 = vmatprep.subr.mxu0 0.0
        %392 = vmatpush1.msra.mxu0 %v244
        %393 = vmatprep.subr.mxu0 0.0
        %394 = vmatpush1.msra.mxu0 %v243
        %395 = vmatprep.subr.mxu0 0.0
        %396 = vmatpush2.msra.mxu0 0.0
        %397 = vmatprep.subr.mxu0 0.0
        %398 = vmatpush2.msra.mxu0 0.0
        %399 = vmatprep.subr.mxu0 0.0
        %400 = vmatpush2.msra.mxu0 0.0
        %401 = vmatprep.subr.mxu0 0.0
        %402 = vmatpush2.msra.mxu0 0.0
        %403 = vmatprep.subr.mxu0 0.0
        %404 = vmatpush2.msra.mxu0 0.0
        %405 = vmatprep.subr.mxu0 0.0
        %406 = vmatpush2.msra.mxu0 0.0
        %407 = vmatprep.subr.mxu0 0.0
        %408 = vmatpush2.msra.mxu0 0.0
        %409 = vmatprep.subr.mxu0 0.0
        %410 = vmatpush2.msra.mxu0 0.0
        %411 = vmatprep.subr.mxu0 0.0
        %412 = vmatpush2.msra.mxu0 0.0
        %413 = vmatprep.subr.mxu0 0.0
        %414 = vmatpush2.msra.mxu0 0.0
        %415 = vmatprep.subr.mxu0 0.0
        %416 = vmatpush2.msra.mxu0 0.0
        %417 = vmatprep.subr.mxu0 0.0
        %418 = vmatpush2.msra.mxu0 0.0
        %419 = vmatprep.subr.mxu0 0.0
        %420 = vmatpush2.msra.mxu0 0.0
        %421 = vmatprep.subr.mxu0 0.0
        %422 = vmatpush2.msra.mxu0 0.0
        %423 = vmatprep.subr.mxu0 0.0
        %424 = vmatpush2.msra.mxu0 0.0
        %425 = vmatprep.subr.mxu0 0.0
        %426 = vmatpush2.msra.mxu0 0.0
        %427 = vmatprep.mubr.f32.mxu0 0.0
        %428 = vmatmul.mubr.f32.gmra.mxu0 %v340
        %v429 = vpop.f32.mrf.mxu0
        %v430 = vadd.f32 %v338, %v429
        %v431 = vpop.f32.mrf.mxu0
        %432 = vmatprep.mubr.f32.mxu0 0.0
        %433 = vmatmul.mubr.f32.gmra.mxu0 %v343
        %v434 = vpop.f32.mrf.mxu0
        %v435 = vadd.f32 %v338, %v434
        %v436 = vpop.f32.mrf.mxu0
        %437 = vmatprep.mubr.f32.mxu0 0.0
        %438 = vmatmul.mubr.f32.gmra.mxu0 %v346
        %v439 = vpop.f32.mrf.mxu0
        %v440 = vadd.f32 %v338, %v439
        %v441 = vpop.f32.mrf.mxu0
        %442 = vmatprep.mubr.f32.mxu0 0.0
        %443 = vmatmul.mubr.f32.gmra.mxu0 %v349
        %v444 = vpop.f32.mrf.mxu0
        %v445 = vadd.f32 %v338, %v444
        %v446 = vpop.f32.mrf.mxu0
        %447 = vmatprep.mubr.f32.mxu0 0.0
        %448 = vmatmul.mubr.f32.gmra.mxu0 %v352
        %v449 = vpop.f32.mrf.mxu0
        %v450 = vadd.f32 %v338, %v449
        %v451 = vpop.f32.mrf.mxu0
        %452 = vmatprep.mubr.f32.mxu0 0.0
        %453 = vmatmul.mubr.f32.gmra.mxu0 %v355
        %v454 = vpop.f32.mrf.mxu0
        %v455 = vadd.f32 %v338, %v454
        %v456 = vpop.f32.mrf.mxu0
        %457 = vmatprep.mubr.f32.mxu0 0.0
        %458 = vmatmul.mubr.f32.gmra.mxu0 %v358
        %v459 = vpop.f32.mrf.mxu0
        %v460 = vadd.f32 %v338, %v459
        %v461 = vpop.f32.mrf.mxu0
        %462 = vmatprep.mubr.f32.mxu0 0.0
        %463 = vmatmul.mubr.f32.gmra.mxu0 %v361
        %v464 = vpop.f32.mrf.mxu0
        %v465 = vadd.f32 %v338, %v464
        %v466 = vpop.f32.mrf.mxu0
        %467 = vdwg.mxu0
        %v468 = vtanh.pop %v430
        %v469 = vtanh.pop %v435
        %v470 = vtanh.pop %v440
        %v471 = vtanh.pop %v445
        %v472 = vtanh.pop %v450
        %v473 = vtanh.pop %v455
        %v474 = vtanh.pop %v460
        %v475 = vtanh.pop %v465
        %v476 = vlaneseq
        %v477 = vshrl.u32 %v476, 7
        %v478 = vsub.s32 0, %v477
        %v479 = vrot.slane %v251, %v478
        %vm480 = vcmask 195584
        %v482 = vsel %vm480, %v468, 0
        %v485 = vsel %vm480, %v469, 0
        %v488 = vsel %vm480, %v470, 0
        %v491 = vsel %vm480, %v471, 0
        %v494 = vsel %vm480, %v472, 0
        %v497 = vsel %vm480, %v473, 0
        %v500 = vsel %vm480, %v474, 0
        %v503 = vsel %vm480, %v475, 0
        %505 = vmatprep.subr.mxu0 0.0
        %506 = vmatpush1.msra.mxu0 0.0
        %507 = vmatprep.subr.mxu0 0.0
        %508 = vmatpush1.msra.mxu0 0.0
        %509 = vmatprep.subr.mxu0 0.0
        %510 = vmatpush1.msra.mxu0 0.0
        %511 = vmatprep.subr.mxu0 0.0
        %512 = vmatpush1.msra.mxu0 0.0
        %513 = vmatprep.subr.mxu0 0.0
        %514 = vmatpush1.msra.mxu0 0.0
        %515 = vmatprep.subr.mxu0 0.0
        %516 = vmatpush1.msra.mxu0 0.0
        %517 = vmatprep.subr.mxu0 0.0
        %518 = vmatpush1.msra.mxu0 0.0
        %519 = vmatprep.subr.mxu0 0.0
        %520 = vmatpush1.msra.mxu0 0.0
        %521 = vmatprep.subr.mxu0 0.0
        %522 = vmatpush1.msra.mxu0 0.0
        %523 = vmatprep.subr.mxu0 0.0
        %524 = vmatpush1.msra.mxu0 0.0
        %525 = vmatprep.subr.mxu0 0.0
        %526 = vmatpush1.msra.mxu0 0.0
        %527 = vmatprep.subr.mxu0 0.0
        %528 = vmatpush1.msra.mxu0 0.0
        %529 = vmatprep.subr.mxu0 0.0
        %530 = vmatpush1.msra.mxu0 0.0
        %531 = vmatprep.subr.mxu0 0.0
        %532 = vmatpush1.msra.mxu0 %v250
        %533 = vmatprep.subr.mxu0 0.0
        %534 = vmatpush1.msra.mxu0 %v249
        %535 = vmatprep.subr.mxu0 0.0
        %536 = vmatpush1.msra.mxu0 %v248
        %537 = vmatprep.subr.mxu0 0.0
        %538 = vmatpush2.msra.mxu0 0.0
        %539 = vmatprep.subr.mxu0 0.0
        %540 = vmatpush2.msra.mxu0 0.0
        %541 = vmatprep.subr.mxu0 0.0
        %542 = vmatpush2.msra.mxu0 0.0
        %543 = vmatprep.subr.mxu0 0.0
        %544 = vmatpush2.msra.mxu0 0.0
        %545 = vmatprep.subr.mxu0 0.0
        %546 = vmatpush2.msra.mxu0 0.0
        %547 = vmatprep.subr.mxu0 0.0
        %548 = vmatpush2.msra.mxu0 0.0
        %549 = vmatprep.subr.mxu0 0.0
        %550 = vmatpush2.msra.mxu0 0.0
        %551 = vmatprep.subr.mxu0 0.0
        %552 = vmatpush2.msra.mxu0 0.0
        %553 = vmatprep.subr.mxu0 0.0
        %554 = vmatpush2.msra.mxu0 0.0
        %555 = vmatprep.subr.mxu0 0.0
        %556 = vmatpush2.msra.mxu0 0.0
        %557 = vmatprep.subr.mxu0 0.0
        %558 = vmatpush2.msra.mxu0 0.0
        %559 = vmatprep.subr.mxu0 0.0
        %560 = vmatpush2.msra.mxu0 0.0
        %561 = vmatprep.subr.mxu0 0.0
        %562 = vmatpush2.msra.mxu0 0.0
        %563 = vmatprep.subr.mxu0 0.0
        %564 = vmatpush2.msra.mxu0 0.0
        %565 = vmatprep.subr.mxu0 0.0
        %566 = vmatpush2.msra.mxu0 0.0
        %567 = vmatprep.subr.mxu0 0.0
        %568 = vmatpush2.msra.mxu0 0.0
        %569 = vmatprep.mubr.f32.mxu0 0.0
        %570 = vmatmul.mubr.f32.gmra.mxu0 %v482
        %v571 = vpop.f32.mrf.mxu0
        %v572 = vadd.f32 %v479, %v571
        %v573 = vpop.f32.mrf.mxu0
        %574 = vmatprep.mubr.f32.mxu0 0.0
        %575 = vmatmul.mubr.f32.gmra.mxu0 %v485
        %v576 = vpop.f32.mrf.mxu0
        %v577 = vadd.f32 %v479, %v576
        %v578 = vpop.f32.mrf.mxu0
        %579 = vmatprep.mubr.f32.mxu0 0.0
        %580 = vmatmul.mubr.f32.gmra.mxu0 %v488
        %v581 = vpop.f32.mrf.mxu0
        %v582 = vadd.f32 %v479, %v581
        %v583 = vpop.f32.mrf.mxu0
        %584 = vmatprep.mubr.f32.mxu0 0.0
        %585 = vmatmul.mubr.f32.gmra.mxu0 %v491
        %v586 = vpop.f32.mrf.mxu0
        %v587 = vadd.f32 %v479, %v586
        %v588 = vpop.f32.mrf.mxu0
        %589 = vmatprep.mubr.f32.mxu0 0.0
        %590 = vmatmul.mubr.f32.gmra.mxu0 %v494
        %v591 = vpop.f32.mrf.mxu0
        %v592 = vadd.f32 %v479, %v591
        %v593 = vpop.f32.mrf.mxu0
        %594 = vmatprep.mubr.f32.mxu0 0.0
        %595 = vmatmul.mubr.f32.gmra.mxu0 %v497
        %v596 = vpop.f32.mrf.mxu0
        %v597 = vadd.f32 %v479, %v596
        %v598 = vpop.f32.mrf.mxu0
        %599 = vmatprep.mubr.f32.mxu0 0.0
        %600 = vmatmul.mubr.f32.gmra.mxu0 %v500
        %v601 = vpop.f32.mrf.mxu0
        %v602 = vadd.f32 %v479, %v601
        %v603 = vpop.f32.mrf.mxu0
        %604 = vmatprep.mubr.f32.mxu0 0.0
        %605 = vmatmul.mubr.f32.gmra.mxu0 %v503
        %v606 = vpop.f32.mrf.mxu0
        %v607 = vadd.f32 %v479, %v606
        %v608 = vpop.f32.mrf.mxu0
        %609 = vdwg.mxu0
        %610 = vst.msk [vmem:[%s235] sm:$0xff] %vm286, %v572
        %611 = vst.msk [vmem:[%s235 + $0x8] sm:$0xff] %vm286, %v577
        %612 = vst.msk [vmem:[%s235 + $0x10] sm:$0xff] %vm286, %v582
        %613 = vst.msk [vmem:[%s235 + $0x18] sm:$0xff] %vm286, %v587
        %614 = vst.msk [vmem:[%s235 + $0x20] sm:$0xff] %vm286, %v592
        %615 = vst.msk [vmem:[%s235 + $0x28] sm:$0xff] %vm286, %v597
        %616 = vst.msk [vmem:[%s235 + $0x30] sm:$0xff] %vm286, %v602
        %617 = vst.msk [vmem:[%s235 + $0x38] sm:$0xff] %vm286, %v607
        %v618 = vld [vmem:[%s235] sm:$0xff]
        %vm619 = vcmask 130048
        %v621 = vsel %vm619, 0.0, 0
        %623 = vmatprep.subr.mxu0 0.0
        %624 = vmatpush1.msra.mxu0 0.0
        %625 = vmatprep.subr.mxu0 0.0
        %626 = vmatpush1.msra.mxu0 0.0
        %627 = vmatprep.subr.mxu0 0.0
        %628 = vmatpush1.msra.mxu0 0.0
        %629 = vmatprep.subr.mxu0 0.0
        %630 = vmatpush1.msra.mxu0 0.0
        %631 = vmatprep.subr.mxu0 0.0
        %632 = vmatpush1.msra.mxu0 0.0
        %633 = vmatprep.subr.mxu0 0.0
        %634 = vmatpush1.msra.mxu0 0.0
        %635 = vmatprep.subr.mxu0 0.0
        %636 = vmatpush1.msra.mxu0 0.0
        %637 = vmatprep.subr.mxu0 0.0
        %638 = vmatpush1.msra.mxu0 0.0
        %639 = vmatprep.subr.mxu0 0.0
        %640 = vmatpush1.msra.mxu0 0.0
        %641 = vmatprep.subr.mxu0 0.0
        %642 = vmatpush1.msra.mxu0 0.0
        %643 = vmatprep.subr.mxu0 0.0
        %644 = vmatpush1.msra.mxu0 0.0
        %645 = vmatprep.subr.mxu0 0.0
        %646 = vmatpush1.msra.mxu0 0.0
        %647 = vmatprep.subr.mxu0 0.0
        %648 = vmatpush1.msra.mxu0 0.0
        %649 = vmatprep.subr.mxu0 0.0
        %650 = vmatpush1.msra.mxu0 0.0
        %651 = vmatprep.subr.mxu0 0.0
        %652 = vmatpush1.msra.mxu0 %v255
        %653 = vmatprep.subr.mxu0 0.0
        %654 = vmatpush1.msra.mxu0 %v254
        %655 = vmatprep.subr.mxu0 0.0
        %656 = vmatpush2.msra.mxu0 0.0
        %657 = vmatprep.subr.mxu0 0.0
        %658 = vmatpush2.msra.mxu0 0.0
        %659 = vmatprep.subr.mxu0 0.0
        %660 = vmatpush2.msra.mxu0 0.0
        %661 = vmatprep.subr.mxu0 0.0
        %662 = vmatpush2.msra.mxu0 0.0
        %663 = vmatprep.subr.mxu0 0.0
        %664 = vmatpush2.msra.mxu0 0.0
        %665 = vmatprep.subr.mxu0 0.0
        %666 = vmatpush2.msra.mxu0 0.0
        %667 = vmatprep.subr.mxu0 0.0
        %668 = vmatpush2.msra.mxu0 0.0
        %669 = vmatprep.subr.mxu0 0.0
        %670 = vmatpush2.msra.mxu0 0.0
        %671 = vmatprep.subr.mxu0 0.0
        %672 = vmatpush2.msra.mxu0 0.0
        %673 = vmatprep.subr.mxu0 0.0
        %674 = vmatpush2.msra.mxu0 0.0
        %675 = vmatprep.subr.mxu0 0.0
        %676 = vmatpush2.msra.mxu0 0.0
        %677 = vmatprep.subr.mxu0 0.0
        %678 = vmatpush2.msra.mxu0 0.0
        %679 = vmatprep.subr.mxu0 0.0
        %680 = vmatpush2.msra.mxu0 0.0
        %681 = vmatprep.subr.mxu0 0.0
        %682 = vmatpush2.msra.mxu0 0.0
        %683 = vmatprep.subr.mxu0 0.0
        %684 = vmatpush2.msra.mxu0 0.0
        %685 = vmatprep.subr.mxu0 0.0
        %686 = vmatpush2.msra.mxu0 0.0
        %687 = vmatprep.mubr.f32.mxu0 0.0
        %688 = vmatmul.mubr.f32.gmra.mxu0 %v621
        %v689 = vpop.f32.mrf.mxu0
        %v690 = vadd.f32 0.0, %v689
        %v691 = vpop.f32.mrf.mxu0
        %692 = vdwg.mxu0
        %v694 = vsel %vm619, %v618, 0
        %696 = vmatprep.subr.mxu0 0.0
        %697 = vmatpush1.msra.mxu0 0.0
        %698 = vmatprep.subr.mxu0 0.0
        %699 = vmatpush1.msra.mxu0 0.0
        %700 = vmatprep.subr.mxu0 0.0
        %701 = vmatpush1.msra.mxu0 0.0
        %702 = vmatprep.subr.mxu0 0.0
        %703 = vmatpush1.msra.mxu0 0.0
        %704 = vmatprep.subr.mxu0 0.0
        %705 = vmatpush1.msra.mxu0 0.0
        %706 = vmatprep.subr.mxu0 0.0
        %707 = vmatpush1.msra.mxu0 0.0
        %708 = vmatprep.subr.mxu0 0.0
        %709 = vmatpush1.msra.mxu0 0.0
        %710 = vmatprep.subr.mxu0 0.0
        %711 = vmatpush1.msra.mxu0 0.0
        %712 = vmatprep.subr.mxu0 0.0
        %713 = vmatpush1.msra.mxu0 0.0
        %714 = vmatprep.subr.mxu0 0.0
        %715 = vmatpush1.msra.mxu0 0.0
        %716 = vmatprep.subr.mxu0 0.0
        %717 = vmatpush1.msra.mxu0 0.0
        %718 = vmatprep.subr.mxu0 0.0
        %719 = vmatpush1.msra.mxu0 0.0
        %720 = vmatprep.subr.mxu0 0.0
        %721 = vmatpush1.msra.mxu0 0.0
        %722 = vmatprep.subr.mxu0 0.0
        %723 = vmatpush1.msra.mxu0 0.0
        %724 = vmatprep.subr.mxu0 0.0
        %725 = vmatpush1.msra.mxu0 %v253
        %726 = vmatprep.subr.mxu0 0.0
        %727 = vmatpush1.msra.mxu0 %v252
        %728 = vmatprep.subr.mxu0 0.0
        %729 = vmatpush2.msra.mxu0 0.0
        %730 = vmatprep.subr.mxu0 0.0
        %731 = vmatpush2.msra.mxu0 0.0
        %732 = vmatprep.subr.mxu0 0.0
        %733 = vmatpush2.msra.mxu0 0.0
        %734 = vmatprep.subr.mxu0 0.0
        %735 = vmatpush2.msra.mxu0 0.0
        %736 = vmatprep.subr.mxu0 0.0
        %737 = vmatpush2.msra.mxu0 0.0
        %738 = vmatprep.subr.mxu0 0.0
        %739 = vmatpush2.msra.mxu0 0.0
        %740 = vmatprep.subr.mxu0 0.0
        %741 = vmatpush2.msra.mxu0 0.0
        %742 = vmatprep.subr.mxu0 0.0
        %743 = vmatpush2.msra.mxu0 0.0
        %744 = vmatprep.subr.mxu0 0.0
        %745 = vmatpush2.msra.mxu0 0.0
        %746 = vmatprep.subr.mxu0 0.0
        %747 = vmatpush2.msra.mxu0 0.0
        %748 = vmatprep.subr.mxu0 0.0
        %749 = vmatpush2.msra.mxu0 0.0
        %750 = vmatprep.subr.mxu0 0.0
        %751 = vmatpush2.msra.mxu0 0.0
        %752 = vmatprep.subr.mxu0 0.0
        %753 = vmatpush2.msra.mxu0 0.0
        %754 = vmatprep.subr.mxu0 0.0
        %755 = vmatpush2.msra.mxu0 0.0
        %756 = vmatprep.subr.mxu0 0.0
        %757 = vmatpush2.msra.mxu0 0.0
        %758 = vmatprep.subr.mxu0 0.0
        %759 = vmatpush2.msra.mxu0 0.0
        %760 = vmatprep.mubr.f32.mxu0 0.0
        %761 = vmatmul.mubr.f32.gmra.mxu0 %v694
        %v762 = vpop.f32.mrf.mxu0
        %v763 = vadd.f32 %v690, %v762
        %v764 = vpop.f32.mrf.mxu0
        %765 = vdwg.mxu0
        %v766 = vlaneseq
        %v767 = vshrl.u32 %v766, 7
        %v768 = vsub.s32 0, %v767
        %v769 = vrot.slane %v256, %v768
        %v770 = vadd.f32 %v763, %v769
        %v771 = vtanh.pop %v770
        %v772 = vlaneseq
        %v773 = vshrl.u32 %v772, 7
        %v774 = vsub.s32 0, %v773
        %v775 = vrot.slane %v260, %v774
        %v777 = vsel %vm480, %v771, 0
        %779 = vmatprep.subr.mxu0 0.0
        %780 = vmatpush1.msra.mxu0 0.0
        %781 = vmatprep.subr.mxu0 0.0
        %782 = vmatpush1.msra.mxu0 0.0
        %783 = vmatprep.subr.mxu0 0.0
        %784 = vmatpush1.msra.mxu0 0.0
        %785 = vmatprep.subr.mxu0 0.0
        %786 = vmatpush1.msra.mxu0 0.0
        %787 = vmatprep.subr.mxu0 0.0
        %788 = vmatpush1.msra.mxu0 0.0
        %789 = vmatprep.subr.mxu0 0.0
        %790 = vmatpush1.msra.mxu0 0.0
        %791 = vmatprep.subr.mxu0 0.0
        %792 = vmatpush1.msra.mxu0 0.0
        %793 = vmatprep.subr.mxu0 0.0
        %794 = vmatpush1.msra.mxu0 0.0
        %795 = vmatprep.subr.mxu0 0.0
        %796 = vmatpush1.msra.mxu0 0.0
        %797 = vmatprep.subr.mxu0 0.0
        %798 = vmatpush1.msra.mxu0 0.0
        %799 = vmatprep.subr.mxu0 0.0
        %800 = vmatpush1.msra.mxu0 0.0
        %801 = vmatprep.subr.mxu0 0.0
        %802 = vmatpush1.msra.mxu0 0.0
        %803 = vmatprep.subr.mxu0 0.0
        %804 = vmatpush1.msra.mxu0 0.0
        %805 = vmatprep.subr.mxu0 0.0
        %806 = vmatpush1.msra.mxu0 %v259
        %807 = vmatprep.subr.mxu0 0.0
        %808 = vmatpush1.msra.mxu0 %v258
        %809 = vmatprep.subr.mxu0 0.0
        %810 = vmatpush1.msra.mxu0 %v257
        %811 = vmatprep.subr.mxu0 0.0
        %812 = vmatpush2.msra.mxu0 0.0
        %813 = vmatprep.subr.mxu0 0.0
        %814 = vmatpush2.msra.mxu0 0.0
        %815 = vmatprep.subr.mxu0 0.0
        %816 = vmatpush2.msra.mxu0 0.0
        %817 = vmatprep.subr.mxu0 0.0
        %818 = vmatpush2.msra.mxu0 0.0
        %819 = vmatprep.subr.mxu0 0.0
        %820 = vmatpush2.msra.mxu0 0.0
        %821 = vmatprep.subr.mxu0 0.0
        %822 = vmatpush2.msra.mxu0 0.0
        %823 = vmatprep.subr.mxu0 0.0
        %824 = vmatpush2.msra.mxu0 0.0
        %825 = vmatprep.subr.mxu0 0.0
        %826 = vmatpush2.msra.mxu0 0.0
        %827 = vmatprep.subr.mxu0 0.0
        %828 = vmatpush2.msra.mxu0 0.0
        %829 = vmatprep.subr.mxu0 0.0
        %830 = vmatpush2.msra.mxu0 0.0
        %831 = vmatprep.subr.mxu0 0.0
        %832 = vmatpush2.msra.mxu0 0.0
        %833 = vmatprep.subr.mxu0 0.0
        %834 = vmatpush2.msra.mxu0 0.0
        %835 = vmatprep.subr.mxu0 0.0
        %836 = vmatpush2.msra.mxu0 0.0
        %837 = vmatprep.subr.mxu0 0.0
        %838 = vmatpush2.msra.mxu0 0.0
        %839 = vmatprep.subr.mxu0 0.0
        %840 = vmatpush2.msra.mxu0 0.0
        %841 = vmatprep.subr.mxu0 0.0
        %842 = vmatpush2.msra.mxu0 0.0
        %843 = vmatprep.mubr.f32.mxu0 0.0
        %844 = vmatmul.mubr.f32.gmra.mxu0 %v777
        %v845 = vpop.f32.mrf.mxu0
        %v846 = vadd.f32 %v775, %v845
        %v847 = vpop.f32.mrf.mxu0
        %848 = vdwg.mxu0
        %849 = vst.msk [vmem:[#allocation2] sm:$0xff] %vm619, %v846
        %s850 = scalar_lea.vmem %s235, 8 [#allocation4]
        %v851 = vld [vmem:[%s850] sm:$0xff]
        %v853 = vsel %vm619, %v846, 0
        %855 = vmatprep.subr.mxu0 0.0
        %856 = vmatpush1.msra.mxu0 0.0
        %857 = vmatprep.subr.mxu0 0.0
        %858 = vmatpush1.msra.mxu0 0.0
        %859 = vmatprep.subr.mxu0 0.0
        %860 = vmatpush1.msra.mxu0 0.0
        %861 = vmatprep.subr.mxu0 0.0
        %862 = vmatpush1.msra.mxu0 0.0
        %863 = vmatprep.subr.mxu0 0.0
        %864 = vmatpush1.msra.mxu0 0.0
        %865 = vmatprep.subr.mxu0 0.0
        %866 = vmatpush1.msra.mxu0 0.0
        %867 = vmatprep.subr.mxu0 0.0
        %868 = vmatpush1.msra.mxu0 0.0
        %869 = vmatprep.subr.mxu0 0.0
        %870 = vmatpush1.msra.mxu0 0.0
        %871 = vmatprep.subr.mxu0 0.0
        %872 = vmatpush1.msra.mxu0 0.0
        %873 = vmatprep.subr.mxu0 0.0
        %874 = vmatpush1.msra.mxu0 0.0
        %875 = vmatprep.subr.mxu0 0.0
        %876 = vmatpush1.msra.mxu0 0.0
        %877 = vmatprep.subr.mxu0 0.0
        %878 = vmatpush1.msra.mxu0 0.0
        %879 = vmatprep.subr.mxu0 0.0
        %880 = vmatpush1.msra.mxu0 0.0
        %881 = vmatprep.subr.mxu0 0.0
        %882 = vmatpush1.msra.mxu0 0.0
        %883 = vmatprep.subr.mxu0 0.0
        %884 = vmatpush1.msra.mxu0 %v255
        %885 = vmatprep.subr.mxu0 0.0
        %886 = vmatpush1.msra.mxu0 %v254
        %887 = vmatprep.subr.mxu0 0.0
        %888 = vmatpush2.msra.mxu0 0.0
        %889 = vmatprep.subr.mxu0 0.0
        %890 = vmatpush2.msra.mxu0 0.0
        %891 = vmatprep.subr.mxu0 0.0
        %892 = vmatpush2.msra.mxu0 0.0
        %893 = vmatprep.subr.mxu0 0.0
        %894 = vmatpush2.msra.mxu0 0.0
        %895 = vmatprep.subr.mxu0 0.0
        %896 = vmatpush2.msra.mxu0 0.0
        %897 = vmatprep.subr.mxu0 0.0
        %898 = vmatpush2.msra.mxu0 0.0
        %899 = vmatprep.subr.mxu0 0.0
        %900 = vmatpush2.msra.mxu0 0.0
        %901 = vmatprep.subr.mxu0 0.0
        %902 = vmatpush2.msra.mxu0 0.0
        %903 = vmatprep.subr.mxu0 0.0
        %904 = vmatpush2.msra.mxu0 0.0
        %905 = vmatprep.subr.mxu0 0.0
        %906 = vmatpush2.msra.mxu0 0.0
        %907 = vmatprep.subr.mxu0 0.0
        %908 = vmatpush2.msra.mxu0 0.0
        %909 = vmatprep.subr.mxu0 0.0
        %910 = vmatpush2.msra.mxu0 0.0
        %911 = vmatprep.subr.mxu0 0.0
        %912 = vmatpush2.msra.mxu0 0.0
        %913 = vmatprep.subr.mxu0 0.0
        %914 = vmatpush2.msra.mxu0 0.0
        %915 = vmatprep.subr.mxu0 0.0
        %916 = vmatpush2.msra.mxu0 0.0
        %917 = vmatprep.subr.mxu0 0.0
        %918 = vmatpush2.msra.mxu0 0.0
        %919 = vmatprep.mubr.f32.mxu0 0.0
        %920 = vmatmul.mubr.f32.gmra.mxu0 %v853
        %v921 = vpop.f32.mrf.mxu0
        %v922 = vadd.f32 0.0, %v921
        %v923 = vpop.f32.mrf.mxu0
        %924 = vdwg.mxu0
        %v926 = vsel %vm619, %v851, 0
        %928 = vmatprep.subr.mxu0 0.0
        %929 = vmatpush1.msra.mxu0 0.0
        %930 = vmatprep.subr.mxu0 0.0
        %931 = vmatpush1.msra.mxu0 0.0
        %932 = vmatprep.subr.mxu0 0.0
        %933 = vmatpush1.msra.mxu0 0.0
        %934 = vmatprep.subr.mxu0 0.0
        %935 = vmatpush1.msra.mxu0 0.0
        %936 = vmatprep.subr.mxu0 0.0
        %937 = vmatpush1.msra.mxu0 0.0
        %938 = vmatprep.subr.mxu0 0.0
        %939 = vmatpush1.msra.mxu0 0.0
        %940 = vmatprep.subr.mxu0 0.0
        %941 = vmatpush1.msra.mxu0 0.0
        %942 = vmatprep.subr.mxu0 0.0
        %943 = vmatpush1.msra.mxu0 0.0
        %944 = vmatprep.subr.mxu0 0.0
        %945 = vmatpush1.msra.mxu0 0.0
        %946 = vmatprep.subr.mxu0 0.0
        %947 = vmatpush1.msra.mxu0 0.0
        %948 = vmatprep.subr.mxu0 0.0
        %949 = vmatpush1.msra.mxu0 0.0
        %950 = vmatprep.subr.mxu0 0.0
        %951 = vmatpush1.msra.mxu0 0.0
        %952 = vmatprep.subr.mxu0 0.0
        %953 = vmatpush1.msra.mxu0 0.0
        %954 = vmatprep.subr.mxu0 0.0
        %955 = vmatpush1.msra.mxu0 0.0
        %956 = vmatprep.subr.mxu0 0.0
        %957 = vmatpush1.msra.mxu0 %v253
        %958 = vmatprep.subr.mxu0 0.0
        %959 = vmatpush1.msra.mxu0 %v252
        %960 = vmatprep.subr.mxu0 0.0
        %961 = vmatpush2.msra.mxu0 0.0
        %962 = vmatprep.subr.mxu0 0.0
        %963 = vmatpush2.msra.mxu0 0.0
        %964 = vmatprep.subr.mxu0 0.0
        %965 = vmatpush2.msra.mxu0 0.0
        %966 = vmatprep.subr.mxu0 0.0
        %967 = vmatpush2.msra.mxu0 0.0
        %968 = vmatprep.subr.mxu0 0.0
        %969 = vmatpush2.msra.mxu0 0.0
        %970 = vmatprep.subr.mxu0 0.0
        %971 = vmatpush2.msra.mxu0 0.0
        %972 = vmatprep.subr.mxu0 0.0
        %973 = vmatpush2.msra.mxu0 0.0
        %974 = vmatprep.subr.mxu0 0.0
        %975 = vmatpush2.msra.mxu0 0.0
        %976 = vmatprep.subr.mxu0 0.0
        %977 = vmatpush2.msra.mxu0 0.0
        %978 = vmatprep.subr.mxu0 0.0
        %979 = vmatpush2.msra.mxu0 0.0
        %980 = vmatprep.subr.mxu0 0.0
        %981 = vmatpush2.msra.mxu0 0.0
        %982 = vmatprep.subr.mxu0 0.0
        %983 = vmatpush2.msra.mxu0 0.0
        %984 = vmatprep.subr.mxu0 0.0
        %985 = vmatpush2.msra.mxu0 0.0
        %986 = vmatprep.subr.mxu0 0.0
        %987 = vmatpush2.msra.mxu0 0.0
        %988 = vmatprep.subr.mxu0 0.0
        %989 = vmatpush2.msra.mxu0 0.0
        %990 = vmatprep.subr.mxu0 0.0
        %991 = vmatpush2.msra.mxu0 0.0
        %992 = vmatprep.mubr.f32.mxu0 0.0
        %993 = vmatmul.mubr.f32.gmra.mxu0 %v926
        %v994 = vpop.f32.mrf.mxu0
        %v995 = vadd.f32 %v922, %v994
        %v996 = vpop.f32.mrf.mxu0
        %997 = vdwg.mxu0
        %v998 = vadd.f32 %v995, %v769
        %v999 = vtanh.pop %v998
        %v1001 = vsel %vm480, %v999, 0
        %1003 = vmatprep.subr.mxu0 0.0
        %1004 = vmatpush1.msra.mxu0 0.0
        %1005 = vmatprep.subr.mxu0 0.0
        %1006 = vmatpush1.msra.mxu0 0.0
        %1007 = vmatprep.subr.mxu0 0.0
        %1008 = vmatpush1.msra.mxu0 0.0
        %1009 = vmatprep.subr.mxu0 0.0
        %1010 = vmatpush1.msra.mxu0 0.0
        %1011 = vmatprep.subr.mxu0 0.0
        %1012 = vmatpush1.msra.mxu0 0.0
        %1013 = vmatprep.subr.mxu0 0.0
        %1014 = vmatpush1.msra.mxu0 0.0
        %1015 = vmatprep.subr.mxu0 0.0
        %1016 = vmatpush1.msra.mxu0 0.0
        %1017 = vmatprep.subr.mxu0 0.0
        %1018 = vmatpush1.msra.mxu0 0.0
        %1019 = vmatprep.subr.mxu0 0.0
        %1020 = vmatpush1.msra.mxu0 0.0
        %1021 = vmatprep.subr.mxu0 0.0
        %1022 = vmatpush1.msra.mxu0 0.0
        %1023 = vmatprep.subr.mxu0 0.0
        %1024 = vmatpush1.msra.mxu0 0.0
        %1025 = vmatprep.subr.mxu0 0.0
        %1026 = vmatpush1.msra.mxu0 0.0
        %1027 = vmatprep.subr.mxu0 0.0
        %1028 = vmatpush1.msra.mxu0 0.0
        %1029 = vmatprep.subr.mxu0 0.0
        %1030 = vmatpush1.msra.mxu0 %v259
        %1031 = vmatprep.subr.mxu0 0.0
        %1032 = vmatpush1.msra.mxu0 %v258
        %1033 = vmatprep.subr.mxu0 0.0
        %1034 = vmatpush1.msra.mxu0 %v257
        %1035 = vmatprep.subr.mxu0 0.0
        %1036 = vmatpush2.msra.mxu0 0.0
        %1037 = vmatprep.subr.mxu0 0.0
        %1038 = vmatpush2.msra.mxu0 0.0
        %1039 = vmatprep.subr.mxu0 0.0
        %1040 = vmatpush2.msra.mxu0 0.0
        %1041 = vmatprep.subr.mxu0 0.0
        %1042 = vmatpush2.msra.mxu0 0.0
        %1043 = vmatprep.subr.mxu0 0.0
        %1044 = vmatpush2.msra.mxu0 0.0
        %1045 = vmatprep.subr.mxu0 0.0
        %1046 = vmatpush2.msra.mxu0 0.0
        %1047 = vmatprep.subr.mxu0 0.0
        %1048 = vmatpush2.msra.mxu0 0.0
        %1049 = vmatprep.subr.mxu0 0.0
        %1050 = vmatpush2.msra.mxu0 0.0
        %1051 = vmatprep.subr.mxu0 0.0
        %1052 = vmatpush2.msra.mxu0 0.0
        %1053 = vmatprep.subr.mxu0 0.0
        %1054 = vmatpush2.msra.mxu0 0.0
        %1055 = vmatprep.subr.mxu0 0.0
        %1056 = vmatpush2.msra.mxu0 0.0
        %1057 = vmatprep.subr.mxu0 0.0
        %1058 = vmatpush2.msra.mxu0 0.0
        %1059 = vmatprep.subr.mxu0 0.0
        %1060 = vmatpush2.msra.mxu0 0.0
        %1061 = vmatprep.subr.mxu0 0.0
        %1062 = vmatpush2.msra.mxu0 0.0
        %1063 = vmatprep.subr.mxu0 0.0
        %1064 = vmatpush2.msra.mxu0 0.0
        %1065 = vmatprep.subr.mxu0 0.0
        %1066 = vmatpush2.msra.mxu0 0.0
        %1067 = vmatprep.mubr.f32.mxu0 0.0
        %1068 = vmatmul.mubr.f32.gmra.mxu0 %v1001
        %v1069 = vpop.f32.mrf.mxu0
        %v1070 = vadd.f32 %v775, %v1069
        %v1071 = vpop.f32.mrf.mxu0
        %1072 = vdwg.mxu0
        %s1073 = scalar_lea.vmem [#allocation2], 8
        %1074 = vst.msk [vmem:[%s1073] sm:$0xff] %vm619, %v1070
        %s1075 = scalar_lea.vmem %s235, 16 [#allocation4]
        %v1076 = vld [vmem:[%s1075] sm:$0xff]
        %v1078 = vsel %vm619, %v1070, 0
        %1080 = vmatprep.subr.mxu0 0.0
        %1081 = vmatpush1.msra.mxu0 0.0
        %1082 = vmatprep.subr.mxu0 0.0
        %1083 = vmatpush1.msra.mxu0 0.0
        %1084 = vmatprep.subr.mxu0 0.0
        %1085 = vmatpush1.msra.mxu0 0.0
        %1086 = vmatprep.subr.mxu0 0.0
        %1087 = vmatpush1.msra.mxu0 0.0
        %1088 = vmatprep.subr.mxu0 0.0
        %1089 = vmatpush1.msra.mxu0 0.0
        %1090 = vmatprep.subr.mxu0 0.0
        %1091 = vmatpush1.msra.mxu0 0.0
        %1092 = vmatprep.subr.mxu0 0.0
        %1093 = vmatpush1.msra.mxu0 0.0
        %1094 = vmatprep.subr.mxu0 0.0
        %1095 = vmatpush1.msra.mxu0 0.0
        %1096 = vmatprep.subr.mxu0 0.0
        %1097 = vmatpush1.msra.mxu0 0.0
        %1098 = vmatprep.subr.mxu0 0.0
        %1099 = vmatpush1.msra.mxu0 0.0
        %1100 = vmatprep.subr.mxu0 0.0
        %1101 = vmatpush1.msra.mxu0 0.0
        %1102 = vmatprep.subr.mxu0 0.0
        %1103 = vmatpush1.msra.mxu0 0.0
        %1104 = vmatprep.subr.mxu0 0.0
        %1105 = vmatpush1.msra.mxu0 0.0
        %1106 = vmatprep.subr.mxu0 0.0
        %1107 = vmatpush1.msra.mxu0 0.0
        %1108 = vmatprep.subr.mxu0 0.0
        %1109 = vmatpush1.msra.mxu0 %v255
        %1110 = vmatprep.subr.mxu0 0.0
        %1111 = vmatpush1.msra.mxu0 %v254
        %1112 = vmatprep.subr.mxu0 0.0
        %1113 = vmatpush2.msra.mxu0 0.0
        %1114 = vmatprep.subr.mxu0 0.0
        %1115 = vmatpush2.msra.mxu0 0.0
        %1116 = vmatprep.subr.mxu0 0.0
        %1117 = vmatpush2.msra.mxu0 0.0
        %1118 = vmatprep.subr.mxu0 0.0
        %1119 = vmatpush2.msra.mxu0 0.0
        %1120 = vmatprep.subr.mxu0 0.0
        %1121 = vmatpush2.msra.mxu0 0.0
        %1122 = vmatprep.subr.mxu0 0.0
        %1123 = vmatpush2.msra.mxu0 0.0
        %1124 = vmatprep.subr.mxu0 0.0
        %1125 = vmatpush2.msra.mxu0 0.0
        %1126 = vmatprep.subr.mxu0 0.0
        %1127 = vmatpush2.msra.mxu0 0.0
        %1128 = vmatprep.subr.mxu0 0.0
        %1129 = vmatpush2.msra.mxu0 0.0
        %1130 = vmatprep.subr.mxu0 0.0
        %1131 = vmatpush2.msra.mxu0 0.0
        %1132 = vmatprep.subr.mxu0 0.0
        %1133 = vmatpush2.msra.mxu0 0.0
        %1134 = vmatprep.subr.mxu0 0.0
        %1135 = vmatpush2.msra.mxu0 0.0
        %1136 = vmatprep.subr.mxu0 0.0
        %1137 = vmatpush2.msra.mxu0 0.0
        %1138 = vmatprep.subr.mxu0 0.0
        %1139 = vmatpush2.msra.mxu0 0.0
        %1140 = vmatprep.subr.mxu0 0.0
        %1141 = vmatpush2.msra.mxu0 0.0
        %1142 = vmatprep.subr.mxu0 0.0
        %1143 = vmatpush2.msra.mxu0 0.0
        %1144 = vmatprep.mubr.f32.mxu0 0.0
        %1145 = vmatmul.mubr.f32.gmra.mxu0 %v1078
        %v1146 = vpop.f32.mrf.mxu0
        %v1147 = vadd.f32 0.0, %v1146
        %v1148 = vpop.f32.mrf.mxu0
        %1149 = vdwg.mxu0
        %v1151 = vsel %vm619, %v1076, 0
        %1153 = vmatprep.subr.mxu0 0.0
        %1154 = vmatpush1.msra.mxu0 0.0
        %1155 = vmatprep.subr.mxu0 0.0
        %1156 = vmatpush1.msra.mxu0 0.0
        %1157 = vmatprep.subr.mxu0 0.0
        %1158 = vmatpush1.msra.mxu0 0.0
        %1159 = vmatprep.subr.mxu0 0.0
        %1160 = vmatpush1.msra.mxu0 0.0
        %1161 = vmatprep.subr.mxu0 0.0
        %1162 = vmatpush1.msra.mxu0 0.0
        %1163 = vmatprep.subr.mxu0 0.0
        %1164 = vmatpush1.msra.mxu0 0.0
        %1165 = vmatprep.subr.mxu0 0.0
        %1166 = vmatpush1.msra.mxu0 0.0
        %1167 = vmatprep.subr.mxu0 0.0
        %1168 = vmatpush1.msra.mxu0 0.0
        %1169 = vmatprep.subr.mxu0 0.0
        %1170 = vmatpush1.msra.mxu0 0.0
        %1171 = vmatprep.subr.mxu0 0.0
        %1172 = vmatpush1.msra.mxu0 0.0
        %1173 = vmatprep.subr.mxu0 0.0
        %1174 = vmatpush1.msra.mxu0 0.0
        %1175 = vmatprep.subr.mxu0 0.0
        %1176 = vmatpush1.msra.mxu0 0.0
        %1177 = vmatprep.subr.mxu0 0.0
        %1178 = vmatpush1.msra.mxu0 0.0
        %1179 = vmatprep.subr.mxu0 0.0
        %1180 = vmatpush1.msra.mxu0 0.0
        %1181 = vmatprep.subr.mxu0 0.0
        %1182 = vmatpush1.msra.mxu0 %v253
        %1183 = vmatprep.subr.mxu0 0.0
        %1184 = vmatpush1.msra.mxu0 %v252
        %1185 = vmatprep.subr.mxu0 0.0
        %1186 = vmatpush2.msra.mxu0 0.0
        %1187 = vmatprep.subr.mxu0 0.0
        %1188 = vmatpush2.msra.mxu0 0.0
        %1189 = vmatprep.subr.mxu0 0.0
        %1190 = vmatpush2.msra.mxu0 0.0
        %1191 = vmatprep.subr.mxu0 0.0
        %1192 = vmatpush2.msra.mxu0 0.0
        %1193 = vmatprep.subr.mxu0 0.0
        %1194 = vmatpush2.msra.mxu0 0.0
        %1195 = vmatprep.subr.mxu0 0.0
        %1196 = vmatpush2.msra.mxu0 0.0
        %1197 = vmatprep.subr.mxu0 0.0
        %1198 = vmatpush2.msra.mxu0 0.0
        %1199 = vmatprep.subr.mxu0 0.0
        %1200 = vmatpush2.msra.mxu0 0.0
        %1201 = vmatprep.subr.mxu0 0.0
        %1202 = vmatpush2.msra.mxu0 0.0
        %1203 = vmatprep.subr.mxu0 0.0
        %1204 = vmatpush2.msra.mxu0 0.0
        %1205 = vmatprep.subr.mxu0 0.0
        %1206 = vmatpush2.msra.mxu0 0.0
        %1207 = vmatprep.subr.mxu0 0.0
        %1208 = vmatpush2.msra.mxu0 0.0
        %1209 = vmatprep.subr.mxu0 0.0
        %1210 = vmatpush2.msra.mxu0 0.0
        %1211 = vmatprep.subr.mxu0 0.0
        %1212 = vmatpush2.msra.mxu0 0.0
        %1213 = vmatprep.subr.mxu0 0.0
        %1214 = vmatpush2.msra.mxu0 0.0
        %1215 = vmatprep.subr.mxu0 0.0
        %1216 = vmatpush2.msra.mxu0 0.0
        %1217 = vmatprep.mubr.f32.mxu0 0.0
        %1218 = vmatmul.mubr.f32.gmra.mxu0 %v1151
        %v1219 = vpop.f32.mrf.mxu0
        %v1220 = vadd.f32 %v1147, %v1219
        %v1221 = vpop.f32.mrf.mxu0
        %1222 = vdwg.mxu0
        %v1223 = vadd.f32 %v1220, %v769
        %v1224 = vtanh.pop %v1223
        %v1226 = vsel %vm480, %v1224, 0
        %1228 = vmatprep.subr.mxu0 0.0
        %1229 = vmatpush1.msra.mxu0 0.0
        %1230 = vmatprep.subr.mxu0 0.0
        %1231 = vmatpush1.msra.mxu0 0.0
        %1232 = vmatprep.subr.mxu0 0.0
        %1233 = vmatpush1.msra.mxu0 0.0
        %1234 = vmatprep.subr.mxu0 0.0
        %1235 = vmatpush1.msra.mxu0 0.0
        %1236 = vmatprep.subr.mxu0 0.0
        %1237 = vmatpush1.msra.mxu0 0.0
        %1238 = vmatprep.subr.mxu0 0.0
        %1239 = vmatpush1.msra.mxu0 0.0
        %1240 = vmatprep.subr.mxu0 0.0
        %1241 = vmatpush1.msra.mxu0 0.0
        %1242 = vmatprep.subr.mxu0 0.0
        %1243 = vmatpush1.msra.mxu0 0.0
        %1244 = vmatprep.subr.mxu0 0.0
        %1245 = vmatpush1.msra.mxu0 0.0
        %1246 = vmatprep.subr.mxu0 0.0
        %1247 = vmatpush1.msra.mxu0 0.0
        %1248 = vmatprep.subr.mxu0 0.0
        %1249 = vmatpush1.msra.mxu0 0.0
        %1250 = vmatprep.subr.mxu0 0.0
        %1251 = vmatpush1.msra.mxu0 0.0
        %1252 = vmatprep.subr.mxu0 0.0
        %1253 = vmatpush1.msra.mxu0 0.0
        %1254 = vmatprep.subr.mxu0 0.0
        %1255 = vmatpush1.msra.mxu0 %v259
        %1256 = vmatprep.subr.mxu0 0.0
        %1257 = vmatpush1.msra.mxu0 %v258
        %1258 = vmatprep.subr.mxu0 0.0
        %1259 = vmatpush1.msra.mxu0 %v257
        %1260 = vmatprep.subr.mxu0 0.0
        %1261 = vmatpush2.msra.mxu0 0.0
        %1262 = vmatprep.subr.mxu0 0.0
        %1263 = vmatpush2.msra.mxu0 0.0
        %1264 = vmatprep.subr.mxu0 0.0
        %1265 = vmatpush2.msra.mxu0 0.0
        %1266 = vmatprep.subr.mxu0 0.0
        %1267 = vmatpush2.msra.mxu0 0.0
        %1268 = vmatprep.subr.mxu0 0.0
        %1269 = vmatpush2.msra.mxu0 0.0
        %1270 = vmatprep.subr.mxu0 0.0
        %1271 = vmatpush2.msra.mxu0 0.0
        %1272 = vmatprep.subr.mxu0 0.0
        %1273 = vmatpush2.msra.mxu0 0.0
        %1274 = vmatprep.subr.mxu0 0.0
        %1275 = vmatpush2.msra.mxu0 0.0
        %1276 = vmatprep.subr.mxu0 0.0
        %1277 = vmatpush2.msra.mxu0 0.0
        %1278 = vmatprep.subr.mxu0 0.0
        %1279 = vmatpush2.msra.mxu0 0.0
        %1280 = vmatprep.subr.mxu0 0.0
        %1281 = vmatpush2.msra.mxu0 0.0
        %1282 = vmatprep.subr.mxu0 0.0
        %1283 = vmatpush2.msra.mxu0 0.0
        %1284 = vmatprep.subr.mxu0 0.0
        %1285 = vmatpush2.msra.mxu0 0.0
        %1286 = vmatprep.subr.mxu0 0.0
        %1287 = vmatpush2.msra.mxu0 0.0
        %1288 = vmatprep.subr.mxu0 0.0
        %1289 = vmatpush2.msra.mxu0 0.0
        %1290 = vmatprep.subr.mxu0 0.0
        %1291 = vmatpush2.msra.mxu0 0.0
        %1292 = vmatprep.mubr.f32.mxu0 0.0
        %1293 = vmatmul.mubr.f32.gmra.mxu0 %v1226
        %v1294 = vpop.f32.mrf.mxu0
        %v1295 = vadd.f32 %v775, %v1294
        %v1296 = vpop.f32.mrf.mxu0
        %1297 = vdwg.mxu0
        %s1298 = scalar_lea.vmem [#allocation2], 16
        %1299 = vst.msk [vmem:[%s1298] sm:$0xff] %vm619, %v1295
        %s1300 = scalar_lea.vmem %s235, 24 [#allocation4]
        %v1301 = vld [vmem:[%s1300] sm:$0xff]
        %v1303 = vsel %vm619, %v1295, 0
        %1305 = vmatprep.subr.mxu0 0.0
        %1306 = vmatpush1.msra.mxu0 0.0
        %1307 = vmatprep.subr.mxu0 0.0
        %1308 = vmatpush1.msra.mxu0 0.0
        %1309 = vmatprep.subr.mxu0 0.0
        %1310 = vmatpush1.msra.mxu0 0.0
        %1311 = vmatprep.subr.mxu0 0.0
        %1312 = vmatpush1.msra.mxu0 0.0
        %1313 = vmatprep.subr.mxu0 0.0
        %1314 = vmatpush1.msra.mxu0 0.0
        %1315 = vmatprep.subr.mxu0 0.0
        %1316 = vmatpush1.msra.mxu0 0.0
        %1317 = vmatprep.subr.mxu0 0.0
        %1318 = vmatpush1.msra.mxu0 0.0
        %1319 = vmatprep.subr.mxu0 0.0
        %1320 = vmatpush1.msra.mxu0 0.0
        %1321 = vmatprep.subr.mxu0 0.0
        %1322 = vmatpush1.msra.mxu0 0.0
        %1323 = vmatprep.subr.mxu0 0.0
        %1324 = vmatpush1.msra.mxu0 0.0
        %1325 = vmatprep.subr.mxu0 0.0
        %1326 = vmatpush1.msra.mxu0 0.0
        %1327 = vmatprep.subr.mxu0 0.0
        %1328 = vmatpush1.msra.mxu0 0.0
        %1329 = vmatprep.subr.mxu0 0.0
        %1330 = vmatpush1.msra.mxu0 0.0
        %1331 = vmatprep.subr.mxu0 0.0
        %1332 = vmatpush1.msra.mxu0 0.0
        %1333 = vmatprep.subr.mxu0 0.0
        %1334 = vmatpush1.msra.mxu0 %v255
        %1335 = vmatprep.subr.mxu0 0.0
        %1336 = vmatpush1.msra.mxu0 %v254
        %1337 = vmatprep.subr.mxu0 0.0
        %1338 = vmatpush2.msra.mxu0 0.0
        %1339 = vmatprep.subr.mxu0 0.0
        %1340 = vmatpush2.msra.mxu0 0.0
        %1341 = vmatprep.subr.mxu0 0.0
        %1342 = vmatpush2.msra.mxu0 0.0
        %1343 = vmatprep.subr.mxu0 0.0
        %1344 = vmatpush2.msra.mxu0 0.0
        %1345 = vmatprep.subr.mxu0 0.0
        %1346 = vmatpush2.msra.mxu0 0.0
        %1347 = vmatprep.subr.mxu0 0.0
        %1348 = vmatpush2.msra.mxu0 0.0
        %1349 = vmatprep.subr.mxu0 0.0
        %1350 = vmatpush2.msra.mxu0 0.0
        %1351 = vmatprep.subr.mxu0 0.0
        %1352 = vmatpush2.msra.mxu0 0.0
        %1353 = vmatprep.subr.mxu0 0.0
        %1354 = vmatpush2.msra.mxu0 0.0
        %1355 = vmatprep.subr.mxu0 0.0
        %1356 = vmatpush2.msra.mxu0 0.0
        %1357 = vmatprep.subr.mxu0 0.0
        %1358 = vmatpush2.msra.mxu0 0.0
        %1359 = vmatprep.subr.mxu0 0.0
        %1360 = vmatpush2.msra.mxu0 0.0
        %1361 = vmatprep.subr.mxu0 0.0
        %1362 = vmatpush2.msra.mxu0 0.0
        %1363 = vmatprep.subr.mxu0 0.0
        %1364 = vmatpush2.msra.mxu0 0.0
        %1365 = vmatprep.subr.mxu0 0.0
        %1366 = vmatpush2.msra.mxu0 0.0
        %1367 = vmatprep.subr.mxu0 0.0
        %1368 = vmatpush2.msra.mxu0 0.0
        %1369 = vmatprep.mubr.f32.mxu0 0.0
        %1370 = vmatmul.mubr.f32.gmra.mxu0 %v1303
        %v1371 = vpop.f32.mrf.mxu0
        %v1372 = vadd.f32 0.0, %v1371
        %v1373 = vpop.f32.mrf.mxu0
        %1374 = vdwg.mxu0
        %v1376 = vsel %vm619, %v1301, 0
        %1378 = vmatprep.subr.mxu0 0.0
        %1379 = vmatpush1.msra.mxu0 0.0
        %1380 = vmatprep.subr.mxu0 0.0
        %1381 = vmatpush1.msra.mxu0 0.0
        %1382 = vmatprep.subr.mxu0 0.0
        %1383 = vmatpush1.msra.mxu0 0.0
        %1384 = vmatprep.subr.mxu0 0.0
        %1385 = vmatpush1.msra.mxu0 0.0
        %1386 = vmatprep.subr.mxu0 0.0
        %1387 = vmatpush1.msra.mxu0 0.0
        %1388 = vmatprep.subr.mxu0 0.0
        %1389 = vmatpush1.msra.mxu0 0.0
        %1390 = vmatprep.subr.mxu0 0.0
        %1391 = vmatpush1.msra.mxu0 0.0
        %1392 = vmatprep.subr.mxu0 0.0
        %1393 = vmatpush1.msra.mxu0 0.0
        %1394 = vmatprep.subr.mxu0 0.0
        %1395 = vmatpush1.msra.mxu0 0.0
        %1396 = vmatprep.subr.mxu0 0.0
        %1397 = vmatpush1.msra.mxu0 0.0
        %1398 = vmatprep.subr.mxu0 0.0
        %1399 = vmatpush1.msra.mxu0 0.0
        %1400 = vmatprep.subr.mxu0 0.0
        %1401 = vmatpush1.msra.mxu0 0.0
        %1402 = vmatprep.subr.mxu0 0.0
        %1403 = vmatpush1.msra.mxu0 0.0
        %1404 = vmatprep.subr.mxu0 0.0
        %1405 = vmatpush1.msra.mxu0 0.0
        %1406 = vmatprep.subr.mxu0 0.0
        %1407 = vmatpush1.msra.mxu0 %v253
        %1408 = vmatprep.subr.mxu0 0.0
        %1409 = vmatpush1.msra.mxu0 %v252
        %1410 = vmatprep.subr.mxu0 0.0
        %1411 = vmatpush2.msra.mxu0 0.0
        %1412 = vmatprep.subr.mxu0 0.0
        %1413 = vmatpush2.msra.mxu0 0.0
        %1414 = vmatprep.subr.mxu0 0.0
        %1415 = vmatpush2.msra.mxu0 0.0
        %1416 = vmatprep.subr.mxu0 0.0
        %1417 = vmatpush2.msra.mxu0 0.0
        %1418 = vmatprep.subr.mxu0 0.0
        %1419 = vmatpush2.msra.mxu0 0.0
        %1420 = vmatprep.subr.mxu0 0.0
        %1421 = vmatpush2.msra.mxu0 0.0
        %1422 = vmatprep.subr.mxu0 0.0
        %1423 = vmatpush2.msra.mxu0 0.0
        %1424 = vmatprep.subr.mxu0 0.0
        %1425 = vmatpush2.msra.mxu0 0.0
        %1426 = vmatprep.subr.mxu0 0.0
        %1427 = vmatpush2.msra.mxu0 0.0
        %1428 = vmatprep.subr.mxu0 0.0
        %1429 = vmatpush2.msra.mxu0 0.0
        %1430 = vmatprep.subr.mxu0 0.0
        %1431 = vmatpush2.msra.mxu0 0.0
        %1432 = vmatprep.subr.mxu0 0.0
        %1433 = vmatpush2.msra.mxu0 0.0
        %1434 = vmatprep.subr.mxu0 0.0
        %1435 = vmatpush2.msra.mxu0 0.0
        %1436 = vmatprep.subr.mxu0 0.0
        %1437 = vmatpush2.msra.mxu0 0.0
        %1438 = vmatprep.subr.mxu0 0.0
        %1439 = vmatpush2.msra.mxu0 0.0
        %1440 = vmatprep.subr.mxu0 0.0
        %1441 = vmatpush2.msra.mxu0 0.0
        %1442 = vmatprep.mubr.f32.mxu0 0.0
        %1443 = vmatmul.mubr.f32.gmra.mxu0 %v1376
        %v1444 = vpop.f32.mrf.mxu0
        %v1445 = vadd.f32 %v1372, %v1444
        %v1446 = vpop.f32.mrf.mxu0
        %1447 = vdwg.mxu0
        %v1448 = vadd.f32 %v1445, %v769
        %v1449 = vtanh.pop %v1448
        %v1451 = vsel %vm480, %v1449, 0
        %1453 = vmatprep.subr.mxu0 0.0
        %1454 = vmatpush1.msra.mxu0 0.0
        %1455 = vmatprep.subr.mxu0 0.0
        %1456 = vmatpush1.msra.mxu0 0.0
        %1457 = vmatprep.subr.mxu0 0.0
        %1458 = vmatpush1.msra.mxu0 0.0
        %1459 = vmatprep.subr.mxu0 0.0
        %1460 = vmatpush1.msra.mxu0 0.0
        %1461 = vmatprep.subr.mxu0 0.0
        %1462 = vmatpush1.msra.mxu0 0.0
        %1463 = vmatprep.subr.mxu0 0.0
        %1464 = vmatpush1.msra.mxu0 0.0
        %1465 = vmatprep.subr.mxu0 0.0
        %1466 = vmatpush1.msra.mxu0 0.0
        %1467 = vmatprep.subr.mxu0 0.0
        %1468 = vmatpush1.msra.mxu0 0.0
        %1469 = vmatprep.subr.mxu0 0.0
        %1470 = vmatpush1.msra.mxu0 0.0
        %1471 = vmatprep.subr.mxu0 0.0
        %1472 = vmatpush1.msra.mxu0 0.0
        %1473 = vmatprep.subr.mxu0 0.0
        %1474 = vmatpush1.msra.mxu0 0.0
        %1475 = vmatprep.subr.mxu0 0.0
        %1476 = vmatpush1.msra.mxu0 0.0
        %1477 = vmatprep.subr.mxu0 0.0
        %1478 = vmatpush1.msra.mxu0 0.0
        %1479 = vmatprep.subr.mxu0 0.0
        %1480 = vmatpush1.msra.mxu0 %v259
        %1481 = vmatprep.subr.mxu0 0.0
        %1482 = vmatpush1.msra.mxu0 %v258
        %1483 = vmatprep.subr.mxu0 0.0
        %1484 = vmatpush1.msra.mxu0 %v257
        %1485 = vmatprep.subr.mxu0 0.0
        %1486 = vmatpush2.msra.mxu0 0.0
        %1487 = vmatprep.subr.mxu0 0.0
        %1488 = vmatpush2.msra.mxu0 0.0
        %1489 = vmatprep.subr.mxu0 0.0
        %1490 = vmatpush2.msra.mxu0 0.0
        %1491 = vmatprep.subr.mxu0 0.0
        %1492 = vmatpush2.msra.mxu0 0.0
        %1493 = vmatprep.subr.mxu0 0.0
        %1494 = vmatpush2.msra.mxu0 0.0
        %1495 = vmatprep.subr.mxu0 0.0
        %1496 = vmatpush2.msra.mxu0 0.0
        %1497 = vmatprep.subr.mxu0 0.0
        %1498 = vmatpush2.msra.mxu0 0.0
        %1499 = vmatprep.subr.mxu0 0.0
        %1500 = vmatpush2.msra.mxu0 0.0
        %1501 = vmatprep.subr.mxu0 0.0
        %1502 = vmatpush2.msra.mxu0 0.0
        %1503 = vmatprep.subr.mxu0 0.0
        %1504 = vmatpush2.msra.mxu0 0.0
        %1505 = vmatprep.subr.mxu0 0.0
        %1506 = vmatpush2.msra.mxu0 0.0
        %1507 = vmatprep.subr.mxu0 0.0
        %1508 = vmatpush2.msra.mxu0 0.0
        %1509 = vmatprep.subr.mxu0 0.0
        %1510 = vmatpush2.msra.mxu0 0.0
        %1511 = vmatprep.subr.mxu0 0.0
        %1512 = vmatpush2.msra.mxu0 0.0
        %1513 = vmatprep.subr.mxu0 0.0
        %1514 = vmatpush2.msra.mxu0 0.0
        %1515 = vmatprep.subr.mxu0 0.0
        %1516 = vmatpush2.msra.mxu0 0.0
        %1517 = vmatprep.mubr.f32.mxu0 0.0
        %1518 = vmatmul.mubr.f32.gmra.mxu0 %v1451
        %v1519 = vpop.f32.mrf.mxu0
        %v1520 = vadd.f32 %v775, %v1519
        %v1521 = vpop.f32.mrf.mxu0
        %1522 = vdwg.mxu0
        %s1523 = scalar_lea.vmem [#allocation2], 24
        %1524 = vst.msk [vmem:[%s1523] sm:$0xff] %vm619, %v1520
        %s1525 = scalar_lea.vmem %s235, 32 [#allocation4]
        %v1526 = vld [vmem:[%s1525] sm:$0xff]
        %v1528 = vsel %vm619, %v1520, 0
        %1530 = vmatprep.subr.mxu0 0.0
        %1531 = vmatpush1.msra.mxu0 0.0
        %1532 = vmatprep.subr.mxu0 0.0
        %1533 = vmatpush1.msra.mxu0 0.0
        %1534 = vmatprep.subr.mxu0 0.0
        %1535 = vmatpush1.msra.mxu0 0.0
        %1536 = vmatprep.subr.mxu0 0.0
        %1537 = vmatpush1.msra.mxu0 0.0
        %1538 = vmatprep.subr.mxu0 0.0
        %1539 = vmatpush1.msra.mxu0 0.0
        %1540 = vmatprep.subr.mxu0 0.0
        %1541 = vmatpush1.msra.mxu0 0.0
        %1542 = vmatprep.subr.mxu0 0.0
        %1543 = vmatpush1.msra.mxu0 0.0
        %1544 = vmatprep.subr.mxu0 0.0
        %1545 = vmatpush1.msra.mxu0 0.0
        %1546 = vmatprep.subr.mxu0 0.0
        %1547 = vmatpush1.msra.mxu0 0.0
        %1548 = vmatprep.subr.mxu0 0.0
        %1549 = vmatpush1.msra.mxu0 0.0
        %1550 = vmatprep.subr.mxu0 0.0
        %1551 = vmatpush1.msra.mxu0 0.0
        %1552 = vmatprep.subr.mxu0 0.0
        %1553 = vmatpush1.msra.mxu0 0.0
        %1554 = vmatprep.subr.mxu0 0.0
        %1555 = vmatpush1.msra.mxu0 0.0
        %1556 = vmatprep.subr.mxu0 0.0
        %1557 = vmatpush1.msra.mxu0 0.0
        %1558 = vmatprep.subr.mxu0 0.0
        %1559 = vmatpush1.msra.mxu0 %v255
        %1560 = vmatprep.subr.mxu0 0.0
        %1561 = vmatpush1.msra.mxu0 %v254
        %1562 = vmatprep.subr.mxu0 0.0
        %1563 = vmatpush2.msra.mxu0 0.0
        %1564 = vmatprep.subr.mxu0 0.0
        %1565 = vmatpush2.msra.mxu0 0.0
        %1566 = vmatprep.subr.mxu0 0.0
        %1567 = vmatpush2.msra.mxu0 0.0
        %1568 = vmatprep.subr.mxu0 0.0
        %1569 = vmatpush2.msra.mxu0 0.0
        %1570 = vmatprep.subr.mxu0 0.0
        %1571 = vmatpush2.msra.mxu0 0.0
        %1572 = vmatprep.subr.mxu0 0.0
        %1573 = vmatpush2.msra.mxu0 0.0
        %1574 = vmatprep.subr.mxu0 0.0
        %1575 = vmatpush2.msra.mxu0 0.0
        %1576 = vmatprep.subr.mxu0 0.0
        %1577 = vmatpush2.msra.mxu0 0.0
        %1578 = vmatprep.subr.mxu0 0.0
        %1579 = vmatpush2.msra.mxu0 0.0
        %1580 = vmatprep.subr.mxu0 0.0
        %1581 = vmatpush2.msra.mxu0 0.0
        %1582 = vmatprep.subr.mxu0 0.0
        %1583 = vmatpush2.msra.mxu0 0.0
        %1584 = vmatprep.subr.mxu0 0.0
        %1585 = vmatpush2.msra.mxu0 0.0
        %1586 = vmatprep.subr.mxu0 0.0
        %1587 = vmatpush2.msra.mxu0 0.0
        %1588 = vmatprep.subr.mxu0 0.0
        %1589 = vmatpush2.msra.mxu0 0.0
        %1590 = vmatprep.subr.mxu0 0.0
        %1591 = vmatpush2.msra.mxu0 0.0
        %1592 = vmatprep.subr.mxu0 0.0
        %1593 = vmatpush2.msra.mxu0 0.0
        %1594 = vmatprep.mubr.f32.mxu0 0.0
        %1595 = vmatmul.mubr.f32.gmra.mxu0 %v1528
        %v1596 = vpop.f32.mrf.mxu0
        %v1597 = vadd.f32 0.0, %v1596
        %v1598 = vpop.f32.mrf.mxu0
        %1599 = vdwg.mxu0
        %v1601 = vsel %vm619, %v1526, 0
        %1603 = vmatprep.subr.mxu0 0.0
        %1604 = vmatpush1.msra.mxu0 0.0
        %1605 = vmatprep.subr.mxu0 0.0
        %1606 = vmatpush1.msra.mxu0 0.0
        %1607 = vmatprep.subr.mxu0 0.0
        %1608 = vmatpush1.msra.mxu0 0.0
        %1609 = vmatprep.subr.mxu0 0.0
        %1610 = vmatpush1.msra.mxu0 0.0
        %1611 = vmatprep.subr.mxu0 0.0
        %1612 = vmatpush1.msra.mxu0 0.0
        %1613 = vmatprep.subr.mxu0 0.0
        %1614 = vmatpush1.msra.mxu0 0.0
        %1615 = vmatprep.subr.mxu0 0.0
        %1616 = vmatpush1.msra.mxu0 0.0
        %1617 = vmatprep.subr.mxu0 0.0
        %1618 = vmatpush1.msra.mxu0 0.0
        %1619 = vmatprep.subr.mxu0 0.0
        %1620 = vmatpush1.msra.mxu0 0.0
        %1621 = vmatprep.subr.mxu0 0.0
        %1622 = vmatpush1.msra.mxu0 0.0
        %1623 = vmatprep.subr.mxu0 0.0
        %1624 = vmatpush1.msra.mxu0 0.0
        %1625 = vmatprep.subr.mxu0 0.0
        %1626 = vmatpush1.msra.mxu0 0.0
        %1627 = vmatprep.subr.mxu0 0.0
        %1628 = vmatpush1.msra.mxu0 0.0
        %1629 = vmatprep.subr.mxu0 0.0
        %1630 = vmatpush1.msra.mxu0 0.0
        %1631 = vmatprep.subr.mxu0 0.0
        %1632 = vmatpush1.msra.mxu0 %v253
        %1633 = vmatprep.subr.mxu0 0.0
        %1634 = vmatpush1.msra.mxu0 %v252
        %1635 = vmatprep.subr.mxu0 0.0
        %1636 = vmatpush2.msra.mxu0 0.0
        %1637 = vmatprep.subr.mxu0 0.0
        %1638 = vmatpush2.msra.mxu0 0.0
        %1639 = vmatprep.subr.mxu0 0.0
        %1640 = vmatpush2.msra.mxu0 0.0
        %1641 = vmatprep.subr.mxu0 0.0
        %1642 = vmatpush2.msra.mxu0 0.0
        %1643 = vmatprep.subr.mxu0 0.0
        %1644 = vmatpush2.msra.mxu0 0.0
        %1645 = vmatprep.subr.mxu0 0.0
        %1646 = vmatpush2.msra.mxu0 0.0
        %1647 = vmatprep.subr.mxu0 0.0
        %1648 = vmatpush2.msra.mxu0 0.0
        %1649 = vmatprep.subr.mxu0 0.0
        %1650 = vmatpush2.msra.mxu0 0.0
        %1651 = vmatprep.subr.mxu0 0.0
        %1652 = vmatpush2.msra.mxu0 0.0
        %1653 = vmatprep.subr.mxu0 0.0
        %1654 = vmatpush2.msra.mxu0 0.0
        %1655 = vmatprep.subr.mxu0 0.0
        %1656 = vmatpush2.msra.mxu0 0.0
        %1657 = vmatprep.subr.mxu0 0.0
        %1658 = vmatpush2.msra.mxu0 0.0
        %1659 = vmatprep.subr.mxu0 0.0
        %1660 = vmatpush2.msra.mxu0 0.0
        %1661 = vmatprep.subr.mxu0 0.0
        %1662 = vmatpush2.msra.mxu0 0.0
        %1663 = vmatprep.subr.mxu0 0.0
        %1664 = vmatpush2.msra.mxu0 0.0
        %1665 = vmatprep.subr.mxu0 0.0
        %1666 = vmatpush2.msra.mxu0 0.0
        %1667 = vmatprep.mubr.f32.mxu0 0.0
        %1668 = vmatmul.mubr.f32.gmra.mxu0 %v1601
        %v1669 = vpop.f32.mrf.mxu0
        %v1670 = vadd.f32 %v1597, %v1669
        %v1671 = vpop.f32.mrf.mxu0
        %1672 = vdwg.mxu0
        %v1673 = vadd.f32 %v1670, %v769
        %v1674 = vtanh.pop %v1673
        %v1676 = vsel %vm480, %v1674, 0
        %1678 = vmatprep.subr.mxu0 0.0
        %1679 = vmatpush1.msra.mxu0 0.0
        %1680 = vmatprep.subr.mxu0 0.0
        %1681 = vmatpush1.msra.mxu0 0.0
        %1682 = vmatprep.subr.mxu0 0.0
        %1683 = vmatpush1.msra.mxu0 0.0
        %1684 = vmatprep.subr.mxu0 0.0
        %1685 = vmatpush1.msra.mxu0 0.0
        %1686 = vmatprep.subr.mxu0 0.0
        %1687 = vmatpush1.msra.mxu0 0.0
        %1688 = vmatprep.subr.mxu0 0.0
        %1689 = vmatpush1.msra.mxu0 0.0
        %1690 = vmatprep.subr.mxu0 0.0
        %1691 = vmatpush1.msra.mxu0 0.0
        %1692 = vmatprep.subr.mxu0 0.0
        %1693 = vmatpush1.msra.mxu0 0.0
        %1694 = vmatprep.subr.mxu0 0.0
        %1695 = vmatpush1.msra.mxu0 0.0
        %1696 = vmatprep.subr.mxu0 0.0
        %1697 = vmatpush1.msra.mxu0 0.0
        %1698 = vmatprep.subr.mxu0 0.0
        %1699 = vmatpush1.msra.mxu0 0.0
        %1700 = vmatprep.subr.mxu0 0.0
        %1701 = vmatpush1.msra.mxu0 0.0
        %1702 = vmatprep.subr.mxu0 0.0
        %1703 = vmatpush1.msra.mxu0 0.0
        %1704 = vmatprep.subr.mxu0 0.0
        %1705 = vmatpush1.msra.mxu0 %v259
        %1706 = vmatprep.subr.mxu0 0.0
        %1707 = vmatpush1.msra.mxu0 %v258
        %1708 = vmatprep.subr.mxu0 0.0
        %1709 = vmatpush1.msra.mxu0 %v257
        %1710 = vmatprep.subr.mxu0 0.0
        %1711 = vmatpush2.msra.mxu0 0.0
        %1712 = vmatprep.subr.mxu0 0.0
        %1713 = vmatpush2.msra.mxu0 0.0
        %1714 = vmatprep.subr.mxu0 0.0
        %1715 = vmatpush2.msra.mxu0 0.0
        %1716 = vmatprep.subr.mxu0 0.0
        %1717 = vmatpush2.msra.mxu0 0.0
        %1718 = vmatprep.subr.mxu0 0.0
        %1719 = vmatpush2.msra.mxu0 0.0
        %1720 = vmatprep.subr.mxu0 0.0
        %1721 = vmatpush2.msra.mxu0 0.0
        %1722 = vmatprep.subr.mxu0 0.0
        %1723 = vmatpush2.msra.mxu0 0.0
        %1724 = vmatprep.subr.mxu0 0.0
        %1725 = vmatpush2.msra.mxu0 0.0
        %1726 = vmatprep.subr.mxu0 0.0
        %1727 = vmatpush2.msra.mxu0 0.0
        %1728 = vmatprep.subr.mxu0 0.0
        %1729 = vmatpush2.msra.mxu0 0.0
        %1730 = vmatprep.subr.mxu0 0.0
        %1731 = vmatpush2.msra.mxu0 0.0
        %1732 = vmatprep.subr.mxu0 0.0
        %1733 = vmatpush2.msra.mxu0 0.0
        %1734 = vmatprep.subr.mxu0 0.0
        %1735 = vmatpush2.msra.mxu0 0.0
        %1736 = vmatprep.subr.mxu0 0.0
        %1737 = vmatpush2.msra.mxu0 0.0
        %1738 = vmatprep.subr.mxu0 0.0
        %1739 = vmatpush2.msra.mxu0 0.0
        %1740 = vmatprep.subr.mxu0 0.0
        %1741 = vmatpush2.msra.mxu0 0.0
        %1742 = vmatprep.mubr.f32.mxu0 0.0
        %1743 = vmatmul.mubr.f32.gmra.mxu0 %v1676
        %v1744 = vpop.f32.mrf.mxu0
        %v1745 = vadd.f32 %v775, %v1744
        %v1746 = vpop.f32.mrf.mxu0
        %1747 = vdwg.mxu0
        %s1748 = scalar_lea.vmem [#allocation2], 32
        %1749 = vst.msk [vmem:[%s1748] sm:$0xff] %vm619, %v1745
        %s1750 = scalar_lea.vmem %s235, 40 [#allocation4]
        %v1751 = vld [vmem:[%s1750] sm:$0xff]
        %v1753 = vsel %vm619, %v1745, 0
        %1755 = vmatprep.subr.mxu0 0.0
        %1756 = vmatpush1.msra.mxu0 0.0
        %1757 = vmatprep.subr.mxu0 0.0
        %1758 = vmatpush1.msra.mxu0 0.0
        %1759 = vmatprep.subr.mxu0 0.0
        %1760 = vmatpush1.msra.mxu0 0.0
        %1761 = vmatprep.subr.mxu0 0.0
        %1762 = vmatpush1.msra.mxu0 0.0
        %1763 = vmatprep.subr.mxu0 0.0
        %1764 = vmatpush1.msra.mxu0 0.0
        %1765 = vmatprep.subr.mxu0 0.0
        %1766 = vmatpush1.msra.mxu0 0.0
        %1767 = vmatprep.subr.mxu0 0.0
        %1768 = vmatpush1.msra.mxu0 0.0
        %1769 = vmatprep.subr.mxu0 0.0
        %1770 = vmatpush1.msra.mxu0 0.0
        %1771 = vmatprep.subr.mxu0 0.0
        %1772 = vmatpush1.msra.mxu0 0.0
        %1773 = vmatprep.subr.mxu0 0.0
        %1774 = vmatpush1.msra.mxu0 0.0
        %1775 = vmatprep.subr.mxu0 0.0
        %1776 = vmatpush1.msra.mxu0 0.0
        %1777 = vmatprep.subr.mxu0 0.0
        %1778 = vmatpush1.msra.mxu0 0.0
        %1779 = vmatprep.subr.mxu0 0.0
        %1780 = vmatpush1.msra.mxu0 0.0
        %1781 = vmatprep.subr.mxu0 0.0
        %1782 = vmatpush1.msra.mxu0 0.0
        %1783 = vmatprep.subr.mxu0 0.0
        %1784 = vmatpush1.msra.mxu0 %v255
        %1785 = vmatprep.subr.mxu0 0.0
        %1786 = vmatpush1.msra.mxu0 %v254
        %1787 = vmatprep.subr.mxu0 0.0
        %1788 = vmatpush2.msra.mxu0 0.0
        %1789 = vmatprep.subr.mxu0 0.0
        %1790 = vmatpush2.msra.mxu0 0.0
        %1791 = vmatprep.subr.mxu0 0.0
        %1792 = vmatpush2.msra.mxu0 0.0
        %1793 = vmatprep.subr.mxu0 0.0
        %1794 = vmatpush2.msra.mxu0 0.0
        %1795 = vmatprep.subr.mxu0 0.0
        %1796 = vmatpush2.msra.mxu0 0.0
        %1797 = vmatprep.subr.mxu0 0.0
        %1798 = vmatpush2.msra.mxu0 0.0
        %1799 = vmatprep.subr.mxu0 0.0
        %1800 = vmatpush2.msra.mxu0 0.0
        %1801 = vmatprep.subr.mxu0 0.0
        %1802 = vmatpush2.msra.mxu0 0.0
        %1803 = vmatprep.subr.mxu0 0.0
        %1804 = vmatpush2.msra.mxu0 0.0
        %1805 = vmatprep.subr.mxu0 0.0
        %1806 = vmatpush2.msra.mxu0 0.0
        %1807 = vmatprep.subr.mxu0 0.0
        %1808 = vmatpush2.msra.mxu0 0.0
        %1809 = vmatprep.subr.mxu0 0.0
        %1810 = vmatpush2.msra.mxu0 0.0
        %1811 = vmatprep.subr.mxu0 0.0
        %1812 = vmatpush2.msra.mxu0 0.0
        %1813 = vmatprep.subr.mxu0 0.0
        %1814 = vmatpush2.msra.mxu0 0.0
        %1815 = vmatprep.subr.mxu0 0.0
        %1816 = vmatpush2.msra.mxu0 0.0
        %1817 = vmatprep.subr.mxu0 0.0
        %1818 = vmatpush2.msra.mxu0 0.0
        %1819 = vmatprep.mubr.f32.mxu0 0.0
        %1820 = vmatmul.mubr.f32.gmra.mxu0 %v1753
        %v1821 = vpop.f32.mrf.mxu0
        %v1822 = vadd.f32 0.0, %v1821
        %v1823 = vpop.f32.mrf.mxu0
        %1824 = vdwg.mxu0
        %v1826 = vsel %vm619, %v1751, 0
        %1828 = vmatprep.subr.mxu0 0.0
        %1829 = vmatpush1.msra.mxu0 0.0
        %1830 = vmatprep.subr.mxu0 0.0
        %1831 = vmatpush1.msra.mxu0 0.0
        %1832 = vmatprep.subr.mxu0 0.0
        %1833 = vmatpush1.msra.mxu0 0.0
        %1834 = vmatprep.subr.mxu0 0.0
        %1835 = vmatpush1.msra.mxu0 0.0
        %1836 = vmatprep.subr.mxu0 0.0
        %1837 = vmatpush1.msra.mxu0 0.0
        %1838 = vmatprep.subr.mxu0 0.0
        %1839 = vmatpush1.msra.mxu0 0.0
        %1840 = vmatprep.subr.mxu0 0.0
        %1841 = vmatpush1.msra.mxu0 0.0
        %1842 = vmatprep.subr.mxu0 0.0
        %1843 = vmatpush1.msra.mxu0 0.0
        %1844 = vmatprep.subr.mxu0 0.0
        %1845 = vmatpush1.msra.mxu0 0.0
        %1846 = vmatprep.subr.mxu0 0.0
        %1847 = vmatpush1.msra.mxu0 0.0
        %1848 = vmatprep.subr.mxu0 0.0
        %1849 = vmatpush1.msra.mxu0 0.0
        %1850 = vmatprep.subr.mxu0 0.0
        %1851 = vmatpush1.msra.mxu0 0.0
        %1852 = vmatprep.subr.mxu0 0.0
        %1853 = vmatpush1.msra.mxu0 0.0
        %1854 = vmatprep.subr.mxu0 0.0
        %1855 = vmatpush1.msra.mxu0 0.0
        %1856 = vmatprep.subr.mxu0 0.0
        %1857 = vmatpush1.msra.mxu0 %v253
        %1858 = vmatprep.subr.mxu0 0.0
        %1859 = vmatpush1.msra.mxu0 %v252
        %1860 = vmatprep.subr.mxu0 0.0
        %1861 = vmatpush2.msra.mxu0 0.0
        %1862 = vmatprep.subr.mxu0 0.0
        %1863 = vmatpush2.msra.mxu0 0.0
        %1864 = vmatprep.subr.mxu0 0.0
        %1865 = vmatpush2.msra.mxu0 0.0
        %1866 = vmatprep.subr.mxu0 0.0
        %1867 = vmatpush2.msra.mxu0 0.0
        %1868 = vmatprep.subr.mxu0 0.0
        %1869 = vmatpush2.msra.mxu0 0.0
        %1870 = vmatprep.subr.mxu0 0.0
        %1871 = vmatpush2.msra.mxu0 0.0
        %1872 = vmatprep.subr.mxu0 0.0
        %1873 = vmatpush2.msra.mxu0 0.0
        %1874 = vmatprep.subr.mxu0 0.0
        %1875 = vmatpush2.msra.mxu0 0.0
        %1876 = vmatprep.subr.mxu0 0.0
        %1877 = vmatpush2.msra.mxu0 0.0
        %1878 = vmatprep.subr.mxu0 0.0
        %1879 = vmatpush2.msra.mxu0 0.0
        %1880 = vmatprep.subr.mxu0 0.0
        %1881 = vmatpush2.msra.mxu0 0.0
        %1882 = vmatprep.subr.mxu0 0.0
        %1883 = vmatpush2.msra.mxu0 0.0
        %1884 = vmatprep.subr.mxu0 0.0
        %1885 = vmatpush2.msra.mxu0 0.0
        %1886 = vmatprep.subr.mxu0 0.0
        %1887 = vmatpush2.msra.mxu0 0.0
        %1888 = vmatprep.subr.mxu0 0.0
        %1889 = vmatpush2.msra.mxu0 0.0
        %1890 = vmatprep.subr.mxu0 0.0
        %1891 = vmatpush2.msra.mxu0 0.0
        %1892 = vmatprep.mubr.f32.mxu0 0.0
        %1893 = vmatmul.mubr.f32.gmra.mxu0 %v1826
        %v1894 = vpop.f32.mrf.mxu0
        %v1895 = vadd.f32 %v1822, %v1894
        %v1896 = vpop.f32.mrf.mxu0
        %1897 = vdwg.mxu0
        %v1898 = vadd.f32 %v1895, %v769
        %v1899 = vtanh.pop %v1898
        %v1901 = vsel %vm480, %v1899, 0
        %1903 = vmatprep.subr.mxu0 0.0
        %1904 = vmatpush1.msra.mxu0 0.0
        %1905 = vmatprep.subr.mxu0 0.0
        %1906 = vmatpush1.msra.mxu0 0.0
        %1907 = vmatprep.subr.mxu0 0.0
        %1908 = vmatpush1.msra.mxu0 0.0
        %1909 = vmatprep.subr.mxu0 0.0
        %1910 = vmatpush1.msra.mxu0 0.0
        %1911 = vmatprep.subr.mxu0 0.0
        %1912 = vmatpush1.msra.mxu0 0.0
        %1913 = vmatprep.subr.mxu0 0.0
        %1914 = vmatpush1.msra.mxu0 0.0
        %1915 = vmatprep.subr.mxu0 0.0
        %1916 = vmatpush1.msra.mxu0 0.0
        %1917 = vmatprep.subr.mxu0 0.0
        %1918 = vmatpush1.msra.mxu0 0.0
        %1919 = vmatprep.subr.mxu0 0.0
        %1920 = vmatpush1.msra.mxu0 0.0
        %1921 = vmatprep.subr.mxu0 0.0
        %1922 = vmatpush1.msra.mxu0 0.0
        %1923 = vmatprep.subr.mxu0 0.0
        %1924 = vmatpush1.msra.mxu0 0.0
        %1925 = vmatprep.subr.mxu0 0.0
        %1926 = vmatpush1.msra.mxu0 0.0
        %1927 = vmatprep.subr.mxu0 0.0
        %1928 = vmatpush1.msra.mxu0 0.0
        %1929 = vmatprep.subr.mxu0 0.0
        %1930 = vmatpush1.msra.mxu0 %v259
        %1931 = vmatprep.subr.mxu0 0.0
        %1932 = vmatpush1.msra.mxu0 %v258
        %1933 = vmatprep.subr.mxu0 0.0
        %1934 = vmatpush1.msra.mxu0 %v257
        %1935 = vmatprep.subr.mxu0 0.0
        %1936 = vmatpush2.msra.mxu0 0.0
        %1937 = vmatprep.subr.mxu0 0.0
        %1938 = vmatpush2.msra.mxu0 0.0
        %1939 = vmatprep.subr.mxu0 0.0
        %1940 = vmatpush2.msra.mxu0 0.0
        %1941 = vmatprep.subr.mxu0 0.0
        %1942 = vmatpush2.msra.mxu0 0.0
        %1943 = vmatprep.subr.mxu0 0.0
        %1944 = vmatpush2.msra.mxu0 0.0
        %1945 = vmatprep.subr.mxu0 0.0
        %1946 = vmatpush2.msra.mxu0 0.0
        %1947 = vmatprep.subr.mxu0 0.0
        %1948 = vmatpush2.msra.mxu0 0.0
        %1949 = vmatprep.subr.mxu0 0.0
        %1950 = vmatpush2.msra.mxu0 0.0
        %1951 = vmatprep.subr.mxu0 0.0
        %1952 = vmatpush2.msra.mxu0 0.0
        %1953 = vmatprep.subr.mxu0 0.0
        %1954 = vmatpush2.msra.mxu0 0.0
        %1955 = vmatprep.subr.mxu0 0.0
        %1956 = vmatpush2.msra.mxu0 0.0
        %1957 = vmatprep.subr.mxu0 0.0
        %1958 = vmatpush2.msra.mxu0 0.0
        %1959 = vmatprep.subr.mxu0 0.0
        %1960 = vmatpush2.msra.mxu0 0.0
        %1961 = vmatprep.subr.mxu0 0.0
        %1962 = vmatpush2.msra.mxu0 0.0
        %1963 = vmatprep.subr.mxu0 0.0
        %1964 = vmatpush2.msra.mxu0 0.0
        %1965 = vmatprep.subr.mxu0 0.0
        %1966 = vmatpush2.msra.mxu0 0.0
        %1967 = vmatprep.mubr.f32.mxu0 0.0
        %1968 = vmatmul.mubr.f32.gmra.mxu0 %v1901
        %v1969 = vpop.f32.mrf.mxu0
        %v1970 = vadd.f32 %v775, %v1969
        %v1971 = vpop.f32.mrf.mxu0
        %1972 = vdwg.mxu0
        %s1973 = scalar_lea.vmem [#allocation2], 40
        %1974 = vst.msk [vmem:[%s1973] sm:$0xff] %vm619, %v1970
        %s1975 = scalar_lea.vmem %s235, 48 [#allocation4]
        %v1976 = vld [vmem:[%s1975] sm:$0xff]
        %v1978 = vsel %vm619, %v1970, 0
        %1980 = vmatprep.subr.mxu0 0.0
        %1981 = vmatpush1.msra.mxu0 0.0
        %1982 = vmatprep.subr.mxu0 0.0
        %1983 = vmatpush1.msra.mxu0 0.0
        %1984 = vmatprep.subr.mxu0 0.0
        %1985 = vmatpush1.msra.mxu0 0.0
        %1986 = vmatprep.subr.mxu0 0.0
        %1987 = vmatpush1.msra.mxu0 0.0
        %1988 = vmatprep.subr.mxu0 0.0
        %1989 = vmatpush1.msra.mxu0 0.0
        %1990 = vmatprep.subr.mxu0 0.0
        %1991 = vmatpush1.msra.mxu0 0.0
        %1992 = vmatprep.subr.mxu0 0.0
        %1993 = vmatpush1.msra.mxu0 0.0
        %1994 = vmatprep.subr.mxu0 0.0
        %1995 = vmatpush1.msra.mxu0 0.0
        %1996 = vmatprep.subr.mxu0 0.0
        %1997 = vmatpush1.msra.mxu0 0.0
        %1998 = vmatprep.subr.mxu0 0.0
        %1999 = vmatpush1.msra.mxu0 0.0
        %2000 = vmatprep.subr.mxu0 0.0
        %2001 = vmatpush1.msra.mxu0 0.0
        %2002 = vmatprep.subr.mxu0 0.0
        %2003 = vmatpush1.msra.mxu0 0.0
        %2004 = vmatprep.subr.mxu0 0.0
        %2005 = vmatpush1.msra.mxu0 0.0
        %2006 = vmatprep.subr.mxu0 0.0
        %2007 = vmatpush1.msra.mxu0 0.0
        %2008 = vmatprep.subr.mxu0 0.0
        %2009 = vmatpush1.msra.mxu0 %v255
        %2010 = vmatprep.subr.mxu0 0.0
        %2011 = vmatpush1.msra.mxu0 %v254
        %2012 = vmatprep.subr.mxu0 0.0
        %2013 = vmatpush2.msra.mxu0 0.0
        %2014 = vmatprep.subr.mxu0 0.0
        %2015 = vmatpush2.msra.mxu0 0.0
        %2016 = vmatprep.subr.mxu0 0.0
        %2017 = vmatpush2.msra.mxu0 0.0
        %2018 = vmatprep.subr.mxu0 0.0
        %2019 = vmatpush2.msra.mxu0 0.0
        %2020 = vmatprep.subr.mxu0 0.0
        %2021 = vmatpush2.msra.mxu0 0.0
        %2022 = vmatprep.subr.mxu0 0.0
        %2023 = vmatpush2.msra.mxu0 0.0
        %2024 = vmatprep.subr.mxu0 0.0
        %2025 = vmatpush2.msra.mxu0 0.0
        %2026 = vmatprep.subr.mxu0 0.0
        %2027 = vmatpush2.msra.mxu0 0.0
        %2028 = vmatprep.subr.mxu0 0.0
        %2029 = vmatpush2.msra.mxu0 0.0
        %2030 = vmatprep.subr.mxu0 0.0
        %2031 = vmatpush2.msra.mxu0 0.0
        %2032 = vmatprep.subr.mxu0 0.0
        %2033 = vmatpush2.msra.mxu0 0.0
        %2034 = vmatprep.subr.mxu0 0.0
        %2035 = vmatpush2.msra.mxu0 0.0
        %2036 = vmatprep.subr.mxu0 0.0
        %2037 = vmatpush2.msra.mxu0 0.0
        %2038 = vmatprep.subr.mxu0 0.0
        %2039 = vmatpush2.msra.mxu0 0.0
        %2040 = vmatprep.subr.mxu0 0.0
        %2041 = vmatpush2.msra.mxu0 0.0
        %2042 = vmatprep.subr.mxu0 0.0
        %2043 = vmatpush2.msra.mxu0 0.0
        %2044 = vmatprep.mubr.f32.mxu0 0.0
        %2045 = vmatmul.mubr.f32.gmra.mxu0 %v1978
        %v2046 = vpop.f32.mrf.mxu0
        %v2047 = vadd.f32 0.0, %v2046
        %v2048 = vpop.f32.mrf.mxu0
        %2049 = vdwg.mxu0
        %v2051 = vsel %vm619, %v1976, 0
        %2053 = vmatprep.subr.mxu0 0.0
        %2054 = vmatpush1.msra.mxu0 0.0
        %2055 = vmatprep.subr.mxu0 0.0
        %2056 = vmatpush1.msra.mxu0 0.0
        %2057 = vmatprep.subr.mxu0 0.0
        %2058 = vmatpush1.msra.mxu0 0.0
        %2059 = vmatprep.subr.mxu0 0.0
        %2060 = vmatpush1.msra.mxu0 0.0
        %2061 = vmatprep.subr.mxu0 0.0
        %2062 = vmatpush1.msra.mxu0 0.0
        %2063 = vmatprep.subr.mxu0 0.0
        %2064 = vmatpush1.msra.mxu0 0.0
        %2065 = vmatprep.subr.mxu0 0.0
        %2066 = vmatpush1.msra.mxu0 0.0
        %2067 = vmatprep.subr.mxu0 0.0
        %2068 = vmatpush1.msra.mxu0 0.0
        %2069 = vmatprep.subr.mxu0 0.0
        %2070 = vmatpush1.msra.mxu0 0.0
        %2071 = vmatprep.subr.mxu0 0.0
        %2072 = vmatpush1.msra.mxu0 0.0
        %2073 = vmatprep.subr.mxu0 0.0
        %2074 = vmatpush1.msra.mxu0 0.0
        %2075 = vmatprep.subr.mxu0 0.0
        %2076 = vmatpush1.msra.mxu0 0.0
        %2077 = vmatprep.subr.mxu0 0.0
        %2078 = vmatpush1.msra.mxu0 0.0
        %2079 = vmatprep.subr.mxu0 0.0
        %2080 = vmatpush1.msra.mxu0 0.0
        %2081 = vmatprep.subr.mxu0 0.0
        %2082 = vmatpush1.msra.mxu0 %v253
        %2083 = vmatprep.subr.mxu0 0.0
        %2084 = vmatpush1.msra.mxu0 %v252
        %2085 = vmatprep.subr.mxu0 0.0
        %2086 = vmatpush2.msra.mxu0 0.0
        %2087 = vmatprep.subr.mxu0 0.0
        %2088 = vmatpush2.msra.mxu0 0.0
        %2089 = vmatprep.subr.mxu0 0.0
        %2090 = vmatpush2.msra.mxu0 0.0
        %2091 = vmatprep.subr.mxu0 0.0
        %2092 = vmatpush2.msra.mxu0 0.0
        %2093 = vmatprep.subr.mxu0 0.0
        %2094 = vmatpush2.msra.mxu0 0.0
        %2095 = vmatprep.subr.mxu0 0.0
        %2096 = vmatpush2.msra.mxu0 0.0
        %2097 = vmatprep.subr.mxu0 0.0
        %2098 = vmatpush2.msra.mxu0 0.0
        %2099 = vmatprep.subr.mxu0 0.0
        %2100 = vmatpush2.msra.mxu0 0.0
        %2101 = vmatprep.subr.mxu0 0.0
        %2102 = vmatpush2.msra.mxu0 0.0
        %2103 = vmatprep.subr.mxu0 0.0
        %2104 = vmatpush2.msra.mxu0 0.0
        %2105 = vmatprep.subr.mxu0 0.0
        %2106 = vmatpush2.msra.mxu0 0.0
        %2107 = vmatprep.subr.mxu0 0.0
        %2108 = vmatpush2.msra.mxu0 0.0
        %2109 = vmatprep.subr.mxu0 0.0
        %2110 = vmatpush2.msra.mxu0 0.0
        %2111 = vmatprep.subr.mxu0 0.0
        %2112 = vmatpush2.msra.mxu0 0.0
        %2113 = vmatprep.subr.mxu0 0.0
        %2114 = vmatpush2.msra.mxu0 0.0
        %2115 = vmatprep.subr.mxu0 0.0
        %2116 = vmatpush2.msra.mxu0 0.0
        %2117 = vmatprep.mubr.f32.mxu0 0.0
        %2118 = vmatmul.mubr.f32.gmra.mxu0 %v2051
        %v2119 = vpop.f32.mrf.mxu0
        %v2120 = vadd.f32 %v2047, %v2119
        %v2121 = vpop.f32.mrf.mxu0
        %2122 = vdwg.mxu0
        %v2123 = vadd.f32 %v2120, %v769
        %v2124 = vtanh.pop %v2123
        %v2126 = vsel %vm480, %v2124, 0
        %2128 = vmatprep.subr.mxu0 0.0
        %2129 = vmatpush1.msra.mxu0 0.0
        %2130 = vmatprep.subr.mxu0 0.0
        %2131 = vmatpush1.msra.mxu0 0.0
        %2132 = vmatprep.subr.mxu0 0.0
        %2133 = vmatpush1.msra.mxu0 0.0
        %2134 = vmatprep.subr.mxu0 0.0
        %2135 = vmatpush1.msra.mxu0 0.0
        %2136 = vmatprep.subr.mxu0 0.0
        %2137 = vmatpush1.msra.mxu0 0.0
        %2138 = vmatprep.subr.mxu0 0.0
        %2139 = vmatpush1.msra.mxu0 0.0
        %2140 = vmatprep.subr.mxu0 0.0
        %2141 = vmatpush1.msra.mxu0 0.0
        %2142 = vmatprep.subr.mxu0 0.0
        %2143 = vmatpush1.msra.mxu0 0.0
        %2144 = vmatprep.subr.mxu0 0.0
        %2145 = vmatpush1.msra.mxu0 0.0
        %2146 = vmatprep.subr.mxu0 0.0
        %2147 = vmatpush1.msra.mxu0 0.0
        %2148 = vmatprep.subr.mxu0 0.0
        %2149 = vmatpush1.msra.mxu0 0.0
        %2150 = vmatprep.subr.mxu0 0.0
        %2151 = vmatpush1.msra.mxu0 0.0
        %2152 = vmatprep.subr.mxu0 0.0
        %2153 = vmatpush1.msra.mxu0 0.0
        %2154 = vmatprep.subr.mxu0 0.0
        %2155 = vmatpush1.msra.mxu0 %v259
        %2156 = vmatprep.subr.mxu0 0.0
        %2157 = vmatpush1.msra.mxu0 %v258
        %2158 = vmatprep.subr.mxu0 0.0
        %2159 = vmatpush1.msra.mxu0 %v257
        %2160 = vmatprep.subr.mxu0 0.0
        %2161 = vmatpush2.msra.mxu0 0.0
        %2162 = vmatprep.subr.mxu0 0.0
        %2163 = vmatpush2.msra.mxu0 0.0
        %2164 = vmatprep.subr.mxu0 0.0
        %2165 = vmatpush2.msra.mxu0 0.0
        %2166 = vmatprep.subr.mxu0 0.0
        %2167 = vmatpush2.msra.mxu0 0.0
        %2168 = vmatprep.subr.mxu0 0.0
        %2169 = vmatpush2.msra.mxu0 0.0
        %2170 = vmatprep.subr.mxu0 0.0
        %2171 = vmatpush2.msra.mxu0 0.0
        %2172 = vmatprep.subr.mxu0 0.0
        %2173 = vmatpush2.msra.mxu0 0.0
        %2174 = vmatprep.subr.mxu0 0.0
        %2175 = vmatpush2.msra.mxu0 0.0
        %2176 = vmatprep.subr.mxu0 0.0
        %2177 = vmatpush2.msra.mxu0 0.0
        %2178 = vmatprep.subr.mxu0 0.0
        %2179 = vmatpush2.msra.mxu0 0.0
        %2180 = vmatprep.subr.mxu0 0.0
        %2181 = vmatpush2.msra.mxu0 0.0
        %2182 = vmatprep.subr.mxu0 0.0
        %2183 = vmatpush2.msra.mxu0 0.0
        %2184 = vmatprep.subr.mxu0 0.0
        %2185 = vmatpush2.msra.mxu0 0.0
        %2186 = vmatprep.subr.mxu0 0.0
        %2187 = vmatpush2.msra.mxu0 0.0
        %2188 = vmatprep.subr.mxu0 0.0
        %2189 = vmatpush2.msra.mxu0 0.0
        %2190 = vmatprep.subr.mxu0 0.0
        %2191 = vmatpush2.msra.mxu0 0.0
        %2192 = vmatprep.mubr.f32.mxu0 0.0
        %2193 = vmatmul.mubr.f32.gmra.mxu0 %v2126
        %v2194 = vpop.f32.mrf.mxu0
        %v2195 = vadd.f32 %v775, %v2194
        %v2196 = vpop.f32.mrf.mxu0
        %2197 = vdwg.mxu0
        %s2198 = scalar_lea.vmem [#allocation2], 48
        %2199 = vst.msk [vmem:[%s2198] sm:$0xff] %vm619, %v2195
        %s2200 = scalar_lea.vmem %s235, 56 [#allocation4]
        %v2201 = vld [vmem:[%s2200] sm:$0xff]
        %v2203 = vsel %vm619, %v2195, 0
        %2205 = vmatprep.subr.mxu0 0.0
        %2206 = vmatpush1.msra.mxu0 0.0
        %2207 = vmatprep.subr.mxu0 0.0
        %2208 = vmatpush1.msra.mxu0 0.0
        %2209 = vmatprep.subr.mxu0 0.0
        %2210 = vmatpush1.msra.mxu0 0.0
        %2211 = vmatprep.subr.mxu0 0.0
        %2212 = vmatpush1.msra.mxu0 0.0
        %2213 = vmatprep.subr.mxu0 0.0
        %2214 = vmatpush1.msra.mxu0 0.0
        %2215 = vmatprep.subr.mxu0 0.0
        %2216 = vmatpush1.msra.mxu0 0.0
        %2217 = vmatprep.subr.mxu0 0.0
        %2218 = vmatpush1.msra.mxu0 0.0
        %2219 = vmatprep.subr.mxu0 0.0
        %2220 = vmatpush1.msra.mxu0 0.0
        %2221 = vmatprep.subr.mxu0 0.0
        %2222 = vmatpush1.msra.mxu0 0.0
        %2223 = vmatprep.subr.mxu0 0.0
        %2224 = vmatpush1.msra.mxu0 0.0
        %2225 = vmatprep.subr.mxu0 0.0
        %2226 = vmatpush1.msra.mxu0 0.0
        %2227 = vmatprep.subr.mxu0 0.0
        %2228 = vmatpush1.msra.mxu0 0.0
        %2229 = vmatprep.subr.mxu0 0.0
        %2230 = vmatpush1.msra.mxu0 0.0
        %2231 = vmatprep.subr.mxu0 0.0
        %2232 = vmatpush1.msra.mxu0 0.0
        %2233 = vmatprep.subr.mxu0 0.0
        %2234 = vmatpush1.msra.mxu0 %v255
        %2235 = vmatprep.subr.mxu0 0.0
        %2236 = vmatpush1.msra.mxu0 %v254
        %2237 = vmatprep.subr.mxu0 0.0
        %2238 = vmatpush2.msra.mxu0 0.0
        %2239 = vmatprep.subr.mxu0 0.0
        %2240 = vmatpush2.msra.mxu0 0.0
        %2241 = vmatprep.subr.mxu0 0.0
        %2242 = vmatpush2.msra.mxu0 0.0
        %2243 = vmatprep.subr.mxu0 0.0
        %2244 = vmatpush2.msra.mxu0 0.0
        %2245 = vmatprep.subr.mxu0 0.0
        %2246 = vmatpush2.msra.mxu0 0.0
        %2247 = vmatprep.subr.mxu0 0.0
        %2248 = vmatpush2.msra.mxu0 0.0
        %2249 = vmatprep.subr.mxu0 0.0
        %2250 = vmatpush2.msra.mxu0 0.0
        %2251 = vmatprep.subr.mxu0 0.0
        %2252 = vmatpush2.msra.mxu0 0.0
        %2253 = vmatprep.subr.mxu0 0.0
        %2254 = vmatpush2.msra.mxu0 0.0
        %2255 = vmatprep.subr.mxu0 0.0
        %2256 = vmatpush2.msra.mxu0 0.0
        %2257 = vmatprep.subr.mxu0 0.0
        %2258 = vmatpush2.msra.mxu0 0.0
        %2259 = vmatprep.subr.mxu0 0.0
        %2260 = vmatpush2.msra.mxu0 0.0
        %2261 = vmatprep.subr.mxu0 0.0
        %2262 = vmatpush2.msra.mxu0 0.0
        %2263 = vmatprep.subr.mxu0 0.0
        %2264 = vmatpush2.msra.mxu0 0.0
        %2265 = vmatprep.subr.mxu0 0.0
        %2266 = vmatpush2.msra.mxu0 0.0
        %2267 = vmatprep.subr.mxu0 0.0
        %2268 = vmatpush2.msra.mxu0 0.0
        %2269 = vmatprep.mubr.f32.mxu0 0.0
        %2270 = vmatmul.mubr.f32.gmra.mxu0 %v2203
        %v2271 = vpop.f32.mrf.mxu0
        %v2272 = vadd.f32 0.0, %v2271
        %v2273 = vpop.f32.mrf.mxu0
        %2274 = vdwg.mxu0
        %v2276 = vsel %vm619, %v2201, 0
        %2278 = vmatprep.subr.mxu0 0.0
        %2279 = vmatpush1.msra.mxu0 0.0
        %2280 = vmatprep.subr.mxu0 0.0
        %2281 = vmatpush1.msra.mxu0 0.0
        %2282 = vmatprep.subr.mxu0 0.0
        %2283 = vmatpush1.msra.mxu0 0.0
        %2284 = vmatprep.subr.mxu0 0.0
        %2285 = vmatpush1.msra.mxu0 0.0
        %2286 = vmatprep.subr.mxu0 0.0
        %2287 = vmatpush1.msra.mxu0 0.0
        %2288 = vmatprep.subr.mxu0 0.0
        %2289 = vmatpush1.msra.mxu0 0.0
        %2290 = vmatprep.subr.mxu0 0.0
        %2291 = vmatpush1.msra.mxu0 0.0
        %2292 = vmatprep.subr.mxu0 0.0
        %2293 = vmatpush1.msra.mxu0 0.0
        %2294 = vmatprep.subr.mxu0 0.0
        %2295 = vmatpush1.msra.mxu0 0.0
        %2296 = vmatprep.subr.mxu0 0.0
        %2297 = vmatpush1.msra.mxu0 0.0
        %2298 = vmatprep.subr.mxu0 0.0
        %2299 = vmatpush1.msra.mxu0 0.0
        %2300 = vmatprep.subr.mxu0 0.0
        %2301 = vmatpush1.msra.mxu0 0.0
        %2302 = vmatprep.subr.mxu0 0.0
        %2303 = vmatpush1.msra.mxu0 0.0
        %2304 = vmatprep.subr.mxu0 0.0
        %2305 = vmatpush1.msra.mxu0 0.0
        %2306 = vmatprep.subr.mxu0 0.0
        %2307 = vmatpush1.msra.mxu0 %v253
        %2308 = vmatprep.subr.mxu0 0.0
        %2309 = vmatpush1.msra.mxu0 %v252
        %2310 = vmatprep.subr.mxu0 0.0
        %2311 = vmatpush2.msra.mxu0 0.0
        %2312 = vmatprep.subr.mxu0 0.0
        %2313 = vmatpush2.msra.mxu0 0.0
        %2314 = vmatprep.subr.mxu0 0.0
        %2315 = vmatpush2.msra.mxu0 0.0
        %2316 = vmatprep.subr.mxu0 0.0
        %2317 = vmatpush2.msra.mxu0 0.0
        %2318 = vmatprep.subr.mxu0 0.0
        %2319 = vmatpush2.msra.mxu0 0.0
        %2320 = vmatprep.subr.mxu0 0.0
        %2321 = vmatpush2.msra.mxu0 0.0
        %2322 = vmatprep.subr.mxu0 0.0
        %2323 = vmatpush2.msra.mxu0 0.0
        %2324 = vmatprep.subr.mxu0 0.0
        %2325 = vmatpush2.msra.mxu0 0.0
        %2326 = vmatprep.subr.mxu0 0.0
        %2327 = vmatpush2.msra.mxu0 0.0
        %2328 = vmatprep.subr.mxu0 0.0
        %2329 = vmatpush2.msra.mxu0 0.0
        %2330 = vmatprep.subr.mxu0 0.0
        %2331 = vmatpush2.msra.mxu0 0.0
        %2332 = vmatprep.subr.mxu0 0.0
        %2333 = vmatpush2.msra.mxu0 0.0
        %2334 = vmatprep.subr.mxu0 0.0
        %2335 = vmatpush2.msra.mxu0 0.0
        %2336 = vmatprep.subr.mxu0 0.0
        %2337 = vmatpush2.msra.mxu0 0.0
        %2338 = vmatprep.subr.mxu0 0.0
        %2339 = vmatpush2.msra.mxu0 0.0
        %2340 = vmatprep.subr.mxu0 0.0
        %2341 = vmatpush2.msra.mxu0 0.0
        %2342 = vmatprep.mubr.f32.mxu0 0.0
        %2343 = vmatmul.mubr.f32.gmra.mxu0 %v2276
        %v2344 = vpop.f32.mrf.mxu0
        %v2345 = vadd.f32 %v2272, %v2344
        %v2346 = vpop.f32.mrf.mxu0
        %2347 = vdwg.mxu0
        %v2348 = vadd.f32 %v2345, %v769
        %v2349 = vtanh.pop %v2348
        %v2351 = vsel %vm480, %v2349, 0
        %2353 = vmatprep.subr.mxu0 0.0
        %2354 = vmatpush1.msra.mxu0 0.0
        %2355 = vmatprep.subr.mxu0 0.0
        %2356 = vmatpush1.msra.mxu0 0.0
        %2357 = vmatprep.subr.mxu0 0.0
        %2358 = vmatpush1.msra.mxu0 0.0
        %2359 = vmatprep.subr.mxu0 0.0
        %2360 = vmatpush1.msra.mxu0 0.0
        %2361 = vmatprep.subr.mxu0 0.0
        %2362 = vmatpush1.msra.mxu0 0.0
        %2363 = vmatprep.subr.mxu0 0.0
        %2364 = vmatpush1.msra.mxu0 0.0
        %2365 = vmatprep.subr.mxu0 0.0
        %2366 = vmatpush1.msra.mxu0 0.0
        %2367 = vmatprep.subr.mxu0 0.0
        %2368 = vmatpush1.msra.mxu0 0.0
        %2369 = vmatprep.subr.mxu0 0.0
        %2370 = vmatpush1.msra.mxu0 0.0
        %2371 = vmatprep.subr.mxu0 0.0
        %2372 = vmatpush1.msra.mxu0 0.0
        %2373 = vmatprep.subr.mxu0 0.0
        %2374 = vmatpush1.msra.mxu0 0.0
        %2375 = vmatprep.subr.mxu0 0.0
        %2376 = vmatpush1.msra.mxu0 0.0
        %2377 = vmatprep.subr.mxu0 0.0
        %2378 = vmatpush1.msra.mxu0 0.0
        %2379 = vmatprep.subr.mxu0 0.0
        %2380 = vmatpush1.msra.mxu0 %v259
        %2381 = vmatprep.subr.mxu0 0.0
        %2382 = vmatpush1.msra.mxu0 %v258
        %2383 = vmatprep.subr.mxu0 0.0
        %2384 = vmatpush1.msra.mxu0 %v257
        %2385 = vmatprep.subr.mxu0 0.0
        %2386 = vmatpush2.msra.mxu0 0.0
        %2387 = vmatprep.subr.mxu0 0.0
        %2388 = vmatpush2.msra.mxu0 0.0
        %2389 = vmatprep.subr.mxu0 0.0
        %2390 = vmatpush2.msra.mxu0 0.0
        %2391 = vmatprep.subr.mxu0 0.0
        %2392 = vmatpush2.msra.mxu0 0.0
        %2393 = vmatprep.subr.mxu0 0.0
        %2394 = vmatpush2.msra.mxu0 0.0
        %2395 = vmatprep.subr.mxu0 0.0
        %2396 = vmatpush2.msra.mxu0 0.0
        %2397 = vmatprep.subr.mxu0 0.0
        %2398 = vmatpush2.msra.mxu0 0.0
        %2399 = vmatprep.subr.mxu0 0.0
        %2400 = vmatpush2.msra.mxu0 0.0
        %2401 = vmatprep.subr.mxu0 0.0
        %2402 = vmatpush2.msra.mxu0 0.0
        %2403 = vmatprep.subr.mxu0 0.0
        %2404 = vmatpush2.msra.mxu0 0.0
        %2405 = vmatprep.subr.mxu0 0.0
        %2406 = vmatpush2.msra.mxu0 0.0
        %2407 = vmatprep.subr.mxu0 0.0
        %2408 = vmatpush2.msra.mxu0 0.0
        %2409 = vmatprep.subr.mxu0 0.0
        %2410 = vmatpush2.msra.mxu0 0.0
        %2411 = vmatprep.subr.mxu0 0.0
        %2412 = vmatpush2.msra.mxu0 0.0
        %2413 = vmatprep.subr.mxu0 0.0
        %2414 = vmatpush2.msra.mxu0 0.0
        %2415 = vmatprep.subr.mxu0 0.0
        %2416 = vmatpush2.msra.mxu0 0.0
        %2417 = vmatprep.mubr.f32.mxu0 0.0
        %2418 = vmatmul.mubr.f32.gmra.mxu0 %v2351
        %v2419 = vpop.f32.mrf.mxu0
        %v2420 = vadd.f32 %v775, %v2419
        %v2421 = vpop.f32.mrf.mxu0
        %2422 = vdwg.mxu0
        %s2423 = scalar_lea.vmem [#allocation2], 56
        %2424 = vst.msk [vmem:[%s2423] sm:$0xff] %vm619, %v2420
        %v2425 = vld [vmem:[#allocation2] sm:$0xff]
        %v2426 = vld [vmem:[#allocation2 + $0x8] sm:$0xff]
        %v2427 = vld [vmem:[#allocation2 + $0x10] sm:$0xff]
        %v2428 = vld [vmem:[#allocation2 + $0x18] sm:$0xff]
        %v2429 = vld [vmem:[#allocation2 + $0x20] sm:$0xff]
        %v2430 = vld [vmem:[#allocation2 + $0x28] sm:$0xff]
        %v2431 = vld [vmem:[#allocation2 + $0x30] sm:$0xff]
        %v2432 = vld [vmem:[#allocation2 + $0x38] sm:$0xff]
        %v2435 = vunpack.c.l.s4 1966171168
        %v2436 = vunpack.c.0.s8 %v2435
        %v2437 = vlaneseq
        %v2438 = vshrl.u32 %v2437, 7
        %v2439 = vsub.s32 %v2436, %v2438
        %v2440 = vrot.slane %v268, %v2439
        %v2441 = vcombine.high %v2440, %v2440
        %v2443 = vunpack.c.l.s4 1966171168
        %v2444 = vunpack.c.0.s8 %v2443
        %v2445 = vlaneseq
        %v2446 = vshrl.u32 %v2445, 7
        %v2447 = vsub.s32 %v2444, %v2446
        %v2448 = vrot.slane %v2440, %v2447
        %v2450 = vunpack.c.l.s4 1966171168
        %v2451 = vunpack.c.0.s8 %v2450
        %v2452 = vlaneseq
        %v2453 = vshrl.u32 %v2452, 7
        %v2454 = vsub.s32 %v2451, %v2453
        %v2455 = vrot.slane %v2441, %v2454
        %v2456 = vlaneseq
        %v2457 = vshrl.u32 %v2456, 7
        %v2458 = vsub.s32 0, %v2457
        %v2459 = vrot.slane %v2448, %v2458
        %v2460 = vlaneseq
        %v2461 = vshrl.u32 %v2460, 7
        %v2462 = vsub.s32 0, %v2461
        %v2463 = vrot.slane %v2455, %v2462
        %v2466 = vmul.f32 %v2459, %v2425
        %v2467 = vmul.f32 %v2463, %v2425
        %v2468 = vmul.f32 %v2459, %v2426
        %v2469 = vmul.f32 %v2463, %v2426
        %v2470 = vmul.f32 %v2459, %v2427
        %v2471 = vmul.f32 %v2463, %v2427
        %v2472 = vmul.f32 %v2459, %v2428
        %v2473 = vmul.f32 %v2463, %v2428
        %v2474 = vmul.f32 %v2459, %v2429
        %v2475 = vmul.f32 %v2463, %v2429
        %v2476 = vmul.f32 %v2459, %v2430
        %v2477 = vmul.f32 %v2463, %v2430
        %v2478 = vmul.f32 %v2459, %v2431
        %v2479 = vmul.f32 %v2463, %v2431
        %v2480 = vmul.f32 %v2459, %v2432
        %v2481 = vmul.f32 %v2463, %v2432
        %v2482 = vlaneseq
        %v2483 = vshrl.u32 %v2482, 7
        %v2484 = vsub.s32 0, %v2483
        %v2485 = vrot.slane %v263, %v2484
        %v2487 = vsel %vm619, %v2466, 0
        %v2490 = vsel %vm619, %v2467, 0
        %v2493 = vsel %vm619, %v2468, 0
        %v2496 = vsel %vm619, %v2469, 0
        %v2499 = vsel %vm619, %v2470, 0
        %v2502 = vsel %vm619, %v2471, 0
        %v2505 = vsel %vm619, %v2472, 0
        %v2508 = vsel %vm619, %v2473, 0
        %v2511 = vsel %vm619, %v2474, 0
        %v2514 = vsel %vm619, %v2475, 0
        %v2517 = vsel %vm619, %v2476, 0
        %v2520 = vsel %vm619, %v2477, 0
        %v2523 = vsel %vm619, %v2478, 0
        %v2526 = vsel %vm619, %v2479, 0
        %v2529 = vsel %vm619, %v2480, 0
        %v2532 = vsel %vm619, %v2481, 0
        %2534 = vmatprep.subr.mxu0 0.0
        %2535 = vmatpush1.msra.mxu0 0.0
        %2536 = vmatprep.subr.mxu0 0.0
        %2537 = vmatpush1.msra.mxu0 0.0
        %2538 = vmatprep.subr.mxu0 0.0
        %2539 = vmatpush1.msra.mxu0 0.0
        %2540 = vmatprep.subr.mxu0 0.0
        %2541 = vmatpush1.msra.mxu0 0.0
        %2542 = vmatprep.subr.mxu0 0.0
        %2543 = vmatpush1.msra.mxu0 0.0
        %2544 = vmatprep.subr.mxu0 0.0
        %2545 = vmatpush1.msra.mxu0 0.0
        %2546 = vmatprep.subr.mxu0 0.0
        %2547 = vmatpush1.msra.mxu0 0.0
        %2548 = vmatprep.subr.mxu0 0.0
        %2549 = vmatpush1.msra.mxu0 0.0
        %2550 = vmatprep.subr.mxu0 0.0
        %2551 = vmatpush1.msra.mxu0 0.0
        %2552 = vmatprep.subr.mxu0 0.0
        %2553 = vmatpush1.msra.mxu0 0.0
        %2554 = vmatprep.subr.mxu0 0.0
        %2555 = vmatpush1.msra.mxu0 0.0
        %2556 = vmatprep.subr.mxu0 0.0
        %2557 = vmatpush1.msra.mxu0 0.0
        %2558 = vmatprep.subr.mxu0 0.0
        %2559 = vmatpush1.msra.mxu0 0.0
        %2560 = vmatprep.subr.mxu0 0.0
        %2561 = vmatpush1.msra.mxu0 0.0
        %2562 = vmatprep.subr.mxu0 0.0
        %2563 = vmatpush1.msra.mxu0 %v262
        %2564 = vmatprep.subr.mxu0 0.0
        %2565 = vmatpush1.msra.mxu0 %v261
        %2566 = vmatprep.subr.mxu0 0.0
        %2567 = vmatpush2.msra.mxu0 0.0
        %2568 = vmatprep.subr.mxu0 0.0
        %2569 = vmatpush2.msra.mxu0 0.0
        %2570 = vmatprep.subr.mxu0 0.0
        %2571 = vmatpush2.msra.mxu0 0.0
        %2572 = vmatprep.subr.mxu0 0.0
        %2573 = vmatpush2.msra.mxu0 0.0
        %2574 = vmatprep.subr.mxu0 0.0
        %2575 = vmatpush2.msra.mxu0 0.0
        %2576 = vmatprep.subr.mxu0 0.0
        %2577 = vmatpush2.msra.mxu0 0.0
        %2578 = vmatprep.subr.mxu0 0.0
        %2579 = vmatpush2.msra.mxu0 0.0
        %2580 = vmatprep.subr.mxu0 0.0
        %2581 = vmatpush2.msra.mxu0 0.0
        %2582 = vmatprep.subr.mxu0 0.0
        %2583 = vmatpush2.msra.mxu0 0.0
        %2584 = vmatprep.subr.mxu0 0.0
        %2585 = vmatpush2.msra.mxu0 0.0
        %2586 = vmatprep.subr.mxu0 0.0
        %2587 = vmatpush2.msra.mxu0 0.0
        %2588 = vmatprep.subr.mxu0 0.0
        %2589 = vmatpush2.msra.mxu0 0.0
        %2590 = vmatprep.subr.mxu0 0.0
        %2591 = vmatpush2.msra.mxu0 0.0
        %2592 = vmatprep.subr.mxu0 0.0
        %2593 = vmatpush2.msra.mxu0 0.0
        %2594 = vmatprep.subr.mxu0 0.0
        %2595 = vmatpush2.msra.mxu0 0.0
        %2596 = vmatprep.subr.mxu0 0.0
        %2597 = vmatpush2.msra.mxu0 0.0
        %2598 = vmatprep.mubr.f32.mxu0 0.0
        %2599 = vmatmul.mubr.f32.gmra.mxu0 %v2487
        %v2600 = vpop.f32.mrf.mxu0
        %v2601 = vadd.f32 %v2485, %v2600
        %v2602 = vpop.f32.mrf.mxu0
        %2603 = vmatprep.mubr.f32.mxu0 0.0
        %2604 = vmatmul.mubr.f32.gmra.mxu0 %v2490
        %v2605 = vpop.f32.mrf.mxu0
        %v2606 = vadd.f32 %v2485, %v2605
        %v2607 = vpop.f32.mrf.mxu0
        %2608 = vmatprep.mubr.f32.mxu0 0.0
        %2609 = vmatmul.mubr.f32.gmra.mxu0 %v2493
        %v2610 = vpop.f32.mrf.mxu0
        %v2611 = vadd.f32 %v2485, %v2610
        %v2612 = vpop.f32.mrf.mxu0
        %2613 = vmatprep.mubr.f32.mxu0 0.0
        %2614 = vmatmul.mubr.f32.gmra.mxu0 %v2496
        %v2615 = vpop.f32.mrf.mxu0
        %v2616 = vadd.f32 %v2485, %v2615
        %v2617 = vpop.f32.mrf.mxu0
        %2618 = vmatprep.mubr.f32.mxu0 0.0
        %2619 = vmatmul.mubr.f32.gmra.mxu0 %v2499
        %v2620 = vpop.f32.mrf.mxu0
        %v2621 = vadd.f32 %v2485, %v2620
        %v2622 = vpop.f32.mrf.mxu0
        %2623 = vmatprep.mubr.f32.mxu0 0.0
        %2624 = vmatmul.mubr.f32.gmra.mxu0 %v2502
        %v2625 = vpop.f32.mrf.mxu0
        %v2626 = vadd.f32 %v2485, %v2625
        %v2627 = vpop.f32.mrf.mxu0
        %2628 = vmatprep.mubr.f32.mxu0 0.0
        %2629 = vmatmul.mubr.f32.gmra.mxu0 %v2505
        %v2630 = vpop.f32.mrf.mxu0
        %v2631 = vadd.f32 %v2485, %v2630
        %v2632 = vpop.f32.mrf.mxu0
        %2633 = vmatprep.mubr.f32.mxu0 0.0
        %2634 = vmatmul.mubr.f32.gmra.mxu0 %v2508
        %v2635 = vpop.f32.mrf.mxu0
        %v2636 = vadd.f32 %v2485, %v2635
        %v2637 = vpop.f32.mrf.mxu0
        %2638 = vmatprep.mubr.f32.mxu0 0.0
        %2639 = vmatmul.mubr.f32.gmra.mxu0 %v2511
        %v2640 = vpop.f32.mrf.mxu0
        %v2641 = vadd.f32 %v2485, %v2640
        %v2642 = vpop.f32.mrf.mxu0
        %2643 = vmatprep.mubr.f32.mxu0 0.0
        %2644 = vmatmul.mubr.f32.gmra.mxu0 %v2514
        %v2645 = vpop.f32.mrf.mxu0
        %v2646 = vadd.f32 %v2485, %v2645
        %v2647 = vpop.f32.mrf.mxu0
        %2648 = vmatprep.mubr.f32.mxu0 0.0
        %2649 = vmatmul.mubr.f32.gmra.mxu0 %v2517
        %v2650 = vpop.f32.mrf.mxu0
        %v2651 = vadd.f32 %v2485, %v2650
        %v2652 = vpop.f32.mrf.mxu0
        %2653 = vmatprep.mubr.f32.mxu0 0.0
        %2654 = vmatmul.mubr.f32.gmra.mxu0 %v2520
        %v2655 = vpop.f32.mrf.mxu0
        %v2656 = vadd.f32 %v2485, %v2655
        %v2657 = vpop.f32.mrf.mxu0
        %2658 = vmatprep.mubr.f32.mxu0 0.0
        %2659 = vmatmul.mubr.f32.gmra.mxu0 %v2523
        %v2660 = vpop.f32.mrf.mxu0
        %v2661 = vadd.f32 %v2485, %v2660
        %v2662 = vpop.f32.mrf.mxu0
        %2663 = vmatprep.mubr.f32.mxu0 0.0
        %2664 = vmatmul.mubr.f32.gmra.mxu0 %v2526
        %v2665 = vpop.f32.mrf.mxu0
        %v2666 = vadd.f32 %v2485, %v2665
        %v2667 = vpop.f32.mrf.mxu0
        %2668 = vmatprep.mubr.f32.mxu0 0.0
        %2669 = vmatmul.mubr.f32.gmra.mxu0 %v2529
        %v2670 = vpop.f32.mrf.mxu0
        %v2671 = vadd.f32 %v2485, %v2670
        %v2672 = vpop.f32.mrf.mxu0
        %2673 = vmatprep.mubr.f32.mxu0 0.0
        %2674 = vmatmul.mubr.f32.gmra.mxu0 %v2532
        %v2675 = vpop.f32.mrf.mxu0
        %v2676 = vadd.f32 %v2485, %v2675
        %v2677 = vpop.f32.mrf.mxu0
        %2678 = vdwg.mxu0
        %v2679 = vtanh.pop %v2601
        %v2680 = vtanh.pop %v2606
        %v2681 = vtanh.pop %v2611
        %v2682 = vtanh.pop %v2616
        %v2683 = vtanh.pop %v2621
        %v2684 = vtanh.pop %v2626
        %v2685 = vtanh.pop %v2631
        %v2686 = vtanh.pop %v2636
        %v2687 = vtanh.pop %v2641
        %v2688 = vtanh.pop %v2646
        %v2689 = vtanh.pop %v2651
        %v2690 = vtanh.pop %v2656
        %v2691 = vtanh.pop %v2661
        %v2692 = vtanh.pop %v2666
        %v2693 = vtanh.pop %v2671
        %v2694 = vtanh.pop %v2676
        %v2695 = vlaneseq
        %v2696 = vshrl.u32 %v2695, 7
        %v2697 = vsub.s32 0, %v2696
        %v2698 = vrot.slane %v267, %v2697
        %v2700 = vsel %vm480, %v2679, 0
        %v2703 = vsel %vm480, %v2680, 0
        %v2706 = vsel %vm480, %v2681, 0
        %v2709 = vsel %vm480, %v2682, 0
        %v2712 = vsel %vm480, %v2683, 0
        %v2715 = vsel %vm480, %v2684, 0
        %v2718 = vsel %vm480, %v2685, 0
        %v2721 = vsel %vm480, %v2686, 0
        %v2724 = vsel %vm480, %v2687, 0
        %v2727 = vsel %vm480, %v2688, 0
        %v2730 = vsel %vm480, %v2689, 0
        %v2733 = vsel %vm480, %v2690, 0
        %v2736 = vsel %vm480, %v2691, 0
        %v2739 = vsel %vm480, %v2692, 0
        %v2742 = vsel %vm480, %v2693, 0
        %v2745 = vsel %vm480, %v2694, 0
        %2747 = vmatprep.subr.mxu0 0.0
        %2748 = vmatpush1.msra.mxu0 0.0
        %2749 = vmatprep.subr.mxu0 0.0
        %2750 = vmatpush1.msra.mxu0 0.0
        %2751 = vmatprep.subr.mxu0 0.0
        %2752 = vmatpush1.msra.mxu0 0.0
        %2753 = vmatprep.subr.mxu0 0.0
        %2754 = vmatpush1.msra.mxu0 0.0
        %2755 = vmatprep.subr.mxu0 0.0
        %2756 = vmatpush1.msra.mxu0 0.0
        %2757 = vmatprep.subr.mxu0 0.0
        %2758 = vmatpush1.msra.mxu0 0.0
        %2759 = vmatprep.subr.mxu0 0.0
        %2760 = vmatpush1.msra.mxu0 0.0
        %2761 = vmatprep.subr.mxu0 0.0
        %2762 = vmatpush1.msra.mxu0 0.0
        %2763 = vmatprep.subr.mxu0 0.0
        %2764 = vmatpush1.msra.mxu0 0.0
        %2765 = vmatprep.subr.mxu0 0.0
        %2766 = vmatpush1.msra.mxu0 0.0
        %2767 = vmatprep.subr.mxu0 0.0
        %2768 = vmatpush1.msra.mxu0 0.0
        %2769 = vmatprep.subr.mxu0 0.0
        %2770 = vmatpush1.msra.mxu0 0.0
        %2771 = vmatprep.subr.mxu0 0.0
        %2772 = vmatpush1.msra.mxu0 0.0
        %2773 = vmatprep.subr.mxu0 0.0
        %2774 = vmatpush1.msra.mxu0 %v266
        %2775 = vmatprep.subr.mxu0 0.0
        %2776 = vmatpush1.msra.mxu0 %v265
        %2777 = vmatprep.subr.mxu0 0.0
        %2778 = vmatpush1.msra.mxu0 %v264
        %2779 = vmatprep.subr.mxu0 0.0
        %2780 = vmatpush2.msra.mxu0 0.0
        %2781 = vmatprep.subr.mxu0 0.0
        %2782 = vmatpush2.msra.mxu0 0.0
        %2783 = vmatprep.subr.mxu0 0.0
        %2784 = vmatpush2.msra.mxu0 0.0
        %2785 = vmatprep.subr.mxu0 0.0
        %2786 = vmatpush2.msra.mxu0 0.0
        %2787 = vmatprep.subr.mxu0 0.0
        %2788 = vmatpush2.msra.mxu0 0.0
        %2789 = vmatprep.subr.mxu0 0.0
        %2790 = vmatpush2.msra.mxu0 0.0
        %2791 = vmatprep.subr.mxu0 0.0
        %2792 = vmatpush2.msra.mxu0 0.0
        %2793 = vmatprep.subr.mxu0 0.0
        %2794 = vmatpush2.msra.mxu0 0.0
        %2795 = vmatprep.subr.mxu0 0.0
        %2796 = vmatpush2.msra.mxu0 0.0
        %2797 = vmatprep.subr.mxu0 0.0
        %2798 = vmatpush2.msra.mxu0 0.0
        %2799 = vmatprep.subr.mxu0 0.0
        %2800 = vmatpush2.msra.mxu0 0.0
        %2801 = vmatprep.subr.mxu0 0.0
        %2802 = vmatpush2.msra.mxu0 0.0
        %2803 = vmatprep.subr.mxu0 0.0
        %2804 = vmatpush2.msra.mxu0 0.0
        %2805 = vmatprep.subr.mxu0 0.0
        %2806 = vmatpush2.msra.mxu0 0.0
        %2807 = vmatprep.subr.mxu0 0.0
        %2808 = vmatpush2.msra.mxu0 0.0
        %2809 = vmatprep.subr.mxu0 0.0
        %2810 = vmatpush2.msra.mxu0 0.0
        %2811 = vmatprep.mubr.f32.mxu0 0.0
        %2812 = vmatmul.mubr.f32.gmra.mxu0 %v2700
        %v2813 = vpop.f32.mrf.mxu0
        %v2814 = vadd.f32 %v2698, %v2813
        %v2815 = vpop.f32.mrf.mxu0
        %2816 = vmatprep.mubr.f32.mxu0 0.0
        %2817 = vmatmul.mubr.f32.gmra.mxu0 %v2703
        %v2818 = vpop.f32.mrf.mxu0
        %v2819 = vadd.f32 %v2698, %v2818
        %v2820 = vpop.f32.mrf.mxu0
        %2821 = vmatprep.mubr.f32.mxu0 0.0
        %2822 = vmatmul.mubr.f32.gmra.mxu0 %v2706
        %v2823 = vpop.f32.mrf.mxu0
        %v2824 = vadd.f32 %v2698, %v2823
        %v2825 = vpop.f32.mrf.mxu0
        %2826 = vmatprep.mubr.f32.mxu0 0.0
        %2827 = vmatmul.mubr.f32.gmra.mxu0 %v2709
        %v2828 = vpop.f32.mrf.mxu0
        %v2829 = vadd.f32 %v2698, %v2828
        %v2830 = vpop.f32.mrf.mxu0
        %2831 = vmatprep.mubr.f32.mxu0 0.0
        %2832 = vmatmul.mubr.f32.gmra.mxu0 %v2712
        %v2833 = vpop.f32.mrf.mxu0
        %v2834 = vadd.f32 %v2698, %v2833
        %v2835 = vpop.f32.mrf.mxu0
        %2836 = vmatprep.mubr.f32.mxu0 0.0
        %2837 = vmatmul.mubr.f32.gmra.mxu0 %v2715
        %v2838 = vpop.f32.mrf.mxu0
        %v2839 = vadd.f32 %v2698, %v2838
        %v2840 = vpop.f32.mrf.mxu0
        %2841 = vmatprep.mubr.f32.mxu0 0.0
        %2842 = vmatmul.mubr.f32.gmra.mxu0 %v2718
        %v2843 = vpop.f32.mrf.mxu0
        %v2844 = vadd.f32 %v2698, %v2843
        %v2845 = vpop.f32.mrf.mxu0
        %2846 = vmatprep.mubr.f32.mxu0 0.0
        %2847 = vmatmul.mubr.f32.gmra.mxu0 %v2721
        %v2848 = vpop.f32.mrf.mxu0
        %v2849 = vadd.f32 %v2698, %v2848
        %v2850 = vpop.f32.mrf.mxu0
        %2851 = vmatprep.mubr.f32.mxu0 0.0
        %2852 = vmatmul.mubr.f32.gmra.mxu0 %v2724
        %v2853 = vpop.f32.mrf.mxu0
        %v2854 = vadd.f32 %v2698, %v2853
        %v2855 = vpop.f32.mrf.mxu0
        %2856 = vmatprep.mubr.f32.mxu0 0.0
        %2857 = vmatmul.mubr.f32.gmra.mxu0 %v2727
        %v2858 = vpop.f32.mrf.mxu0
        %v2859 = vadd.f32 %v2698, %v2858
        %v2860 = vpop.f32.mrf.mxu0
        %2861 = vmatprep.mubr.f32.mxu0 0.0
        %2862 = vmatmul.mubr.f32.gmra.mxu0 %v2730
        %v2863 = vpop.f32.mrf.mxu0
        %v2864 = vadd.f32 %v2698, %v2863
        %v2865 = vpop.f32.mrf.mxu0
        %2866 = vmatprep.mubr.f32.mxu0 0.0
        %2867 = vmatmul.mubr.f32.gmra.mxu0 %v2733
        %v2868 = vpop.f32.mrf.mxu0
        %v2869 = vadd.f32 %v2698, %v2868
        %v2870 = vpop.f32.mrf.mxu0
        %2871 = vmatprep.mubr.f32.mxu0 0.0
        %2872 = vmatmul.mubr.f32.gmra.mxu0 %v2736
        %v2873 = vpop.f32.mrf.mxu0
        %v2874 = vadd.f32 %v2698, %v2873
        %v2875 = vpop.f32.mrf.mxu0
        %2876 = vmatprep.mubr.f32.mxu0 0.0
        %2877 = vmatmul.mubr.f32.gmra.mxu0 %v2739
        %v2878 = vpop.f32.mrf.mxu0
        %v2879 = vadd.f32 %v2698, %v2878
        %v2880 = vpop.f32.mrf.mxu0
        %2881 = vmatprep.mubr.f32.mxu0 0.0
        %2882 = vmatmul.mubr.f32.gmra.mxu0 %v2742
        %v2883 = vpop.f32.mrf.mxu0
        %v2884 = vadd.f32 %v2698, %v2883
        %v2885 = vpop.f32.mrf.mxu0
        %2886 = vmatprep.mubr.f32.mxu0 0.0
        %2887 = vmatmul.mubr.f32.gmra.mxu0 %v2745
        %v2888 = vpop.f32.mrf.mxu0
        %v2889 = vadd.f32 %v2698, %v2888
        %v2890 = vpop.f32.mrf.mxu0
        %2891 = vdwg.mxu0
        %v2894 = vunpack.c.l.s4 1966171168
        %v2895 = vunpack.c.0.s8 %v2894
        %v2896 = vlaneseq
        %v2897 = vshrl.u32 %v2896, 7
        %v2898 = vsub.s32 %v2895, %v2897
        %v2899 = vrot.slane %v269, %v2898
        %v2900 = vcombine.high %v2899, %v2899
        %v2902 = vunpack.c.l.s4 1966171168
        %v2903 = vunpack.c.0.s8 %v2902
        %v2904 = vlaneseq
        %v2905 = vshrl.u32 %v2904, 7
        %v2906 = vsub.s32 %v2903, %v2905
        %v2907 = vrot.slane %v2899, %v2906
        %v2909 = vunpack.c.l.s4 1966171168
        %v2910 = vunpack.c.0.s8 %v2909
        %v2911 = vlaneseq
        %v2912 = vshrl.u32 %v2911, 7
        %v2913 = vsub.s32 %v2910, %v2912
        %v2914 = vrot.slane %v2900, %v2913
        %v2915 = vlaneseq
        %v2916 = vshrl.u32 %v2915, 7
        %v2917 = vsub.s32 0, %v2916
        %v2918 = vrot.slane %v2907, %v2917
        %v2919 = vlaneseq
        %v2920 = vshrl.u32 %v2919, 7
        %v2921 = vsub.s32 0, %v2920
        %v2922 = vrot.slane %v2914, %v2921
        %v2925 = vmul.f32 %v2814, %v2918
        %v2926 = vmul.f32 %v2819, %v2922
        %v2927 = vmul.f32 %v2824, %v2918
        %v2928 = vmul.f32 %v2829, %v2922
        %v2929 = vmul.f32 %v2834, %v2918
        %v2930 = vmul.f32 %v2839, %v2922
        %v2931 = vmul.f32 %v2844, %v2918
        %v2932 = vmul.f32 %v2849, %v2922
        %v2933 = vmul.f32 %v2854, %v2918
        %v2934 = vmul.f32 %v2859, %v2922
        %v2935 = vmul.f32 %v2864, %v2918
        %v2936 = vmul.f32 %v2869, %v2922
        %v2937 = vmul.f32 %v2874, %v2918
        %v2938 = vmul.f32 %v2879, %v2922
        %v2939 = vmul.f32 %v2884, %v2918
        %v2940 = vmul.f32 %v2889, %v2922
        %v2941 = vsel %vm286, %v2925, 0.0
        %v2942 = vsel %vm286, %v2926, 0.0
        %v2943 = vadd.f32 %v2941, %v2942
        %v2944 = vsel %vm286, %v2927, 0.0
        %v2945 = vsel %vm286, %v2928, 0.0
        %v2946 = vadd.f32 %v2944, %v2945
        %v2947 = vsel %vm286, %v2929, 0.0
        %v2948 = vsel %vm286, %v2930, 0.0
        %v2949 = vadd.f32 %v2947, %v2948
        %v2950 = vsel %vm286, %v2931, 0.0
        %v2951 = vsel %vm286, %v2932, 0.0
        %v2952 = vadd.f32 %v2950, %v2951
        %v2953 = vsel %vm286, %v2933, 0.0
        %v2954 = vsel %vm286, %v2934, 0.0
        %v2955 = vadd.f32 %v2953, %v2954
        %v2956 = vsel %vm286, %v2935, 0.0
        %v2957 = vsel %vm286, %v2936, 0.0
        %v2958 = vadd.f32 %v2956, %v2957
        %v2959 = vsel %vm286, %v2937, 0.0
        %v2960 = vsel %vm286, %v2938, 0.0
        %v2961 = vadd.f32 %v2959, %v2960
        %v2962 = vsel %vm286, %v2939, 0.0
        %v2963 = vsel %vm286, %v2940, 0.0
        %v2964 = vadd.f32 %v2962, %v2963
        %2965 = vst.msk [vmem:[%s242] sm:$0xff] %vm286, %v2943
        %2966 = vst.msk [vmem:[%s242 + $0x8] sm:$0xff] %vm286, %v2946
        %2967 = vst.msk [vmem:[%s242 + $0x10] sm:$0xff] %vm286, %v2949
        %2968 = vst.msk [vmem:[%s242 + $0x18] sm:$0xff] %vm286, %v2952
        %2969 = vst.msk [vmem:[%s242 + $0x20] sm:$0xff] %vm286, %v2955
        %2970 = vst.msk [vmem:[%s242 + $0x28] sm:$0xff] %vm286, %v2958
        %2971 = vst.msk [vmem:[%s242 + $0x30] sm:$0xff] %vm286, %v2961
        %2972 = vst.msk [vmem:[%s242 + $0x38] sm:$0xff] %vm286, %v2964
        %s2973 = sand.u32 %s76, 1
        %s2974 = scalar_lea.sflag [#allocation5], %s2973
        %s2975 = sand.u32 %s76, 1
        %s2976 = smul.addr %s2975, 64
        %s2977 = scalar_lea.vmem [#allocation4], %s2976
        %s2978 = sand.u32 %s102, 1
        %s2979 = scalar_lea.sflag [#allocation7], %s2978
        %s2980 = sand.u32 %s102, 1
        %s2981 = smul.addr %s2980, 64
        %s2982 = scalar_lea.vmem [#allocation6], %s2981
        // Predicated region
        $region67: #{tpu_custom_call.1} parent=61 // pred_check
          %p2983 = pneg %p86
        $region68: #{tpu_custom_call.1} parent=61 // pred_check_branch
          %2985 = sbr.rel (%p2983) target = $region70
        $region69: #{tpu_custom_call.1} parent=61 // pred_region
          %s2987 = ssub.s32 1024, 1024
          %2988 = vsyncadd %s2974, %s2987
          %s2989 = smul.addr %s21, 128
          %s2990 = scalar_lea.hbm %s2, %s2989
          %s2991 = sshll.u32 %s2977, 4
          %s2992 = int_to_ptr.vmem [resolvable:$true] %s2991
          %2997 = dma.vmem_to_hbm [thread:$0]  %s2992, 1024, %s2990, %s2974, 128, 256, 8
        $region70: #{tpu_custom_call.1} parent=61 // pred_fallthru
          _
        // Predicated region
        $region71: #{tpu_custom_call.1} parent=61 // pred_check
          %p2998 = pneg %p112
        $region72: #{tpu_custom_call.1} parent=61 // pred_check_branch
          %3000 = sbr.rel (%p2998) target = $region74
        $region73: #{tpu_custom_call.1} parent=61 // pred_region
          %s3002 = ssub.s32 1024, 1024
          %3003 = vsyncadd %s2979, %s3002
          %s3004 = smul.addr %s21, 128
          %s3005 = scalar_lea.hbm %s3, %s3004
          %s3006 = sshll.u32 %s2982, 4
          %s3007 = int_to_ptr.vmem [resolvable:$true] %s3006
          %3012 = dma.vmem_to_hbm [thread:$0]  %s3007, 1024, %s3005, %s2979, 128, 256, 8
        $region74: #{tpu_custom_call.1} parent=61 // pred_fallthru
          _
      $region62: #{tpu_custom_call.1} parent=5 // pred_fallthru
        _
      %p3013 = scmp.le.s32.totalorder 2, %s16
      // Predicated region
      $region75: #{tpu_custom_call.1} parent=5 // pred_check
        %p3014 = pneg %p3013
      $region76: #{tpu_custom_call.1} parent=5 // pred_check_branch
        %3016 = sbr.rel (%p3014) target = $region78
      $region77: #{tpu_custom_call.1} parent=5 // pred_region
        %s3017 = ssub.s32 %s16, 2
        // Predicated region
        $region79: #{tpu_custom_call.1} parent=77 // pred_check
          %p3018 = pneg %p92
        $region80: #{tpu_custom_call.1} parent=77 // pred_check_branch
          %3020 = sbr.rel (%p3018) target = $region82
        $region81: #{tpu_custom_call.1} parent=77 // pred_region
          %s3021 = sand.u32 %s77, 1
          %s3022 = scalar_lea.sflag [#allocation5], %s3021
          %s3023 = sand.u32 %s77, 1
          %s3024 = smul.addr %s3023, 64
          %s3025 = scalar_lea.vmem [#allocation4], %s3024
          %3026 = dma.done %s3022, 1024
        $region82: #{tpu_custom_call.1} parent=77 // pred_fallthru
          _
        // Predicated region
        $region83: #{tpu_custom_call.1} parent=77 // pred_check
          %p3027 = pneg %p118
        $region84: #{tpu_custom_call.1} parent=77 // pred_check_branch
          %3029 = sbr.rel (%p3027) target = $region86
        $region85: #{tpu_custom_call.1} parent=77 // pred_region
          %s3030 = sand.u32 %s103, 1
          %s3031 = scalar_lea.sflag [#allocation7], %s3030
          %s3032 = sand.u32 %s103, 1
          %s3033 = smul.addr %s3032, 64
          %s3034 = scalar_lea.vmem [#allocation6], %s3033
          %3035 = dma.done %s3031, 1024
        $region86: #{tpu_custom_call.1} parent=77 // pred_fallthru
          _
      $region78: #{tpu_custom_call.1} parent=5 // pred_fallthru
        _
    $region6: #{tpu_custom_call.1} parent=1 // loop_footer
      %s20 = sadd.s32 1, %s16
    $region7: #{tpu_custom_call.1} parent=1 // loop_footer_branch
      %15 = sbr.rel target = $region3
    $region8: #{tpu_custom_call.1} parent=1 // loop_exit
      _
    %3036 = vsyncpa [#allocation5], 1
    %s3037 = scalar_lea.sflag [#allocation5], 1
    %3038 = vsyncpa %s3037, 1
    %3039 = vsyncpa [#allocation7], 1
    %s3040 = scalar_lea.sflag [#allocation7], 1
    %3041 = vsyncpa %s3040, 1

</llo_original>
